<compile_context>
chip_gen: v7x
topology: tpu7x:2x2x1
jax: 0.10.0
libtpu: 0.0.40
codegen_flags: <defaults>
</compile_context>

<pallas_src>
import functools

import jax
import jax.numpy as jnp
from jax.experimental import pallas as pl
from jax.experimental.pallas import tpu as pltpu


# ----------------------------------------------------------------------------
# helpers
# ----------------------------------------------------------------------------
def _round_up(x, m):
    return ((x + m - 1) // m) * m


def _pad2(w, rows, cols):
    return jnp.pad(w, ((0, rows - w.shape[0]), (0, cols - w.shape[1])))


def _pad1(b, n):
    return jnp.pad(b, (0, n - b.shape[0]))


def _tensorcores_per_chip():
    try:
        info = pltpu.get_tpu_info()
        for attr in ("num_cores", "num_tensorcores", "tensorcores_per_chip", "core_count"):
            v = getattr(info, attr, None)
            if v is not None:
                return int(v)
    except Exception:
        pass
    try:
        return int(getattr(jax.devices()[0], "num_cores", 1))
    except Exception:
        return 1


def _vmem_capacity_bytes():
    try:
        v = getattr(pltpu.get_tpu_info(), "vmem_capacity_bytes", None)
        if v is not None:
            return int(v)
    except Exception:
        pass
    return 128 * 1024 * 1024


# ----------------------------------------------------------------------------
# Pallas kernel: one grid cell == (batch chunk, chunk of Tc recurrence steps).
#
# Grid order: time (axis 1) is the innermost / last grid axis, so for every
# batch chunk the t_chunk == 0 iteration runs first — the weight DMA and the
# H re-seed below therefore always happen before any step that reads them.
# The hidden state lives in VMEM scratch and persists across time chunks.
# ----------------------------------------------------------------------------
def _ggru_recurrent_kernel(
    pre_gz_ref,   # (Tc, Bc, 2*NHp)  X-side pre-activations [Z_t | Z_m]
    pre_gr_ref,   # (Tc, Bc, 2*NHp)  X-side pre-activations [R_t | R_m]
    pre_c_ref,    # (Tc, Bc, NHp)    X-side candidate pre-activation
    h0_ref,       # (Bc, NHp)        initial hidden state
    w_h_hbm,      # (NHp, 4*NHp)     [W_hz_t|W_hz_m | W_hr_t|W_hr_m]   (HBM, ANY)
    w_f_hbm,      # (2*NHp, 2*NHp)   [ [zt;zm] | [rt;rm] ]             (HBM, ANY)
    b_f_hbm,      # (1, 2*NHp)       [fus_zbias | fus_rbias]           (HBM, ANY)
    w_hh_hbm,     # (NHp, NHp)       candidate hidden weight           (HBM, ANY)
    out_ref,      # (Tc, Bc, NHp)    per-step hidden states
    w_h_s,        # VMEM scratch, resident copy of w_h_hbm
    w_f_s,        # VMEM scratch, resident copy of w_f_hbm
    b_f_s,        # VMEM scratch, resident copy of b_f_hbm
    w_hh_s,       # VMEM scratch, resident copy of w_hh_hbm
    h_s,          # VMEM (Bc, NHp)   carried hidden state
    dma_sems,     # DMA semaphores (4,)
    *,
    static_unroll,
):
    t_chunk = pl.program_id(1)
    nh = h_s.shape[-1]
    bc = h_s.shape[0]
    tc = out_ref.shape[0]

    @pl.when(t_chunk == 0)
    def _():
        # Single-buffered weight residency: copy all weights HBM -> VMEM once
        # per batch sweep (overlapped), and (re)seed the carried hidden state.
        cps = [
            pltpu.make_async_copy(w_h_hbm, w_h_s, dma_sems.at[0]),
            pltpu.make_async_copy(w_f_hbm, w_f_s, dma_sems.at[1]),
            pltpu.make_async_copy(b_f_hbm, b_f_s, dma_sems.at[2]),
            pltpu.make_async_copy(w_hh_hbm, w_hh_s, dma_sems.at[3]),
        ]
        for c in cps:
            c.start()
        h_s[...] = h0_ref[...]
        for c in cps:
            c.wait()

    # Resident weights (slices at NHp multiples -> tile-aligned, no copies).
    w_hz = w_h_s[:, : 2 * nh]         # (NHp, 2*NHp)  -> [Z_t | Z_m] columns
    w_hr = w_h_s[:, 2 * nh:]          # (NHp, 2*NHp)  -> [R_t | R_m] columns
    w_fz = w_f_s[:, :nh]              # (2*NHp, NHp)  rows = [zt ; zm]
    w_fr = w_f_s[:, nh:]              # (2*NHp, NHp)  rows = [rt ; rm]
    w_hh = w_hh_s[...]
    cdt = w_hz.dtype                  # matmul operand dtype (f32 or bf16)
    # Bias broadcasts hoisted out of the per-step loop (JAX does not CSE them).
    b_fz = jnp.broadcast_to(b_f_s[:, :nh].astype(jnp.float32), (bc, nh))
    b_fr = jnp.broadcast_to(b_f_s[:, nh:].astype(jnp.float32), (bc, nh))

    sig = jax.nn.sigmoid

    def step(i, H):
        Hc = H.astype(cdt)
        # ---- Z side, consumed to completion before the R side (vreg bound) --
        g_z = sig(pre_gz_ref[i] +
                  jnp.dot(Hc, w_hz, preferred_element_type=jnp.float32))
        z = sig(jnp.dot(g_z.astype(cdt), w_fz,
                        preferred_element_type=jnp.float32) + b_fz)
        Zt = g_z[:, :nh]
        Zm = g_z[:, nh:]
        Z = Zm + z * (Zt - Zm)                       # 3-op blend
        # ---- R side ---------------------------------------------------------
        g_r = sig(pre_gr_ref[i] +
                  jnp.dot(Hc, w_hr, preferred_element_type=jnp.float32))
        r = sig(jnp.dot(g_r.astype(cdt), w_fr,
                        preferred_element_type=jnp.float32) + b_fr)
        Rt = g_r[:, :nh]
        Rm = g_r[:, nh:]
        R = Rm + r * (Rt - Rm)
        # ---- candidate + state update ---------------------------------------
        RH = R * H
        H_t = jnp.tanh(pre_c_ref[i] +
                       jnp.dot(RH.astype(cdt), w_hh,
                               preferred_element_type=jnp.float32))
        H_new = H_t + Z * (H - H_t)
        out_ref[i] = H_new.astype(out_ref.dtype)
        return H_new

    if static_unroll:
        # Small NHp / short chunk: full static unroll (LLO scheduler visibility).
        H = h_s[...]
        for i in range(tc):
            H = step(i, H)
        h_s[...] = H
    else:
        # Large NHp: rolled loop bounds vreg live ranges (avoids spills).
        h_s[...] = jax.lax.fori_loop(0, tc, step, h_s[...])


# ----------------------------------------------------------------------------
# Public forward: (B, T, num_inputs) inputs -> (B, T, NH) outputs, (B, NH) H.
# ----------------------------------------------------------------------------
@functools.partial(jax.jit,
                   static_argnames=("time_chunk", "weight_dtype", "stream_dtype"))
def ggru_forward(tt_inputs, mark_inputs, params, H0=None, *,
                 time_chunk=16, weight_dtype=jnp.float32,
                 stream_dtype=jnp.float32):
    B, T, I = tt_inputs.shape
    NH = params["W_hz_t"].shape[0]
    f32 = jnp.float32

    tt = tt_inputs.astype(f32)
    mk = mark_inputs.astype(f32)
    p = {k: v.astype(f32) for k, v in params.items()}

    if H0 is None:
        H0 = jnp.zeros((B, NH), f32)
    H0 = H0.astype(f32)

    # ---- hardware-aligned padded sizes -------------------------------------
    NHp = _round_up(NH, 128)              # lane-dense hidden dim
    # Batch split only helps when >1 TensorCore AND each core keeps >=64 rows.
    n_cores = _tensorcores_per_chip()
    Bp1 = _round_up(B, 8)
    n_b = 2 if (n_cores >= 2 and Bp1 >= 128 and Bp1 % 16 == 0) else 1
    Bp = _round_up(B, 8 * n_b)
    Bc = Bp // n_b

    # Time chunk: prefer a divisor of T (no wasted padded recurrence steps).
    Tc = max(1, min(int(time_chunk), T))
    if T % Tc != 0:
        best = 1
        for d in range(Tc, 0, -1):
            if T % d == 0:
                best = d
                break
        if best >= max(1, Tc // 2):
            Tc = best
    Tp = _round_up(T, Tc)
    n_t = Tp // Tc

    # ---- input-side precompute: one big GEMM over all (B, T) positions -----
    # column layout of the big GEMM: [Z_t | Z_m | R_t | R_m | x_gate]
    zero_blk = jnp.zeros((I, NHp), f32)
    W_x_all = jnp.concatenate([
        jnp.concatenate([_pad2(p["W_xz_t"], I, NHp), zero_blk,
                         _pad2(p["W_xr_t"], I, NHp), zero_blk,
                         p["fus_W_xt"]], axis=1),
        jnp.concatenate([zero_blk, _pad2(p["W_xz_m"], I, NHp),
                         zero_blk, _pad2(p["W_xr_m"], I, NHp),
                         p["fus_W_xm"]], axis=1),
    ], axis=0)                                                    # (2I, 4*NHp + I)
    b_x_all = jnp.concatenate([_pad1(p["b_z_t"], NHp), _pad1(p["b_z_m"], NHp),
                               _pad1(p["b_r_t"], NHp), _pad1(p["b_r_m"], NHp),
                               p["fus_xbias"]])

    xx = jnp.concatenate([tt, mk], axis=-1)                       # (B, T, 2I)
    pre = jnp.einsum("bti,ik->btk", xx, W_x_all) + b_x_all        # (B, T, 4*NHp + I)
    pre_g_z = pre[..., 0 * NHp:2 * NHp]                           # [Z_t | Z_m]
    pre_g_r = pre[..., 2 * NHp:4 * NHp]                           # [R_t | R_m]
    x_gate = jax.nn.sigmoid(pre[..., 4 * NHp:])                   # fused-X gate
    X_f = mk + x_gate * (tt - mk)
    pre_cand = (jnp.einsum("bti,ik->btk", X_f, _pad2(p["W_xh"], I, NHp))
                + _pad1(p["b_h"], NHp))                           # (B, T, NHp)

    def _to_tm(a):  # pad batch/time, go time-major for the sequential grid axis
        a = jnp.pad(a, ((0, Bp - B), (0, Tp - T), (0, 0)))
        return jnp.transpose(a, (1, 0, 2)).astype(stream_dtype)

    pre_g_z_tm = _to_tm(pre_g_z)                                  # (Tp, Bp, 2*NHp)
    pre_g_r_tm = _to_tm(pre_g_r)                                  # (Tp, Bp, 2*NHp)
    pre_c_tm = _to_tm(pre_cand)                                   # (Tp, Bp, NHp)
    H0_p = jnp.pad(H0, ((0, Bp - B), (0, NHp - NH)))              # (Bp, NHp)

    # ---- recurrent-side packed weights (zero-padded to (8,128) tiles) ------
    # Padded gate columns evaluate to sigmoid(0)=0.5; this is harmless only
    # because the corresponding padded ROWS of W_f_all and padded COLS of
    # W_hh_p are exactly zero (preserved by _pad2 below).
    W_h_all = jnp.concatenate(
        [_pad2(p["W_hz_t"], NHp, NHp), _pad2(p["W_hz_m"], NHp, NHp),
         _pad2(p["W_hr_t"], NHp, NHp), _pad2(p["W_hr_m"], NHp, NHp)],
        axis=1).astype(weight_dtype)                              # (NHp, 4*NHp)
    W_f_all = jnp.concatenate([
        jnp.concatenate([_pad2(p["fus_W_zt"], NHp, NHp),
                         _pad2(p["fus_W_zm"], NHp, NHp)], axis=0),
        jnp.concatenate([_pad2(p["fus_W_rt"], NHp, NHp),
                         _pad2(p["fus_W_rm"], NHp, NHp)], axis=0),
    ], axis=1).astype(weight_dtype)                               # (2*NHp, 2*NHp)
    b_f_all = jnp.concatenate([_pad1(p["fus_zbias"], NHp),
                               _pad1(p["fus_rbias"], NHp)]
                              ).reshape(1, -1).astype(f32)        # (1, 2*NHp)
    W_hh_p = _pad2(p["W_hh"], NHp, NHp).astype(weight_dtype)      # (NHp, NHp)

    # ---- VMEM budget (per-generation cap) -----------------------------------
    w_itemsize = jnp.dtype(weight_dtype).itemsize
    io_itemsize = jnp.dtype(stream_dtype).itemsize
    w_bytes = (W_h_all.size + W_f_all.size + W_hh_p.size) * w_itemsize \
        + b_f_all.size * 4
    in_block = Tc * Bc * (2 * NHp + 2 * NHp + NHp) * io_itemsize + Bc * NHp * 4
    out_block = Tc * Bc * NHp * 4
    need = w_bytes + 2 * (in_block + out_block) + Bc * NHp * 4
    phys = _vmem_capacity_bytes()
    cap = (48 << 20) if phys <= (64 << 20) else (100 << 20)
    vmem_limit = int(min(cap, max(16 << 20, int(1.25 * need) + (2 << 20))))

    static_unroll = bool(NHp < 512 and Tc <= 8)

    # ---- pallas_call ---------------------------------------------------------
    def seq_spec(width):
        return pl.BlockSpec((Tc, Bc, width), lambda b, t: (t, b, 0))

    any_spec = pl.BlockSpec(memory_space=pl.ANY)   # weights: raw HBM ref, manual DMA

    kernel = functools.partial(_ggru_recurrent_kernel, static_unroll=static_unroll)

    outputs_tm = pl.pallas_call(
        kernel,
        out_shape=jax.ShapeDtypeStruct((Tp, Bp, NHp), f32),
        grid_spec=pltpu.PrefetchScalarGridSpec(
            num_scalar_prefetch=0,
            grid=(n_b, n_t),
            in_specs=[
                seq_spec(2 * NHp),                              # pre_gates z-side
                seq_spec(2 * NHp),                              # pre_gates r-side
                seq_spec(NHp),                                  # pre_cand
                pl.BlockSpec((Bc, NHp), lambda b, t: (b, 0)),   # H0
                any_spec,                                       # W_h_all   (HBM)
                any_spec,                                       # W_f_all   (HBM)
                any_spec,                                       # b_f_all   (HBM)
                any_spec,                                       # W_hh_p    (HBM)
            ],
            out_specs=pl.BlockSpec((Tc, Bc, NHp), lambda b, t: (t, b, 0)),
            scratch_shapes=[
                pltpu.VMEM(W_h_all.shape, weight_dtype),        # resident weights
                pltpu.VMEM(W_f_all.shape, weight_dtype),
                pltpu.VMEM(b_f_all.shape, f32),
                pltpu.VMEM(W_hh_p.shape, weight_dtype),
                pltpu.VMEM((Bc, NHp), f32),                     # carried H
                pltpu.SemaphoreType.DMA((4,)),
            ],
        ),
        compiler_params=pltpu.CompilerParams(
            # batch chunks independent -> "parallel" (megacore split when n_b>1);
            # time is the recurrence -> "arbitrary" (sequential, innermost axis).
            dimension_semantics=("parallel", "arbitrary"),
            vmem_limit_bytes=vmem_limit,
        ),
    )(pre_g_z_tm, pre_g_r_tm, pre_c_tm, H0_p,
      W_h_all, W_f_all, b_f_all, W_hh_p)

    h_final = outputs_tm[T - 1, :B, :NH]
    outputs = jnp.transpose(outputs_tm[:T, :B, :NH], (1, 0, 2))   # (B, T, NH)
    return outputs, h_final


# ----------------------------------------------------------------------------
# Deterministic parameter init (mirrors the PyTorch __init__ shapes).
# ----------------------------------------------------------------------------
def init_ggru_params(key, num_inputs, num_hiddens, sigma=0.01):
    keys = iter(jax.random.split(key, 32))
    p = {}

    def triple(name_x, name_h, name_b):
        p[name_x] = sigma * jax.random.normal(next(keys), (num_inputs, num_hiddens))
        p[name_h] = sigma * jax.random.normal(next(keys), (num_hiddens, num_hiddens))
        p[name_b] = jnp.zeros((num_hiddens,), jnp.float32)

    triple("W_xz_t", "W_hz_t", "b_z_t")
    triple("W_xr_t", "W_hr_t", "b_r_t")
    triple("W_xz_m", "W_hz_m", "b_z_m")
    triple("W_xr_m", "W_hr_m", "b_r_m")

    def unif(shape):
        return jax.random.uniform(next(keys), shape, minval=-0.1, maxval=0.1)

    p["fus_W_rt"] = unif((num_hiddens, num_hiddens))
    p["fus_W_rm"] = unif((num_hiddens, num_hiddens))
    p["fus_rbias"] = unif((num_hiddens,))
    p["fus_W_zt"] = unif((num_hiddens, num_hiddens))
    p["fus_W_zm"] = unif((num_hiddens, num_hiddens))
    p["fus_zbias"] = unif((num_hiddens,))
    p["fus_W_xt"] = unif((num_inputs, num_inputs))
    p["fus_W_xm"] = unif((num_inputs, num_inputs))
    p["fus_xbias"] = unif((num_inputs,))

    triple("W_xh", "W_hh", "b_h")
    return {k: v.astype(jnp.float32) for k, v in p.items()}


# ----------------------------------------------------------------------------
# Pure-JAX reference (mirrors the PyTorch forward) for correctness checking.
# ----------------------------------------------------------------------------
def ggru_reference(tt_inputs, mark_inputs, p, H0=None):
    B, T, _ = tt_inputs.shape
    NH = p["W_hz_t"].shape[0]
    H = jnp.zeros((B, NH), jnp.float32) if H0 is None else H0
    sig = jax.nn.sigmoid
    outs = []
    for i in range(T):
        X_t = tt_inputs[:, i]
        X_m = mark_inputs[:, i]
        Z_t = sig(X_t @ p["W_xz_t"] + H @ p["W_hz_t"] + p["b_z_t"])
        R_t = sig(X_t @ p["W_xr_t"] + H @ p["W_hr_t"] + p["b_r_t"])
        Z_m = sig(X_m @ p["W_xz_m"] + H @ p["W_hz_m"] + p["b_z_m"])
        R_m = sig(X_m @ p["W_xr_m"] + H @ p["W_hr_m"] + p["b_r_m"])
        z = sig(Z_t @ p["fus_W_zt"] + Z_m @ p["fus_W_zm"] + p["fus_zbias"])
        Z = z * Z_t + (1 - z) * Z_m
        r = sig(R_t @ p["fus_W_rt"] + R_m @ p["fus_W_rm"] + p["fus_rbias"])
        R = r * R_t + (1 - r) * R_m
        x = sig(X_t @ p["fus_W_xt"] + X_m @ p["fus_W_xm"] + p["fus_xbias"])
        X = x * X_t + (1 - x) * X_m
        H_tilde = jnp.tanh(X @ p["W_xh"] + (R * H) @ p["W_hh"] + p["b_h"])
        H = Z * H + (1 - Z) * H_tilde
        outs.append(H)
    return jnp.stack(outs, axis=1), H


if __name__ == "__main__":
    # Small shapes; T=16 with time_chunk=8 exercises the multi-chunk carry of
    # the hidden state across sequential grid steps.
    B, T, num_inputs, num_hiddens = 4, 16, 8, 16

    key = jax.random.PRNGKey(0)
    k_p, k_tt, k_mk = jax.random.split(key, 3)
    params = init_ggru_params(k_p, num_inputs, num_hiddens)
    tt_inputs = jax.random.normal(k_tt, (B, T, num_inputs), jnp.float32)
    mark_inputs = jax.random.normal(k_mk, (B, T, num_inputs), jnp.float32)

    outputs, h_final = ggru_forward(tt_inputs, mark_inputs, params, time_chunk=8)
    outputs = jax.block_until_ready(outputs)
    h_final = jax.block_until_ready(h_final)

    ref_out, ref_h = ggru_reference(tt_inputs, mark_inputs, params)
    assert outputs.shape == (B, T, num_hiddens)
    assert h_final.shape == (B, num_hiddens)
    max_out_err = float(jnp.max(jnp.abs(outputs - ref_out)))
    max_h_err = float(jnp.max(jnp.abs(h_final - ref_h)))
    assert jnp.allclose(outputs, ref_out, rtol=1e-4, atol=2e-5), max_out_err
    assert jnp.allclose(h_final, ref_h, rtol=1e-4, atol=2e-5), max_h_err

    print("KERNEL_OK")
</pallas_src>

<mosaic_0001>
module attributes {stable_mosaic.version = 11 : i64} {
  func.func @_ggru_recurrent_kernel(%arg0: i32, %arg1: i32, %arg2: memref<8x8x256xf32, #tpu.memory_space<vmem>>, %arg3: memref<8x8x256xf32, #tpu.memory_space<vmem>>, %arg4: memref<8x8x128xf32, #tpu.memory_space<vmem>>, %arg5: memref<8x128xf32, #tpu.memory_space<vmem>>, %arg6: memref<128x512xf32, #tpu.memory_space<any>>, %arg7: memref<256x256xf32, #tpu.memory_space<any>>, %arg8: memref<1x256xf32, #tpu.memory_space<any>>, %arg9: memref<128x128xf32, #tpu.memory_space<any>>, %arg10: memref<8x8x128xf32, #tpu.memory_space<vmem>>, %arg11: memref<128x512xf32, #tpu.memory_space<vmem>>, %arg12: memref<256x256xf32, #tpu.memory_space<vmem>>, %arg13: memref<1x256xf32, #tpu.memory_space<vmem>>, %arg14: memref<128x128xf32, #tpu.memory_space<vmem>>, %arg15: memref<8x128xf32, #tpu.memory_space<vmem>>, %arg16: memref<4x!tpu.dma_semaphore, #tpu.memory_space<semaphore_mem>>) attributes {dimension_semantics = [#tpu.dimension_semantics<parallel>, #tpu.dimension_semantics<arbitrary>], iteration_bounds = array<i64: 1, 2>, scalar_prefetch = 0 : i64, scratch_operands = 6 : i64, tpu.core_type = #tpu.core_type<tc>, window_params = [{transform_indices = @transform_0, window_bounds = array<i64: 8, 8, 256>}, {transform_indices = @transform_1, window_bounds = array<i64: 8, 8, 256>}, {transform_indices = @transform_2, window_bounds = array<i64: 8, 8, 128>}, {transform_indices = @transform_3, window_bounds = array<i64: 8, 128>}, {}, {}, {}, {}, {transform_indices = @transform_8, window_bounds = array<i64: 8, 8, 128>}]} {
    %c0_i32 = arith.constant 0 : i32
    %0 = arith.cmpi eq, %arg1, %c0_i32 : i32
    %1 = arith.extui %0 : i1 to i32
    %c0_i32_0 = arith.constant 0 : i32
    %2 = arith.cmpi ne, %1, %c0_i32_0 : i32
    scf.if %2 {
      %c0_i32_176 = arith.constant 0 : i32
      %448 = tpu.memref_slice %arg16[%c0_i32_176] : memref<4x!tpu.dma_semaphore, #tpu.memory_space<semaphore_mem>> -> memref<1x!tpu.dma_semaphore, #tpu.memory_space<semaphore_mem>>
      %449 = tpu.memref_squeeze %448 : memref<1x!tpu.dma_semaphore, #tpu.memory_space<semaphore_mem>> -> memref<!tpu.dma_semaphore, #tpu.memory_space<semaphore_mem>>
      tpu.enqueue_dma source(%arg6 : memref<128x512xf32, #tpu.memory_space<any>>) target(%arg11 : memref<128x512xf32, #tpu.memory_space<vmem>>) target_semaphore(%449 : memref<!tpu.dma_semaphore, #tpu.memory_space<semaphore_mem>>)
      %c1_i32 = arith.constant 1 : i32
      %450 = tpu.memref_slice %arg16[%c1_i32] : memref<4x!tpu.dma_semaphore, #tpu.memory_space<semaphore_mem>> -> memref<1x!tpu.dma_semaphore, #tpu.memory_space<semaphore_mem>>
      %451 = tpu.memref_squeeze %450 : memref<1x!tpu.dma_semaphore, #tpu.memory_space<semaphore_mem>> -> memref<!tpu.dma_semaphore, #tpu.memory_space<semaphore_mem>>
      tpu.enqueue_dma source(%arg7 : memref<256x256xf32, #tpu.memory_space<any>>) target(%arg12 : memref<256x256xf32, #tpu.memory_space<vmem>>) target_semaphore(%451 : memref<!tpu.dma_semaphore, #tpu.memory_space<semaphore_mem>>)
      %c2_i32 = arith.constant 2 : i32
      %452 = tpu.memref_slice %arg16[%c2_i32] : memref<4x!tpu.dma_semaphore, #tpu.memory_space<semaphore_mem>> -> memref<1x!tpu.dma_semaphore, #tpu.memory_space<semaphore_mem>>
      %453 = tpu.memref_squeeze %452 : memref<1x!tpu.dma_semaphore, #tpu.memory_space<semaphore_mem>> -> memref<!tpu.dma_semaphore, #tpu.memory_space<semaphore_mem>>
      tpu.enqueue_dma source(%arg8 : memref<1x256xf32, #tpu.memory_space<any>>) target(%arg13 : memref<1x256xf32, #tpu.memory_space<vmem>>) target_semaphore(%453 : memref<!tpu.dma_semaphore, #tpu.memory_space<semaphore_mem>>)
      %c3_i32 = arith.constant 3 : i32
      %454 = tpu.memref_slice %arg16[%c3_i32] : memref<4x!tpu.dma_semaphore, #tpu.memory_space<semaphore_mem>> -> memref<1x!tpu.dma_semaphore, #tpu.memory_space<semaphore_mem>>
      %455 = tpu.memref_squeeze %454 : memref<1x!tpu.dma_semaphore, #tpu.memory_space<semaphore_mem>> -> memref<!tpu.dma_semaphore, #tpu.memory_space<semaphore_mem>>
      tpu.enqueue_dma source(%arg9 : memref<128x128xf32, #tpu.memory_space<any>>) target(%arg14 : memref<128x128xf32, #tpu.memory_space<vmem>>) target_semaphore(%455 : memref<!tpu.dma_semaphore, #tpu.memory_space<semaphore_mem>>)
      %c0_177 = arith.constant 0 : index
      %c0_178 = arith.constant 0 : index
      %456 = vector.load %arg5[%c0_177, %c0_178] : memref<8x128xf32, #tpu.memory_space<vmem>>, vector<8x128xf32>
      %c0_179 = arith.constant 0 : index
      %c0_180 = arith.constant 0 : index
      %457 = vector.load %arg15[%c0_179, %c0_180] : memref<8x128xf32, #tpu.memory_space<vmem>>, vector<8x128xf32>
      tpu.vector_store %arg15[%c0_179, %c0_180], %456 {strides = array<i32>} : memref<8x128xf32, #tpu.memory_space<vmem>>, vector<8x128xf32>,
      %c0_i32_181 = arith.constant 0 : i32
      %458 = tpu.memref_slice %arg16[%c0_i32_181] : memref<4x!tpu.dma_semaphore, #tpu.memory_space<semaphore_mem>> -> memref<1x!tpu.dma_semaphore, #tpu.memory_space<semaphore_mem>>
      %459 = tpu.memref_squeeze %458 : memref<1x!tpu.dma_semaphore, #tpu.memory_space<semaphore_mem>> -> memref<!tpu.dma_semaphore, #tpu.memory_space<semaphore_mem>>
      tpu.wait_dma2 semaphore(%459 : memref<!tpu.dma_semaphore, #tpu.memory_space<semaphore_mem>>) src(%arg6 : memref<128x512xf32, #tpu.memory_space<any>>) dst(%arg11 : memref<128x512xf32, #tpu.memory_space<vmem>>)
      %c1_i32_182 = arith.constant 1 : i32
      %460 = tpu.memref_slice %arg16[%c1_i32_182] : memref<4x!tpu.dma_semaphore, #tpu.memory_space<semaphore_mem>> -> memref<1x!tpu.dma_semaphore, #tpu.memory_space<semaphore_mem>>
      %461 = tpu.memref_squeeze %460 : memref<1x!tpu.dma_semaphore, #tpu.memory_space<semaphore_mem>> -> memref<!tpu.dma_semaphore, #tpu.memory_space<semaphore_mem>>
      tpu.wait_dma2 semaphore(%461 : memref<!tpu.dma_semaphore, #tpu.memory_space<semaphore_mem>>) src(%arg7 : memref<256x256xf32, #tpu.memory_space<any>>) dst(%arg12 : memref<256x256xf32, #tpu.memory_space<vmem>>)
      %c2_i32_183 = arith.constant 2 : i32
      %462 = tpu.memref_slice %arg16[%c2_i32_183] : memref<4x!tpu.dma_semaphore, #tpu.memory_space<semaphore_mem>> -> memref<1x!tpu.dma_semaphore, #tpu.memory_space<semaphore_mem>>
      %463 = tpu.memref_squeeze %462 : memref<1x!tpu.dma_semaphore, #tpu.memory_space<semaphore_mem>> -> memref<!tpu.dma_semaphore, #tpu.memory_space<semaphore_mem>>
      tpu.wait_dma2 semaphore(%463 : memref<!tpu.dma_semaphore, #tpu.memory_space<semaphore_mem>>) src(%arg8 : memref<1x256xf32, #tpu.memory_space<any>>) dst(%arg13 : memref<1x256xf32, #tpu.memory_space<vmem>>)
      %c3_i32_184 = arith.constant 3 : i32
      %464 = tpu.memref_slice %arg16[%c3_i32_184] : memref<4x!tpu.dma_semaphore, #tpu.memory_space<semaphore_mem>> -> memref<1x!tpu.dma_semaphore, #tpu.memory_space<semaphore_mem>>
      %465 = tpu.memref_squeeze %464 : memref<1x!tpu.dma_semaphore, #tpu.memory_space<semaphore_mem>> -> memref<!tpu.dma_semaphore, #tpu.memory_space<semaphore_mem>>
      tpu.wait_dma2 semaphore(%465 : memref<!tpu.dma_semaphore, #tpu.memory_space<semaphore_mem>>) src(%arg9 : memref<128x128xf32, #tpu.memory_space<any>>) dst(%arg14 : memref<128x128xf32, #tpu.memory_space<vmem>>)
    } else {
    }
    %c0 = arith.constant 0 : index
    %c0_1 = arith.constant 0 : index
    %3 = vector.load %arg11[%c0, %c0_1] : memref<128x512xf32, #tpu.memory_space<vmem>>, vector<128x256xf32>
    %c0_2 = arith.constant 0 : index
    %c256 = arith.constant 256 : index
    %4 = vector.load %arg11[%c0_2, %c256] : memref<128x512xf32, #tpu.memory_space<vmem>>, vector<128x256xf32>
    %c0_3 = arith.constant 0 : index
    %c0_4 = arith.constant 0 : index
    %5 = vector.load %arg12[%c0_3, %c0_4] : memref<256x256xf32, #tpu.memory_space<vmem>>, vector<256x128xf32>
    %c0_5 = arith.constant 0 : index
    %c128 = arith.constant 128 : index
    %6 = vector.load %arg12[%c0_5, %c128] : memref<256x256xf32, #tpu.memory_space<vmem>>, vector<256x128xf32>
    %c0_6 = arith.constant 0 : index
    %c0_7 = arith.constant 0 : index
    %7 = vector.load %arg14[%c0_6, %c0_7] : memref<128x128xf32, #tpu.memory_space<vmem>>, vector<128x128xf32>
    %c0_8 = arith.constant 0 : index
    %c0_9 = arith.constant 0 : index
    %8 = vector.load %arg13[%c0_8, %c0_9] : memref<1x256xf32, #tpu.memory_space<vmem>>, vector<1x128xf32>
    %9 = vector.shape_cast %8 : vector<1x128xf32> to vector<1x128xf32>
    %10 = vector.broadcast %9 : vector<1x128xf32> to vector<8x128xf32>
    %c0_10 = arith.constant 0 : index
    %c128_11 = arith.constant 128 : index
    %11 = vector.load %arg13[%c0_10, %c128_11] : memref<1x256xf32, #tpu.memory_space<vmem>>, vector<1x128xf32>
    %12 = vector.shape_cast %11 : vector<1x128xf32> to vector<1x128xf32>
    %13 = vector.broadcast %12 : vector<1x128xf32> to vector<8x128xf32>
    %c0_12 = arith.constant 0 : index
    %c0_13 = arith.constant 0 : index
    %14 = vector.load %arg15[%c0_12, %c0_13] : memref<8x128xf32, #tpu.memory_space<vmem>>, vector<8x128xf32>
    %c0_14 = arith.constant 0 : index
    %c0_15 = arith.constant 0 : index
    %c0_16 = arith.constant 0 : index
    %15 = vector.load %arg2[%c0_14, %c0_15, %c0_16] : memref<8x8x256xf32, #tpu.memory_space<vmem>>, vector<1x8x256xf32>
    %16 = vector.shape_cast %15 : vector<1x8x256xf32> to vector<8x256xf32>
    %cst = arith.constant dense<0.000000e+00> : vector<8x256xf32>
    %17 = tpu.matmul %14, %3, %cst {dimension_numbers = #tpu.dot_dimension_numbers<[1], [0], [0], [1], [0, 0, 1, 1], [], []>} : vector<8x128xf32>, vector<128x256xf32>, vector<8x256xf32> -> vector<8x256xf32>
    %18 = arith.addf %16, %17 : vector<8x256xf32>
    %19 = arith.negf %18 : vector<8x256xf32>
    %20 = math.exp %19 : vector<8x256xf32>
    %cst_17 = arith.constant 1.000000e+00 : f32
    %21 = vector.broadcast %cst_17 : f32 to vector<8x256xf32>
    %22 = arith.addf %21, %20 : vector<8x256xf32>
    %23 = arith.divf %21, %22 : vector<8x256xf32>
    %cst_18 = arith.constant dense<0.000000e+00> : vector<8x128xf32>
    %24 = tpu.matmul %23, %5, %cst_18 {dimension_numbers = #tpu.dot_dimension_numbers<[1], [0], [0], [1], [0, 0, 1, 1], [], []>} : vector<8x256xf32>, vector<256x128xf32>, vector<8x128xf32> -> vector<8x128xf32>
    %25 = arith.addf %24, %10 : vector<8x128xf32>
    %26 = arith.negf %25 : vector<8x128xf32>
    %27 = math.exp %26 : vector<8x128xf32>
    %cst_19 = arith.constant 1.000000e+00 : f32
    %28 = vector.broadcast %cst_19 : f32 to vector<8x128xf32>
    %29 = arith.addf %28, %27 : vector<8x128xf32>
    %30 = arith.divf %28, %29 : vector<8x128xf32>
    %31 = vector.extract_strided_slice %23 {offsets = [0, 0], sizes = [8, 128], strides = [1, 1]} : vector<8x256xf32> to vector<8x128xf32>
    %32 = vector.extract_strided_slice %23 {offsets = [0, 128], sizes = [8, 128], strides = [1, 1]} : vector<8x256xf32> to vector<8x128xf32>
    %33 = arith.subf %31, %32 : vector<8x128xf32>
    %34 = arith.mulf %30, %33 : vector<8x128xf32>
    %35 = arith.addf %32, %34 : vector<8x128xf32>
    %c0_20 = arith.constant 0 : index
    %c0_21 = arith.constant 0 : index
    %c0_22 = arith.constant 0 : index
    %36 = vector.load %arg3[%c0_20, %c0_21, %c0_22] : memref<8x8x256xf32, #tpu.memory_space<vmem>>, vector<1x8x256xf32>
    %37 = vector.shape_cast %36 : vector<1x8x256xf32> to vector<8x256xf32>
    %cst_23 = arith.constant dense<0.000000e+00> : vector<8x256xf32>
    %38 = tpu.matmul %14, %4, %cst_23 {dimension_numbers = #tpu.dot_dimension_numbers<[1], [0], [0], [1], [0, 0, 1, 1], [], []>} : vector<8x128xf32>, vector<128x256xf32>, vector<8x256xf32> -> vector<8x256xf32>
    %39 = arith.addf %37, %38 : vector<8x256xf32>
    %40 = arith.negf %39 : vector<8x256xf32>
    %41 = math.exp %40 : vector<8x256xf32>
    %cst_24 = arith.constant 1.000000e+00 : f32
    %42 = vector.broadcast %cst_24 : f32 to vector<8x256xf32>
    %43 = arith.addf %42, %41 : vector<8x256xf32>
    %44 = arith.divf %42, %43 : vector<8x256xf32>
    %cst_25 = arith.constant dense<0.000000e+00> : vector<8x128xf32>
    %45 = tpu.matmul %44, %6, %cst_25 {dimension_numbers = #tpu.dot_dimension_numbers<[1], [0], [0], [1], [0, 0, 1, 1], [], []>} : vector<8x256xf32>, vector<256x128xf32>, vector<8x128xf32> -> vector<8x128xf32>
    %46 = arith.addf %45, %13 : vector<8x128xf32>
    %47 = arith.negf %46 : vector<8x128xf32>
    %48 = math.exp %47 : vector<8x128xf32>
    %cst_26 = arith.constant 1.000000e+00 : f32
    %49 = vector.broadcast %cst_26 : f32 to vector<8x128xf32>
    %50 = arith.addf %49, %48 : vector<8x128xf32>
    %51 = arith.divf %49, %50 : vector<8x128xf32>
    %52 = vector.extract_strided_slice %44 {offsets = [0, 0], sizes = [8, 128], strides = [1, 1]} : vector<8x256xf32> to vector<8x128xf32>
    %53 = vector.extract_strided_slice %44 {offsets = [0, 128], sizes = [8, 128], strides = [1, 1]} : vector<8x256xf32> to vector<8x128xf32>
    %54 = arith.subf %52, %53 : vector<8x128xf32>
    %55 = arith.mulf %51, %54 : vector<8x128xf32>
    %56 = arith.addf %53, %55 : vector<8x128xf32>
    %57 = arith.mulf %56, %14 : vector<8x128xf32>
    %c0_27 = arith.constant 0 : index
    %c0_28 = arith.constant 0 : index
    %c0_29 = arith.constant 0 : index
    %58 = vector.load %arg4[%c0_27, %c0_28, %c0_29] : memref<8x8x128xf32, #tpu.memory_space<vmem>>, vector<1x8x128xf32>
    %59 = vector.shape_cast %58 : vector<1x8x128xf32> to vector<8x128xf32>
    %cst_30 = arith.constant dense<0.000000e+00> : vector<8x128xf32>
    %60 = tpu.matmul %57, %7, %cst_30 {dimension_numbers = #tpu.dot_dimension_numbers<[1], [0], [0], [1], [0, 0, 1, 1], [], []>} : vector<8x128xf32>, vector<128x128xf32>, vector<8x128xf32> -> vector<8x128xf32>
    %61 = arith.addf %59, %60 : vector<8x128xf32>
    %62 = math.tanh %61 : vector<8x128xf32>
    %63 = arith.subf %14, %62 : vector<8x128xf32>
    %64 = arith.mulf %35, %63 : vector<8x128xf32>
    %65 = arith.addf %62, %64 : vector<8x128xf32>
    %c0_31 = arith.constant 0 : index
    %c0_32 = arith.constant 0 : index
    %c0_33 = arith.constant 0 : index
    %66 = vector.load %arg10[%c0_31, %c0_32, %c0_33] : memref<8x8x128xf32, #tpu.memory_space<vmem>>, vector<1x8x128xf32>
    %67 = vector.shape_cast %66 : vector<1x8x128xf32> to vector<8x128xf32>
    %68 = vector.shape_cast %65 : vector<8x128xf32> to vector<1x8x128xf32>
    tpu.vector_store %arg10[%c0_31, %c0_32, %c0_33], %68 {strides = array<i32>} : memref<8x8x128xf32, #tpu.memory_space<vmem>>, vector<1x8x128xf32>,
    %c1 = arith.constant 1 : index
    %c0_34 = arith.constant 0 : index
    %c0_35 = arith.constant 0 : index
    %69 = vector.load %arg2[%c1, %c0_34, %c0_35] : memref<8x8x256xf32, #tpu.memory_space<vmem>>, vector<1x8x256xf32>
    %70 = vector.shape_cast %69 : vector<1x8x256xf32> to vector<8x256xf32>
    %cst_36 = arith.constant dense<0.000000e+00> : vector<8x256xf32>
    %71 = tpu.matmul %65, %3, %cst_36 {dimension_numbers = #tpu.dot_dimension_numbers<[1], [0], [0], [1], [0, 0, 1, 1], [], []>} : vector<8x128xf32>, vector<128x256xf32>, vector<8x256xf32> -> vector<8x256xf32>
    %72 = arith.addf %70, %71 : vector<8x256xf32>
    %73 = arith.negf %72 : vector<8x256xf32>
    %74 = math.exp %73 : vector<8x256xf32>
    %cst_37 = arith.constant 1.000000e+00 : f32
    %75 = vector.broadcast %cst_37 : f32 to vector<8x256xf32>
    %76 = arith.addf %75, %74 : vector<8x256xf32>
    %77 = arith.divf %75, %76 : vector<8x256xf32>
    %cst_38 = arith.constant dense<0.000000e+00> : vector<8x128xf32>
    %78 = tpu.matmul %77, %5, %cst_38 {dimension_numbers = #tpu.dot_dimension_numbers<[1], [0], [0], [1], [0, 0, 1, 1], [], []>} : vector<8x256xf32>, vector<256x128xf32>, vector<8x128xf32> -> vector<8x128xf32>
    %79 = arith.addf %78, %10 : vector<8x128xf32>
    %80 = arith.negf %79 : vector<8x128xf32>
    %81 = math.exp %80 : vector<8x128xf32>
    %cst_39 = arith.constant 1.000000e+00 : f32
    %82 = vector.broadcast %cst_39 : f32 to vector<8x128xf32>
    %83 = arith.addf %82, %81 : vector<8x128xf32>
    %84 = arith.divf %82, %83 : vector<8x128xf32>
    %85 = vector.extract_strided_slice %77 {offsets = [0, 0], sizes = [8, 128], strides = [1, 1]} : vector<8x256xf32> to vector<8x128xf32>
    %86 = vector.extract_strided_slice %77 {offsets = [0, 128], sizes = [8, 128], strides = [1, 1]} : vector<8x256xf32> to vector<8x128xf32>
    %87 = arith.subf %85, %86 : vector<8x128xf32>
    %88 = arith.mulf %84, %87 : vector<8x128xf32>
    %89 = arith.addf %86, %88 : vector<8x128xf32>
    %c1_40 = arith.constant 1 : index
    %c0_41 = arith.constant 0 : index
    %c0_42 = arith.constant 0 : index
    %90 = vector.load %arg3[%c1_40, %c0_41, %c0_42] : memref<8x8x256xf32, #tpu.memory_space<vmem>>, vector<1x8x256xf32>
    %91 = vector.shape_cast %90 : vector<1x8x256xf32> to vector<8x256xf32>
    %cst_43 = arith.constant dense<0.000000e+00> : vector<8x256xf32>
    %92 = tpu.matmul %65, %4, %cst_43 {dimension_numbers = #tpu.dot_dimension_numbers<[1], [0], [0], [1], [0, 0, 1, 1], [], []>} : vector<8x128xf32>, vector<128x256xf32>, vector<8x256xf32> -> vector<8x256xf32>
    %93 = arith.addf %91, %92 : vector<8x256xf32>
    %94 = arith.negf %93 : vector<8x256xf32>
    %95 = math.exp %94 : vector<8x256xf32>
    %cst_44 = arith.constant 1.000000e+00 : f32
    %96 = vector.broadcast %cst_44 : f32 to vector<8x256xf32>
    %97 = arith.addf %96, %95 : vector<8x256xf32>
    %98 = arith.divf %96, %97 : vector<8x256xf32>
    %cst_45 = arith.constant dense<0.000000e+00> : vector<8x128xf32>
    %99 = tpu.matmul %98, %6, %cst_45 {dimension_numbers = #tpu.dot_dimension_numbers<[1], [0], [0], [1], [0, 0, 1, 1], [], []>} : vector<8x256xf32>, vector<256x128xf32>, vector<8x128xf32> -> vector<8x128xf32>
    %100 = arith.addf %99, %13 : vector<8x128xf32>
    %101 = arith.negf %100 : vector<8x128xf32>
    %102 = math.exp %101 : vector<8x128xf32>
    %cst_46 = arith.constant 1.000000e+00 : f32
    %103 = vector.broadcast %cst_46 : f32 to vector<8x128xf32>
    %104 = arith.addf %103, %102 : vector<8x128xf32>
    %105 = arith.divf %103, %104 : vector<8x128xf32>
    %106 = vector.extract_strided_slice %98 {offsets = [0, 0], sizes = [8, 128], strides = [1, 1]} : vector<8x256xf32> to vector<8x128xf32>
    %107 = vector.extract_strided_slice %98 {offsets = [0, 128], sizes = [8, 128], strides = [1, 1]} : vector<8x256xf32> to vector<8x128xf32>
    %108 = arith.subf %106, %107 : vector<8x128xf32>
    %109 = arith.mulf %105, %108 : vector<8x128xf32>
    %110 = arith.addf %107, %109 : vector<8x128xf32>
    %111 = arith.mulf %110, %65 : vector<8x128xf32>
    %c1_47 = arith.constant 1 : index
    %c0_48 = arith.constant 0 : index
    %c0_49 = arith.constant 0 : index
    %112 = vector.load %arg4[%c1_47, %c0_48, %c0_49] : memref<8x8x128xf32, #tpu.memory_space<vmem>>, vector<1x8x128xf32>
    %113 = vector.shape_cast %112 : vector<1x8x128xf32> to vector<8x128xf32>
    %cst_50 = arith.constant dense<0.000000e+00> : vector<8x128xf32>
    %114 = tpu.matmul %111, %7, %cst_50 {dimension_numbers = #tpu.dot_dimension_numbers<[1], [0], [0], [1], [0, 0, 1, 1], [], []>} : vector<8x128xf32>, vector<128x128xf32>, vector<8x128xf32> -> vector<8x128xf32>
    %115 = arith.addf %113, %114 : vector<8x128xf32>
    %116 = math.tanh %115 : vector<8x128xf32>
    %117 = arith.subf %65, %116 : vector<8x128xf32>
    %118 = arith.mulf %89, %117 : vector<8x128xf32>
    %119 = arith.addf %116, %118 : vector<8x128xf32>
    %c1_51 = arith.constant 1 : index
    %c0_52 = arith.constant 0 : index
    %c0_53 = arith.constant 0 : index
    %120 = vector.load %arg10[%c1_51, %c0_52, %c0_53] : memref<8x8x128xf32, #tpu.memory_space<vmem>>, vector<1x8x128xf32>
    %121 = vector.shape_cast %120 : vector<1x8x128xf32> to vector<8x128xf32>
    %122 = vector.shape_cast %119 : vector<8x128xf32> to vector<1x8x128xf32>
    tpu.vector_store %arg10[%c1_51, %c0_52, %c0_53], %122 {strides = array<i32>} : memref<8x8x128xf32, #tpu.memory_space<vmem>>, vector<1x8x128xf32>,
    %c2 = arith.constant 2 : index
    %c0_54 = arith.constant 0 : index
    %c0_55 = arith.constant 0 : index
    %123 = vector.load %arg2[%c2, %c0_54, %c0_55] : memref<8x8x256xf32, #tpu.memory_space<vmem>>, vector<1x8x256xf32>
    %124 = vector.shape_cast %123 : vector<1x8x256xf32> to vector<8x256xf32>
    %cst_56 = arith.constant dense<0.000000e+00> : vector<8x256xf32>
    %125 = tpu.matmul %119, %3, %cst_56 {dimension_numbers = #tpu.dot_dimension_numbers<[1], [0], [0], [1], [0, 0, 1, 1], [], []>} : vector<8x128xf32>, vector<128x256xf32>, vector<8x256xf32> -> vector<8x256xf32>
    %126 = arith.addf %124, %125 : vector<8x256xf32>
    %127 = arith.negf %126 : vector<8x256xf32>
    %128 = math.exp %127 : vector<8x256xf32>
    %cst_57 = arith.constant 1.000000e+00 : f32
    %129 = vector.broadcast %cst_57 : f32 to vector<8x256xf32>
    %130 = arith.addf %129, %128 : vector<8x256xf32>
    %131 = arith.divf %129, %130 : vector<8x256xf32>
    %cst_58 = arith.constant dense<0.000000e+00> : vector<8x128xf32>
    %132 = tpu.matmul %131, %5, %cst_58 {dimension_numbers = #tpu.dot_dimension_numbers<[1], [0], [0], [1], [0, 0, 1, 1], [], []>} : vector<8x256xf32>, vector<256x128xf32>, vector<8x128xf32> -> vector<8x128xf32>
    %133 = arith.addf %132, %10 : vector<8x128xf32>
    %134 = arith.negf %133 : vector<8x128xf32>
    %135 = math.exp %134 : vector<8x128xf32>
    %cst_59 = arith.constant 1.000000e+00 : f32
    %136 = vector.broadcast %cst_59 : f32 to vector<8x128xf32>
    %137 = arith.addf %136, %135 : vector<8x128xf32>
    %138 = arith.divf %136, %137 : vector<8x128xf32>
    %139 = vector.extract_strided_slice %131 {offsets = [0, 0], sizes = [8, 128], strides = [1, 1]} : vector<8x256xf32> to vector<8x128xf32>
    %140 = vector.extract_strided_slice %131 {offsets = [0, 128], sizes = [8, 128], strides = [1, 1]} : vector<8x256xf32> to vector<8x128xf32>
    %141 = arith.subf %139, %140 : vector<8x128xf32>
    %142 = arith.mulf %138, %141 : vector<8x128xf32>
    %143 = arith.addf %140, %142 : vector<8x128xf32>
    %c2_60 = arith.constant 2 : index
    %c0_61 = arith.constant 0 : index
    %c0_62 = arith.constant 0 : index
    %144 = vector.load %arg3[%c2_60, %c0_61, %c0_62] : memref<8x8x256xf32, #tpu.memory_space<vmem>>, vector<1x8x256xf32>
    %145 = vector.shape_cast %144 : vector<1x8x256xf32> to vector<8x256xf32>
    %cst_63 = arith.constant dense<0.000000e+00> : vector<8x256xf32>
    %146 = tpu.matmul %119, %4, %cst_63 {dimension_numbers = #tpu.dot_dimension_numbers<[1], [0], [0], [1], [0, 0, 1, 1], [], []>} : vector<8x128xf32>, vector<128x256xf32>, vector<8x256xf32> -> vector<8x256xf32>
    %147 = arith.addf %145, %146 : vector<8x256xf32>
    %148 = arith.negf %147 : vector<8x256xf32>
    %149 = math.exp %148 : vector<8x256xf32>
    %cst_64 = arith.constant 1.000000e+00 : f32
    %150 = vector.broadcast %cst_64 : f32 to vector<8x256xf32>
    %151 = arith.addf %150, %149 : vector<8x256xf32>
    %152 = arith.divf %150, %151 : vector<8x256xf32>
    %cst_65 = arith.constant dense<0.000000e+00> : vector<8x128xf32>
    %153 = tpu.matmul %152, %6, %cst_65 {dimension_numbers = #tpu.dot_dimension_numbers<[1], [0], [0], [1], [0, 0, 1, 1], [], []>} : vector<8x256xf32>, vector<256x128xf32>, vector<8x128xf32> -> vector<8x128xf32>
    %154 = arith.addf %153, %13 : vector<8x128xf32>
    %155 = arith.negf %154 : vector<8x128xf32>
    %156 = math.exp %155 : vector<8x128xf32>
    %cst_66 = arith.constant 1.000000e+00 : f32
    %157 = vector.broadcast %cst_66 : f32 to vector<8x128xf32>
    %158 = arith.addf %157, %156 : vector<8x128xf32>
    %159 = arith.divf %157, %158 : vector<8x128xf32>
    %160 = vector.extract_strided_slice %152 {offsets = [0, 0], sizes = [8, 128], strides = [1, 1]} : vector<8x256xf32> to vector<8x128xf32>
    %161 = vector.extract_strided_slice %152 {offsets = [0, 128], sizes = [8, 128], strides = [1, 1]} : vector<8x256xf32> to vector<8x128xf32>
    %162 = arith.subf %160, %161 : vector<8x128xf32>
    %163 = arith.mulf %159, %162 : vector<8x128xf32>
    %164 = arith.addf %161, %163 : vector<8x128xf32>
    %165 = arith.mulf %164, %119 : vector<8x128xf32>
    %c2_67 = arith.constant 2 : index
    %c0_68 = arith.constant 0 : index
    %c0_69 = arith.constant 0 : index
    %166 = vector.load %arg4[%c2_67, %c0_68, %c0_69] : memref<8x8x128xf32, #tpu.memory_space<vmem>>, vector<1x8x128xf32>
    %167 = vector.shape_cast %166 : vector<1x8x128xf32> to vector<8x128xf32>
    %cst_70 = arith.constant dense<0.000000e+00> : vector<8x128xf32>
    %168 = tpu.matmul %165, %7, %cst_70 {dimension_numbers = #tpu.dot_dimension_numbers<[1], [0], [0], [1], [0, 0, 1, 1], [], []>} : vector<8x128xf32>, vector<128x128xf32>, vector<8x128xf32> -> vector<8x128xf32>
    %169 = arith.addf %167, %168 : vector<8x128xf32>
    %170 = math.tanh %169 : vector<8x128xf32>
    %171 = arith.subf %119, %170 : vector<8x128xf32>
    %172 = arith.mulf %143, %171 : vector<8x128xf32>
    %173 = arith.addf %170, %172 : vector<8x128xf32>
    %c2_71 = arith.constant 2 : index
    %c0_72 = arith.constant 0 : index
    %c0_73 = arith.constant 0 : index
    %174 = vector.load %arg10[%c2_71, %c0_72, %c0_73] : memref<8x8x128xf32, #tpu.memory_space<vmem>>, vector<1x8x128xf32>
    %175 = vector.shape_cast %174 : vector<1x8x128xf32> to vector<8x128xf32>
    %176 = vector.shape_cast %173 : vector<8x128xf32> to vector<1x8x128xf32>
    tpu.vector_store %arg10[%c2_71, %c0_72, %c0_73], %176 {strides = array<i32>} : memref<8x8x128xf32, #tpu.memory_space<vmem>>, vector<1x8x128xf32>,
    %c3 = arith.constant 3 : index
    %c0_74 = arith.constant 0 : index
    %c0_75 = arith.constant 0 : index
    %177 = vector.load %arg2[%c3, %c0_74, %c0_75] : memref<8x8x256xf32, #tpu.memory_space<vmem>>, vector<1x8x256xf32>
    %178 = vector.shape_cast %177 : vector<1x8x256xf32> to vector<8x256xf32>
    %cst_76 = arith.constant dense<0.000000e+00> : vector<8x256xf32>
    %179 = tpu.matmul %173, %3, %cst_76 {dimension_numbers = #tpu.dot_dimension_numbers<[1], [0], [0], [1], [0, 0, 1, 1], [], []>} : vector<8x128xf32>, vector<128x256xf32>, vector<8x256xf32> -> vector<8x256xf32>
    %180 = arith.addf %178, %179 : vector<8x256xf32>
    %181 = arith.negf %180 : vector<8x256xf32>
    %182 = math.exp %181 : vector<8x256xf32>
    %cst_77 = arith.constant 1.000000e+00 : f32
    %183 = vector.broadcast %cst_77 : f32 to vector<8x256xf32>
    %184 = arith.addf %183, %182 : vector<8x256xf32>
    %185 = arith.divf %183, %184 : vector<8x256xf32>
    %cst_78 = arith.constant dense<0.000000e+00> : vector<8x128xf32>
    %186 = tpu.matmul %185, %5, %cst_78 {dimension_numbers = #tpu.dot_dimension_numbers<[1], [0], [0], [1], [0, 0, 1, 1], [], []>} : vector<8x256xf32>, vector<256x128xf32>, vector<8x128xf32> -> vector<8x128xf32>
    %187 = arith.addf %186, %10 : vector<8x128xf32>
    %188 = arith.negf %187 : vector<8x128xf32>
    %189 = math.exp %188 : vector<8x128xf32>
    %cst_79 = arith.constant 1.000000e+00 : f32
    %190 = vector.broadcast %cst_79 : f32 to vector<8x128xf32>
    %191 = arith.addf %190, %189 : vector<8x128xf32>
    %192 = arith.divf %190, %191 : vector<8x128xf32>
    %193 = vector.extract_strided_slice %185 {offsets = [0, 0], sizes = [8, 128], strides = [1, 1]} : vector<8x256xf32> to vector<8x128xf32>
    %194 = vector.extract_strided_slice %185 {offsets = [0, 128], sizes = [8, 128], strides = [1, 1]} : vector<8x256xf32> to vector<8x128xf32>
    %195 = arith.subf %193, %194 : vector<8x128xf32>
    %196 = arith.mulf %192, %195 : vector<8x128xf32>
    %197 = arith.addf %194, %196 : vector<8x128xf32>
    %c3_80 = arith.constant 3 : index
    %c0_81 = arith.constant 0 : index
    %c0_82 = arith.constant 0 : index
    %198 = vector.load %arg3[%c3_80, %c0_81, %c0_82] : memref<8x8x256xf32, #tpu.memory_space<vmem>>, vector<1x8x256xf32>
    %199 = vector.shape_cast %198 : vector<1x8x256xf32> to vector<8x256xf32>
    %cst_83 = arith.constant dense<0.000000e+00> : vector<8x256xf32>
    %200 = tpu.matmul %173, %4, %cst_83 {dimension_numbers = #tpu.dot_dimension_numbers<[1], [0], [0], [1], [0, 0, 1, 1], [], []>} : vector<8x128xf32>, vector<128x256xf32>, vector<8x256xf32> -> vector<8x256xf32>
    %201 = arith.addf %199, %200 : vector<8x256xf32>
    %202 = arith.negf %201 : vector<8x256xf32>
    %203 = math.exp %202 : vector<8x256xf32>
    %cst_84 = arith.constant 1.000000e+00 : f32
    %204 = vector.broadcast %cst_84 : f32 to vector<8x256xf32>
    %205 = arith.addf %204, %203 : vector<8x256xf32>
    %206 = arith.divf %204, %205 : vector<8x256xf32>
    %cst_85 = arith.constant dense<0.000000e+00> : vector<8x128xf32>
    %207 = tpu.matmul %206, %6, %cst_85 {dimension_numbers = #tpu.dot_dimension_numbers<[1], [0], [0], [1], [0, 0, 1, 1], [], []>} : vector<8x256xf32>, vector<256x128xf32>, vector<8x128xf32> -> vector<8x128xf32>
    %208 = arith.addf %207, %13 : vector<8x128xf32>
    %209 = arith.negf %208 : vector<8x128xf32>
    %210 = math.exp %209 : vector<8x128xf32>
    %cst_86 = arith.constant 1.000000e+00 : f32
    %211 = vector.broadcast %cst_86 : f32 to vector<8x128xf32>
    %212 = arith.addf %211, %210 : vector<8x128xf32>
    %213 = arith.divf %211, %212 : vector<8x128xf32>
    %214 = vector.extract_strided_slice %206 {offsets = [0, 0], sizes = [8, 128], strides = [1, 1]} : vector<8x256xf32> to vector<8x128xf32>
    %215 = vector.extract_strided_slice %206 {offsets = [0, 128], sizes = [8, 128], strides = [1, 1]} : vector<8x256xf32> to vector<8x128xf32>
    %216 = arith.subf %214, %215 : vector<8x128xf32>
    %217 = arith.mulf %213, %216 : vector<8x128xf32>
    %218 = arith.addf %215, %217 : vector<8x128xf32>
    %219 = arith.mulf %218, %173 : vector<8x128xf32>
    %c3_87 = arith.constant 3 : index
    %c0_88 = arith.constant 0 : index
    %c0_89 = arith.constant 0 : index
    %220 = vector.load %arg4[%c3_87, %c0_88, %c0_89] : memref<8x8x128xf32, #tpu.memory_space<vmem>>, vector<1x8x128xf32>
    %221 = vector.shape_cast %220 : vector<1x8x128xf32> to vector<8x128xf32>
    %cst_90 = arith.constant dense<0.000000e+00> : vector<8x128xf32>
    %222 = tpu.matmul %219, %7, %cst_90 {dimension_numbers = #tpu.dot_dimension_numbers<[1], [0], [0], [1], [0, 0, 1, 1], [], []>} : vector<8x128xf32>, vector<128x128xf32>, vector<8x128xf32> -> vector<8x128xf32>
    %223 = arith.addf %221, %222 : vector<8x128xf32>
    %224 = math.tanh %223 : vector<8x128xf32>
    %225 = arith.subf %173, %224 : vector<8x128xf32>
    %226 = arith.mulf %197, %225 : vector<8x128xf32>
    %227 = arith.addf %224, %226 : vector<8x128xf32>
    %c3_91 = arith.constant 3 : index
    %c0_92 = arith.constant 0 : index
    %c0_93 = arith.constant 0 : index
    %228 = vector.load %arg10[%c3_91, %c0_92, %c0_93] : memref<8x8x128xf32, #tpu.memory_space<vmem>>, vector<1x8x128xf32>
    %229 = vector.shape_cast %228 : vector<1x8x128xf32> to vector<8x128xf32>
    %230 = vector.shape_cast %227 : vector<8x128xf32> to vector<1x8x128xf32>
    tpu.vector_store %arg10[%c3_91, %c0_92, %c0_93], %230 {strides = array<i32>} : memref<8x8x128xf32, #tpu.memory_space<vmem>>, vector<1x8x128xf32>,
    %c4 = arith.constant 4 : index
    %c0_94 = arith.constant 0 : index
    %c0_95 = arith.constant 0 : index
    %231 = vector.load %arg2[%c4, %c0_94, %c0_95] : memref<8x8x256xf32, #tpu.memory_space<vmem>>, vector<1x8x256xf32>
    %232 = vector.shape_cast %231 : vector<1x8x256xf32> to vector<8x256xf32>
    %cst_96 = arith.constant dense<0.000000e+00> : vector<8x256xf32>
    %233 = tpu.matmul %227, %3, %cst_96 {dimension_numbers = #tpu.dot_dimension_numbers<[1], [0], [0], [1], [0, 0, 1, 1], [], []>} : vector<8x128xf32>, vector<128x256xf32>, vector<8x256xf32> -> vector<8x256xf32>
    %234 = arith.addf %232, %233 : vector<8x256xf32>
    %235 = arith.negf %234 : vector<8x256xf32>
    %236 = math.exp %235 : vector<8x256xf32>
    %cst_97 = arith.constant 1.000000e+00 : f32
    %237 = vector.broadcast %cst_97 : f32 to vector<8x256xf32>
    %238 = arith.addf %237, %236 : vector<8x256xf32>
    %239 = arith.divf %237, %238 : vector<8x256xf32>
    %cst_98 = arith.constant dense<0.000000e+00> : vector<8x128xf32>
    %240 = tpu.matmul %239, %5, %cst_98 {dimension_numbers = #tpu.dot_dimension_numbers<[1], [0], [0], [1], [0, 0, 1, 1], [], []>} : vector<8x256xf32>, vector<256x128xf32>, vector<8x128xf32> -> vector<8x128xf32>
    %241 = arith.addf %240, %10 : vector<8x128xf32>
    %242 = arith.negf %241 : vector<8x128xf32>
    %243 = math.exp %242 : vector<8x128xf32>
    %cst_99 = arith.constant 1.000000e+00 : f32
    %244 = vector.broadcast %cst_99 : f32 to vector<8x128xf32>
    %245 = arith.addf %244, %243 : vector<8x128xf32>
    %246 = arith.divf %244, %245 : vector<8x128xf32>
    %247 = vector.extract_strided_slice %239 {offsets = [0, 0], sizes = [8, 128], strides = [1, 1]} : vector<8x256xf32> to vector<8x128xf32>
    %248 = vector.extract_strided_slice %239 {offsets = [0, 128], sizes = [8, 128], strides = [1, 1]} : vector<8x256xf32> to vector<8x128xf32>
    %249 = arith.subf %247, %248 : vector<8x128xf32>
    %250 = arith.mulf %246, %249 : vector<8x128xf32>
    %251 = arith.addf %248, %250 : vector<8x128xf32>
    %c4_100 = arith.constant 4 : index
    %c0_101 = arith.constant 0 : index
    %c0_102 = arith.constant 0 : index
    %252 = vector.load %arg3[%c4_100, %c0_101, %c0_102] : memref<8x8x256xf32, #tpu.memory_space<vmem>>, vector<1x8x256xf32>
    %253 = vector.shape_cast %252 : vector<1x8x256xf32> to vector<8x256xf32>
    %cst_103 = arith.constant dense<0.000000e+00> : vector<8x256xf32>
    %254 = tpu.matmul %227, %4, %cst_103 {dimension_numbers = #tpu.dot_dimension_numbers<[1], [0], [0], [1], [0, 0, 1, 1], [], []>} : vector<8x128xf32>, vector<128x256xf32>, vector<8x256xf32> -> vector<8x256xf32>
    %255 = arith.addf %253, %254 : vector<8x256xf32>
    %256 = arith.negf %255 : vector<8x256xf32>
    %257 = math.exp %256 : vector<8x256xf32>
    %cst_104 = arith.constant 1.000000e+00 : f32
    %258 = vector.broadcast %cst_104 : f32 to vector<8x256xf32>
    %259 = arith.addf %258, %257 : vector<8x256xf32>
    %260 = arith.divf %258, %259 : vector<8x256xf32>
    %cst_105 = arith.constant dense<0.000000e+00> : vector<8x128xf32>
    %261 = tpu.matmul %260, %6, %cst_105 {dimension_numbers = #tpu.dot_dimension_numbers<[1], [0], [0], [1], [0, 0, 1, 1], [], []>} : vector<8x256xf32>, vector<256x128xf32>, vector<8x128xf32> -> vector<8x128xf32>
    %262 = arith.addf %261, %13 : vector<8x128xf32>
    %263 = arith.negf %262 : vector<8x128xf32>
    %264 = math.exp %263 : vector<8x128xf32>
    %cst_106 = arith.constant 1.000000e+00 : f32
    %265 = vector.broadcast %cst_106 : f32 to vector<8x128xf32>
    %266 = arith.addf %265, %264 : vector<8x128xf32>
    %267 = arith.divf %265, %266 : vector<8x128xf32>
    %268 = vector.extract_strided_slice %260 {offsets = [0, 0], sizes = [8, 128], strides = [1, 1]} : vector<8x256xf32> to vector<8x128xf32>
    %269 = vector.extract_strided_slice %260 {offsets = [0, 128], sizes = [8, 128], strides = [1, 1]} : vector<8x256xf32> to vector<8x128xf32>
    %270 = arith.subf %268, %269 : vector<8x128xf32>
    %271 = arith.mulf %267, %270 : vector<8x128xf32>
    %272 = arith.addf %269, %271 : vector<8x128xf32>
    %273 = arith.mulf %272, %227 : vector<8x128xf32>
    %c4_107 = arith.constant 4 : index
    %c0_108 = arith.constant 0 : index
    %c0_109 = arith.constant 0 : index
    %274 = vector.load %arg4[%c4_107, %c0_108, %c0_109] : memref<8x8x128xf32, #tpu.memory_space<vmem>>, vector<1x8x128xf32>
    %275 = vector.shape_cast %274 : vector<1x8x128xf32> to vector<8x128xf32>
    %cst_110 = arith.constant dense<0.000000e+00> : vector<8x128xf32>
    %276 = tpu.matmul %273, %7, %cst_110 {dimension_numbers = #tpu.dot_dimension_numbers<[1], [0], [0], [1], [0, 0, 1, 1], [], []>} : vector<8x128xf32>, vector<128x128xf32>, vector<8x128xf32> -> vector<8x128xf32>
    %277 = arith.addf %275, %276 : vector<8x128xf32>
    %278 = math.tanh %277 : vector<8x128xf32>
    %279 = arith.subf %227, %278 : vector<8x128xf32>
    %280 = arith.mulf %251, %279 : vector<8x128xf32>
    %281 = arith.addf %278, %280 : vector<8x128xf32>
    %c4_111 = arith.constant 4 : index
    %c0_112 = arith.constant 0 : index
    %c0_113 = arith.constant 0 : index
    %282 = vector.load %arg10[%c4_111, %c0_112, %c0_113] : memref<8x8x128xf32, #tpu.memory_space<vmem>>, vector<1x8x128xf32>
    %283 = vector.shape_cast %282 : vector<1x8x128xf32> to vector<8x128xf32>
    %284 = vector.shape_cast %281 : vector<8x128xf32> to vector<1x8x128xf32>
    tpu.vector_store %arg10[%c4_111, %c0_112, %c0_113], %284 {strides = array<i32>} : memref<8x8x128xf32, #tpu.memory_space<vmem>>, vector<1x8x128xf32>,
    %c5 = arith.constant 5 : index
    %c0_114 = arith.constant 0 : index
    %c0_115 = arith.constant 0 : index
    %285 = vector.load %arg2[%c5, %c0_114, %c0_115] : memref<8x8x256xf32, #tpu.memory_space<vmem>>, vector<1x8x256xf32>
    %286 = vector.shape_cast %285 : vector<1x8x256xf32> to vector<8x256xf32>
    %cst_116 = arith.constant dense<0.000000e+00> : vector<8x256xf32>
    %287 = tpu.matmul %281, %3, %cst_116 {dimension_numbers = #tpu.dot_dimension_numbers<[1], [0], [0], [1], [0, 0, 1, 1], [], []>} : vector<8x128xf32>, vector<128x256xf32>, vector<8x256xf32> -> vector<8x256xf32>
    %288 = arith.addf %286, %287 : vector<8x256xf32>
    %289 = arith.negf %288 : vector<8x256xf32>
    %290 = math.exp %289 : vector<8x256xf32>
    %cst_117 = arith.constant 1.000000e+00 : f32
    %291 = vector.broadcast %cst_117 : f32 to vector<8x256xf32>
    %292 = arith.addf %291, %290 : vector<8x256xf32>
    %293 = arith.divf %291, %292 : vector<8x256xf32>
    %cst_118 = arith.constant dense<0.000000e+00> : vector<8x128xf32>
    %294 = tpu.matmul %293, %5, %cst_118 {dimension_numbers = #tpu.dot_dimension_numbers<[1], [0], [0], [1], [0, 0, 1, 1], [], []>} : vector<8x256xf32>, vector<256x128xf32>, vector<8x128xf32> -> vector<8x128xf32>
    %295 = arith.addf %294, %10 : vector<8x128xf32>
    %296 = arith.negf %295 : vector<8x128xf32>
    %297 = math.exp %296 : vector<8x128xf32>
    %cst_119 = arith.constant 1.000000e+00 : f32
    %298 = vector.broadcast %cst_119 : f32 to vector<8x128xf32>
    %299 = arith.addf %298, %297 : vector<8x128xf32>
    %300 = arith.divf %298, %299 : vector<8x128xf32>
    %301 = vector.extract_strided_slice %293 {offsets = [0, 0], sizes = [8, 128], strides = [1, 1]} : vector<8x256xf32> to vector<8x128xf32>
    %302 = vector.extract_strided_slice %293 {offsets = [0, 128], sizes = [8, 128], strides = [1, 1]} : vector<8x256xf32> to vector<8x128xf32>
    %303 = arith.subf %301, %302 : vector<8x128xf32>
    %304 = arith.mulf %300, %303 : vector<8x128xf32>
    %305 = arith.addf %302, %304 : vector<8x128xf32>
    %c5_120 = arith.constant 5 : index
    %c0_121 = arith.constant 0 : index
    %c0_122 = arith.constant 0 : index
    %306 = vector.load %arg3[%c5_120, %c0_121, %c0_122] : memref<8x8x256xf32, #tpu.memory_space<vmem>>, vector<1x8x256xf32>
    %307 = vector.shape_cast %306 : vector<1x8x256xf32> to vector<8x256xf32>
    %cst_123 = arith.constant dense<0.000000e+00> : vector<8x256xf32>
    %308 = tpu.matmul %281, %4, %cst_123 {dimension_numbers = #tpu.dot_dimension_numbers<[1], [0], [0], [1], [0, 0, 1, 1], [], []>} : vector<8x128xf32>, vector<128x256xf32>, vector<8x256xf32> -> vector<8x256xf32>
    %309 = arith.addf %307, %308 : vector<8x256xf32>
    %310 = arith.negf %309 : vector<8x256xf32>
    %311 = math.exp %310 : vector<8x256xf32>
    %cst_124 = arith.constant 1.000000e+00 : f32
    %312 = vector.broadcast %cst_124 : f32 to vector<8x256xf32>
    %313 = arith.addf %312, %311 : vector<8x256xf32>
    %314 = arith.divf %312, %313 : vector<8x256xf32>
    %cst_125 = arith.constant dense<0.000000e+00> : vector<8x128xf32>
    %315 = tpu.matmul %314, %6, %cst_125 {dimension_numbers = #tpu.dot_dimension_numbers<[1], [0], [0], [1], [0, 0, 1, 1], [], []>} : vector<8x256xf32>, vector<256x128xf32>, vector<8x128xf32> -> vector<8x128xf32>
    %316 = arith.addf %315, %13 : vector<8x128xf32>
    %317 = arith.negf %316 : vector<8x128xf32>
    %318 = math.exp %317 : vector<8x128xf32>
    %cst_126 = arith.constant 1.000000e+00 : f32
    %319 = vector.broadcast %cst_126 : f32 to vector<8x128xf32>
    %320 = arith.addf %319, %318 : vector<8x128xf32>
    %321 = arith.divf %319, %320 : vector<8x128xf32>
    %322 = vector.extract_strided_slice %314 {offsets = [0, 0], sizes = [8, 128], strides = [1, 1]} : vector<8x256xf32> to vector<8x128xf32>
    %323 = vector.extract_strided_slice %314 {offsets = [0, 128], sizes = [8, 128], strides = [1, 1]} : vector<8x256xf32> to vector<8x128xf32>
    %324 = arith.subf %322, %323 : vector<8x128xf32>
    %325 = arith.mulf %321, %324 : vector<8x128xf32>
    %326 = arith.addf %323, %325 : vector<8x128xf32>
    %327 = arith.mulf %326, %281 : vector<8x128xf32>
    %c5_127 = arith.constant 5 : index
    %c0_128 = arith.constant 0 : index
    %c0_129 = arith.constant 0 : index
    %328 = vector.load %arg4[%c5_127, %c0_128, %c0_129] : memref<8x8x128xf32, #tpu.memory_space<vmem>>, vector<1x8x128xf32>
    %329 = vector.shape_cast %328 : vector<1x8x128xf32> to vector<8x128xf32>
    %cst_130 = arith.constant dense<0.000000e+00> : vector<8x128xf32>
    %330 = tpu.matmul %327, %7, %cst_130 {dimension_numbers = #tpu.dot_dimension_numbers<[1], [0], [0], [1], [0, 0, 1, 1], [], []>} : vector<8x128xf32>, vector<128x128xf32>, vector<8x128xf32> -> vector<8x128xf32>
    %331 = arith.addf %329, %330 : vector<8x128xf32>
    %332 = math.tanh %331 : vector<8x128xf32>
    %333 = arith.subf %281, %332 : vector<8x128xf32>
    %334 = arith.mulf %305, %333 : vector<8x128xf32>
    %335 = arith.addf %332, %334 : vector<8x128xf32>
    %c5_131 = arith.constant 5 : index
    %c0_132 = arith.constant 0 : index
    %c0_133 = arith.constant 0 : index
    %336 = vector.load %arg10[%c5_131, %c0_132, %c0_133] : memref<8x8x128xf32, #tpu.memory_space<vmem>>, vector<1x8x128xf32>
    %337 = vector.shape_cast %336 : vector<1x8x128xf32> to vector<8x128xf32>
    %338 = vector.shape_cast %335 : vector<8x128xf32> to vector<1x8x128xf32>
    tpu.vector_store %arg10[%c5_131, %c0_132, %c0_133], %338 {strides = array<i32>} : memref<8x8x128xf32, #tpu.memory_space<vmem>>, vector<1x8x128xf32>,
    %c6 = arith.constant 6 : index
    %c0_134 = arith.constant 0 : index
    %c0_135 = arith.constant 0 : index
    %339 = vector.load %arg2[%c6, %c0_134, %c0_135] : memref<8x8x256xf32, #tpu.memory_space<vmem>>, vector<1x8x256xf32>
    %340 = vector.shape_cast %339 : vector<1x8x256xf32> to vector<8x256xf32>
    %cst_136 = arith.constant dense<0.000000e+00> : vector<8x256xf32>
    %341 = tpu.matmul %335, %3, %cst_136 {dimension_numbers = #tpu.dot_dimension_numbers<[1], [0], [0], [1], [0, 0, 1, 1], [], []>} : vector<8x128xf32>, vector<128x256xf32>, vector<8x256xf32> -> vector<8x256xf32>
    %342 = arith.addf %340, %341 : vector<8x256xf32>
    %343 = arith.negf %342 : vector<8x256xf32>
    %344 = math.exp %343 : vector<8x256xf32>
    %cst_137 = arith.constant 1.000000e+00 : f32
    %345 = vector.broadcast %cst_137 : f32 to vector<8x256xf32>
    %346 = arith.addf %345, %344 : vector<8x256xf32>
    %347 = arith.divf %345, %346 : vector<8x256xf32>
    %cst_138 = arith.constant dense<0.000000e+00> : vector<8x128xf32>
    %348 = tpu.matmul %347, %5, %cst_138 {dimension_numbers = #tpu.dot_dimension_numbers<[1], [0], [0], [1], [0, 0, 1, 1], [], []>} : vector<8x256xf32>, vector<256x128xf32>, vector<8x128xf32> -> vector<8x128xf32>
    %349 = arith.addf %348, %10 : vector<8x128xf32>
    %350 = arith.negf %349 : vector<8x128xf32>
    %351 = math.exp %350 : vector<8x128xf32>
    %cst_139 = arith.constant 1.000000e+00 : f32
    %352 = vector.broadcast %cst_139 : f32 to vector<8x128xf32>
    %353 = arith.addf %352, %351 : vector<8x128xf32>
    %354 = arith.divf %352, %353 : vector<8x128xf32>
    %355 = vector.extract_strided_slice %347 {offsets = [0, 0], sizes = [8, 128], strides = [1, 1]} : vector<8x256xf32> to vector<8x128xf32>
    %356 = vector.extract_strided_slice %347 {offsets = [0, 128], sizes = [8, 128], strides = [1, 1]} : vector<8x256xf32> to vector<8x128xf32>
    %357 = arith.subf %355, %356 : vector<8x128xf32>
    %358 = arith.mulf %354, %357 : vector<8x128xf32>
    %359 = arith.addf %356, %358 : vector<8x128xf32>
    %c6_140 = arith.constant 6 : index
    %c0_141 = arith.constant 0 : index
    %c0_142 = arith.constant 0 : index
    %360 = vector.load %arg3[%c6_140, %c0_141, %c0_142] : memref<8x8x256xf32, #tpu.memory_space<vmem>>, vector<1x8x256xf32>
    %361 = vector.shape_cast %360 : vector<1x8x256xf32> to vector<8x256xf32>
    %cst_143 = arith.constant dense<0.000000e+00> : vector<8x256xf32>
    %362 = tpu.matmul %335, %4, %cst_143 {dimension_numbers = #tpu.dot_dimension_numbers<[1], [0], [0], [1], [0, 0, 1, 1], [], []>} : vector<8x128xf32>, vector<128x256xf32>, vector<8x256xf32> -> vector<8x256xf32>
    %363 = arith.addf %361, %362 : vector<8x256xf32>
    %364 = arith.negf %363 : vector<8x256xf32>
    %365 = math.exp %364 : vector<8x256xf32>
    %cst_144 = arith.constant 1.000000e+00 : f32
    %366 = vector.broadcast %cst_144 : f32 to vector<8x256xf32>
    %367 = arith.addf %366, %365 : vector<8x256xf32>
    %368 = arith.divf %366, %367 : vector<8x256xf32>
    %cst_145 = arith.constant dense<0.000000e+00> : vector<8x128xf32>
    %369 = tpu.matmul %368, %6, %cst_145 {dimension_numbers = #tpu.dot_dimension_numbers<[1], [0], [0], [1], [0, 0, 1, 1], [], []>} : vector<8x256xf32>, vector<256x128xf32>, vector<8x128xf32> -> vector<8x128xf32>
    %370 = arith.addf %369, %13 : vector<8x128xf32>
    %371 = arith.negf %370 : vector<8x128xf32>
    %372 = math.exp %371 : vector<8x128xf32>
    %cst_146 = arith.constant 1.000000e+00 : f32
    %373 = vector.broadcast %cst_146 : f32 to vector<8x128xf32>
    %374 = arith.addf %373, %372 : vector<8x128xf32>
    %375 = arith.divf %373, %374 : vector<8x128xf32>
    %376 = vector.extract_strided_slice %368 {offsets = [0, 0], sizes = [8, 128], strides = [1, 1]} : vector<8x256xf32> to vector<8x128xf32>
    %377 = vector.extract_strided_slice %368 {offsets = [0, 128], sizes = [8, 128], strides = [1, 1]} : vector<8x256xf32> to vector<8x128xf32>
    %378 = arith.subf %376, %377 : vector<8x128xf32>
    %379 = arith.mulf %375, %378 : vector<8x128xf32>
    %380 = arith.addf %377, %379 : vector<8x128xf32>
    %381 = arith.mulf %380, %335 : vector<8x128xf32>
    %c6_147 = arith.constant 6 : index
    %c0_148 = arith.constant 0 : index
    %c0_149 = arith.constant 0 : index
    %382 = vector.load %arg4[%c6_147, %c0_148, %c0_149] : memref<8x8x128xf32, #tpu.memory_space<vmem>>, vector<1x8x128xf32>
    %383 = vector.shape_cast %382 : vector<1x8x128xf32> to vector<8x128xf32>
    %cst_150 = arith.constant dense<0.000000e+00> : vector<8x128xf32>
    %384 = tpu.matmul %381, %7, %cst_150 {dimension_numbers = #tpu.dot_dimension_numbers<[1], [0], [0], [1], [0, 0, 1, 1], [], []>} : vector<8x128xf32>, vector<128x128xf32>, vector<8x128xf32> -> vector<8x128xf32>
    %385 = arith.addf %383, %384 : vector<8x128xf32>
    %386 = math.tanh %385 : vector<8x128xf32>
    %387 = arith.subf %335, %386 : vector<8x128xf32>
    %388 = arith.mulf %359, %387 : vector<8x128xf32>
    %389 = arith.addf %386, %388 : vector<8x128xf32>
    %c6_151 = arith.constant 6 : index
    %c0_152 = arith.constant 0 : index
    %c0_153 = arith.constant 0 : index
    %390 = vector.load %arg10[%c6_151, %c0_152, %c0_153] : memref<8x8x128xf32, #tpu.memory_space<vmem>>, vector<1x8x128xf32>
    %391 = vector.shape_cast %390 : vector<1x8x128xf32> to vector<8x128xf32>
    %392 = vector.shape_cast %389 : vector<8x128xf32> to vector<1x8x128xf32>
    tpu.vector_store %arg10[%c6_151, %c0_152, %c0_153], %392 {strides = array<i32>} : memref<8x8x128xf32, #tpu.memory_space<vmem>>, vector<1x8x128xf32>,
    %c7 = arith.constant 7 : index
    %c0_154 = arith.constant 0 : index
    %c0_155 = arith.constant 0 : index
    %393 = vector.load %arg2[%c7, %c0_154, %c0_155] : memref<8x8x256xf32, #tpu.memory_space<vmem>>, vector<1x8x256xf32>
    %394 = vector.shape_cast %393 : vector<1x8x256xf32> to vector<8x256xf32>
    %cst_156 = arith.constant dense<0.000000e+00> : vector<8x256xf32>
    %395 = tpu.matmul %389, %3, %cst_156 {dimension_numbers = #tpu.dot_dimension_numbers<[1], [0], [0], [1], [0, 0, 1, 1], [], []>} : vector<8x128xf32>, vector<128x256xf32>, vector<8x256xf32> -> vector<8x256xf32>
    %396 = arith.addf %394, %395 : vector<8x256xf32>
    %397 = arith.negf %396 : vector<8x256xf32>
    %398 = math.exp %397 : vector<8x256xf32>
    %cst_157 = arith.constant 1.000000e+00 : f32
    %399 = vector.broadcast %cst_157 : f32 to vector<8x256xf32>
    %400 = arith.addf %399, %398 : vector<8x256xf32>
    %401 = arith.divf %399, %400 : vector<8x256xf32>
    %cst_158 = arith.constant dense<0.000000e+00> : vector<8x128xf32>
    %402 = tpu.matmul %401, %5, %cst_158 {dimension_numbers = #tpu.dot_dimension_numbers<[1], [0], [0], [1], [0, 0, 1, 1], [], []>} : vector<8x256xf32>, vector<256x128xf32>, vector<8x128xf32> -> vector<8x128xf32>
    %403 = arith.addf %402, %10 : vector<8x128xf32>
    %404 = arith.negf %403 : vector<8x128xf32>
    %405 = math.exp %404 : vector<8x128xf32>
    %cst_159 = arith.constant 1.000000e+00 : f32
    %406 = vector.broadcast %cst_159 : f32 to vector<8x128xf32>
    %407 = arith.addf %406, %405 : vector<8x128xf32>
    %408 = arith.divf %406, %407 : vector<8x128xf32>
    %409 = vector.extract_strided_slice %401 {offsets = [0, 0], sizes = [8, 128], strides = [1, 1]} : vector<8x256xf32> to vector<8x128xf32>
    %410 = vector.extract_strided_slice %401 {offsets = [0, 128], sizes = [8, 128], strides = [1, 1]} : vector<8x256xf32> to vector<8x128xf32>
    %411 = arith.subf %409, %410 : vector<8x128xf32>
    %412 = arith.mulf %408, %411 : vector<8x128xf32>
    %413 = arith.addf %410, %412 : vector<8x128xf32>
    %c7_160 = arith.constant 7 : index
    %c0_161 = arith.constant 0 : index
    %c0_162 = arith.constant 0 : index
    %414 = vector.load %arg3[%c7_160, %c0_161, %c0_162] : memref<8x8x256xf32, #tpu.memory_space<vmem>>, vector<1x8x256xf32>
    %415 = vector.shape_cast %414 : vector<1x8x256xf32> to vector<8x256xf32>
    %cst_163 = arith.constant dense<0.000000e+00> : vector<8x256xf32>
    %416 = tpu.matmul %389, %4, %cst_163 {dimension_numbers = #tpu.dot_dimension_numbers<[1], [0], [0], [1], [0, 0, 1, 1], [], []>} : vector<8x128xf32>, vector<128x256xf32>, vector<8x256xf32> -> vector<8x256xf32>
    %417 = arith.addf %415, %416 : vector<8x256xf32>
    %418 = arith.negf %417 : vector<8x256xf32>
    %419 = math.exp %418 : vector<8x256xf32>
    %cst_164 = arith.constant 1.000000e+00 : f32
    %420 = vector.broadcast %cst_164 : f32 to vector<8x256xf32>
    %421 = arith.addf %420, %419 : vector<8x256xf32>
    %422 = arith.divf %420, %421 : vector<8x256xf32>
    %cst_165 = arith.constant dense<0.000000e+00> : vector<8x128xf32>
    %423 = tpu.matmul %422, %6, %cst_165 {dimension_numbers = #tpu.dot_dimension_numbers<[1], [0], [0], [1], [0, 0, 1, 1], [], []>} : vector<8x256xf32>, vector<256x128xf32>, vector<8x128xf32> -> vector<8x128xf32>
    %424 = arith.addf %423, %13 : vector<8x128xf32>
    %425 = arith.negf %424 : vector<8x128xf32>
    %426 = math.exp %425 : vector<8x128xf32>
    %cst_166 = arith.constant 1.000000e+00 : f32
    %427 = vector.broadcast %cst_166 : f32 to vector<8x128xf32>
    %428 = arith.addf %427, %426 : vector<8x128xf32>
    %429 = arith.divf %427, %428 : vector<8x128xf32>
    %430 = vector.extract_strided_slice %422 {offsets = [0, 0], sizes = [8, 128], strides = [1, 1]} : vector<8x256xf32> to vector<8x128xf32>
    %431 = vector.extract_strided_slice %422 {offsets = [0, 128], sizes = [8, 128], strides = [1, 1]} : vector<8x256xf32> to vector<8x128xf32>
    %432 = arith.subf %430, %431 : vector<8x128xf32>
    %433 = arith.mulf %429, %432 : vector<8x128xf32>
    %434 = arith.addf %431, %433 : vector<8x128xf32>
    %435 = arith.mulf %434, %389 : vector<8x128xf32>
    %c7_167 = arith.constant 7 : index
    %c0_168 = arith.constant 0 : index
    %c0_169 = arith.constant 0 : index
    %436 = vector.load %arg4[%c7_167, %c0_168, %c0_169] : memref<8x8x128xf32, #tpu.memory_space<vmem>>, vector<1x8x128xf32>
    %437 = vector.shape_cast %436 : vector<1x8x128xf32> to vector<8x128xf32>
    %cst_170 = arith.constant dense<0.000000e+00> : vector<8x128xf32>
    %438 = tpu.matmul %435, %7, %cst_170 {dimension_numbers = #tpu.dot_dimension_numbers<[1], [0], [0], [1], [0, 0, 1, 1], [], []>} : vector<8x128xf32>, vector<128x128xf32>, vector<8x128xf32> -> vector<8x128xf32>
    %439 = arith.addf %437, %438 : vector<8x128xf32>
    %440 = math.tanh %439 : vector<8x128xf32>
    %441 = arith.subf %389, %440 : vector<8x128xf32>
    %442 = arith.mulf %413, %441 : vector<8x128xf32>
    %443 = arith.addf %440, %442 : vector<8x128xf32>
    %c7_171 = arith.constant 7 : index
    %c0_172 = arith.constant 0 : index
    %c0_173 = arith.constant 0 : index
    %444 = vector.load %arg10[%c7_171, %c0_172, %c0_173] : memref<8x8x128xf32, #tpu.memory_space<vmem>>, vector<1x8x128xf32>
    %445 = vector.shape_cast %444 : vector<1x8x128xf32> to vector<8x128xf32>
    %446 = vector.shape_cast %443 : vector<8x128xf32> to vector<1x8x128xf32>
    tpu.vector_store %arg10[%c7_171, %c0_172, %c0_173], %446 {strides = array<i32>} : memref<8x8x128xf32, #tpu.memory_space<vmem>>, vector<1x8x128xf32>,
    %c0_174 = arith.constant 0 : index
    %c0_175 = arith.constant 0 : index
    %447 = vector.load %arg15[%c0_174, %c0_175] : memref<8x128xf32, #tpu.memory_space<vmem>>, vector<8x128xf32>
    tpu.vector_store %arg15[%c0_174, %c0_175], %443 {strides = array<i32>} : memref<8x128xf32, #tpu.memory_space<vmem>>, vector<8x128xf32>,
    return
  }
  func.func @transform_0(%arg0: i32, %arg1: i32) -> (i32, i32, i32) {
    %c0_i32 = arith.constant 0 : i32
    %c0_i32_0 = arith.constant 0 : i32
    return %arg1, %arg0, %c0_i32 : i32, i32, i32
  }
  func.func @transform_1(%arg0: i32, %arg1: i32) -> (i32, i32, i32) {
    %c0_i32 = arith.constant 0 : i32
    %c0_i32_0 = arith.constant 0 : i32
    return %arg1, %arg0, %c0_i32 : i32, i32, i32
  }
  func.func @transform_2(%arg0: i32, %arg1: i32) -> (i32, i32, i32) {
    %c0_i32 = arith.constant 0 : i32
    %c0_i32_0 = arith.constant 0 : i32
    return %arg1, %arg0, %c0_i32 : i32, i32, i32
  }
  func.func @transform_3(%arg0: i32, %arg1: i32) -> (i32, i32) {
    %c0_i32 = arith.constant 0 : i32
    %c0_i32_0 = arith.constant 0 : i32
    return %arg0, %c0_i32 : i32, i32
  }
  func.func @transform_8(%arg0: i32, %arg1: i32) -> (i32, i32, i32) {
    %c0_i32 = arith.constant 0 : i32
    %c0_i32_0 = arith.constant 0 : i32
    return %arg1, %arg0, %c0_i32 : i32, i32, i32
  }
}

</mosaic_0001>

<llo_original>
// kernel: custom-call
$region0: #{custom-call}
  %s0 = inlined_call_operand.vmem [shape: f32[520], index: 0, kind: output, shape index: {}]

// kernel: ggru_forward.1
$region0: #{ggru_forward.1}
  #allocation0 [shape = 'u32[]', space=smem, size = 0x4, offset = 0x4, fixed_abs, tag = 'smem constant byte address 0x4 - core index']
  #allocation1 [shape = 'u32[144,128]{1,0:T(1,128)}', space=vmem, size = 0x12000, scoped, tag = 'internal scratch']
  #allocation2 [shape = 'f32[128,512]{1,0:T(8,128)}', space=vmem, size = 0x40000, scoped, tag = 'scratch operand']
  #allocation3 [shape = 'f32[256,256]{1,0:T(8,128)}', space=vmem, size = 0x40000, scoped, tag = 'scratch operand']
  #allocation4 [shape = 'f32[1,256]{1,0:T(1,128)}', space=vmem, size = 0x400, scoped, tag = 'scratch operand']
  #allocation5 [shape = 'f32[128,128]{1,0:T(8,128)}', space=vmem, size = 0x10000, scoped, tag = 'scratch operand']
  #allocation6 [shape = 'f32[8,128]{1,0:T(8,128)}', space=vmem, size = 0x1000, scoped, tag = 'scratch operand']
  #allocation7 [shape = 's32[4]{0}', space=sflag, size = 0x10, scoped, tag = 'scratch operand']
  #allocation8 [shape = 's32[]', space=sflag, size = 0x4, offset = 0, fixed_abs, tag = 'sflag constant byte address 0x0 - dummy sync flag']
  #allocation9 [shape = 's32[]', space=sflag, size = 0x4, offset = 0, fixed_abs, tag = 'sflag constant byte address 0x0 - dummy sync flag']
  #allocation10 [shape = 's32[]', space=sflag, size = 0x4, offset = 0, fixed_abs, tag = 'sflag constant byte address 0x0 - dummy sync flag']
  #allocation11 [shape = 's32[]', space=sflag, size = 0x4, offset = 0, fixed_abs, tag = 'sflag constant byte address 0x0 - dummy sync flag']
  %s0 = inlined_call_operand.vmem [shape: f32[16,8,256], index: 0, kind: input, shape index: {}]
  %s1 = inlined_call_operand.vmem [shape: f32[16,8,256], index: 1, kind: input, shape index: {}]
  %s2 = inlined_call_operand.vmem [shape: f32[16,8,128], index: 2, kind: input, shape index: {}]
  %s3 = inlined_call_operand.vmem [shape: f32[8,128], index: 3, kind: input, shape index: {}]
  %s4 = inlined_call_operand.vmem [shape: f32[128,512], index: 4, kind: input, shape index: {}]
  %s5 = inlined_call_operand.vmem [shape: f32[256,256], index: 5, kind: input, shape index: {}]
  %s6 = inlined_call_operand.vmem [shape: f32[1,256], index: 6, kind: input, shape index: {}]
  %s7 = inlined_call_operand.vmem [shape: f32[128,128], index: 7, kind: input, shape index: {}]
  %s8 = inlined_call_operand.vmem [shape: f32[16,8,128], index: 8, kind: output, shape index: {}]
  %s9 = sld [smem:[#allocation0]]
  $region185: #{ggru_forward.1} parent=0
    _
  %s11 = ssub.s32 1, %s9
  %s12 = scalar_select 0, %s11, %s9
  loop: start=0, step=1, limit=4
  $region2: #{ggru_forward.1} parent=0 // loop_pre_header
    _
  $region3: #{ggru_forward.1} parent=0 // loop_header
    %s14 = sphi 0, %s18
    %p15 = scmp.ge.s32.totalorder %s14, 4
    %s21 = sphi 0, %s33
    %s22 = sphi 0, %s29
    %s23 = sphi 0, %s21
    %s24 = sphi 0, %s22
    %s25 = sphi 0, %s23
    %s26 = sphi 0, %s24
    %s38 = sphi 0, %s40
    %s41 = sphi 0, %s38
    %s42 = sphi 0, %s41
    %s58 = sphi 0, %s42
    %s66 = sphi 0, %s68
    %s69 = sphi 0, %s66
    %s70 = sphi 0, %s69
    %s86 = sphi 0, %s70
    %s94 = sphi 0, %s96
    %s97 = sphi 0, %s94
    %s98 = sphi 0, %s97
    %s114 = sphi 0, %s98
    %s120 = sphi 0, %s122
    %s123 = sphi 0, %s120
    %s124 = sphi 0, %s123
    %s140 = sphi 0, %s124
    %s148 = sphi 0, %s150
    %s151 = sphi 0, %s148
    %s152 = sphi 0, %s151
    %s168 = sphi 0, %s152
  $region4: #{ggru_forward.1} parent=0 // loop_header_branch
    %17 = sbr.rel (%p15) target = $region8
  $region5: #{ggru_forward.1} parent=0 // loop_body
    %s19 = ssub.s32 %s14, 1
    %s20 = ssub.s32 %s14, 2
    %s27 = sadd.s32 1, %s22
    %p28 = scmp.ge.s32.totalorder %s27, 2
    %s29 = scalar_select %p28, 0, %s27
    %s30 = sadd.s32 1, %s21
    %s31 = scalar_select %p28, %s30, %s21
    %p32 = scmp.ge.s32.totalorder %s31, 1
    %s33 = scalar_select %p32, 0, %s31
    %s34 = ssub.s32 %s22, %s29
    %s35 = ssub.s32 %s21, %s33
    %s36 = sor.u32 %s34, %s35
    %p37 = scmp.eq.s32.totalorder %s36, 0
    %s39 = sadd.s32 %s38, 1
    %s40 = scalar_select %p37, %s38, %s39
    %p43 = pneg %p37
    %p44 = scmp.eq.s32.totalorder %s14, 1
    %p45 = por %p43, %p44
    %p46 = scmp.ne.s32.totalorder %s38, %s41
    %p47 = scmp.eq.s32.totalorder %s14, 0
    %p48 = por %p46, %p47
    %p49 = scmp.ne.s32.totalorder %s38, %s41
    %p50 = scmp.eq.s32.totalorder %s19, 1
    %p51 = por %p49, %p50
    %p52 = scmp.ne.s32.totalorder %s41, %s42
    %p53 = scmp.eq.s32.totalorder %s19, 0
    %p54 = por %p52, %p53
    %p55 = scmp.ne.s32.totalorder %s41, %s42
    %p56 = scmp.eq.s32.totalorder %s20, 1
    %p57 = por %p55, %p56
    %p59 = scmp.ne.s32.totalorder %s42, %s58
    %p60 = scmp.eq.s32.totalorder %s20, 0
    %p61 = por %p59, %p60
    %s62 = ssub.s32 %s22, %s29
    %s63 = ssub.s32 %s21, %s33
    %s64 = sor.u32 %s62, %s63
    %p65 = scmp.eq.s32.totalorder %s64, 0
    %s67 = sadd.s32 %s66, 1
    %s68 = scalar_select %p65, %s66, %s67
    %p71 = pneg %p65
    %p72 = scmp.eq.s32.totalorder %s14, 1
    %p73 = por %p71, %p72
    %p74 = scmp.ne.s32.totalorder %s66, %s69
    %p75 = scmp.eq.s32.totalorder %s14, 0
    %p76 = por %p74, %p75
    %p77 = scmp.ne.s32.totalorder %s66, %s69
    %p78 = scmp.eq.s32.totalorder %s19, 1
    %p79 = por %p77, %p78
    %p80 = scmp.ne.s32.totalorder %s69, %s70
    %p81 = scmp.eq.s32.totalorder %s19, 0
    %p82 = por %p80, %p81
    %p83 = scmp.ne.s32.totalorder %s69, %s70
    %p84 = scmp.eq.s32.totalorder %s20, 1
    %p85 = por %p83, %p84
    %p87 = scmp.ne.s32.totalorder %s70, %s86
    %p88 = scmp.eq.s32.totalorder %s20, 0
    %p89 = por %p87, %p88
    %s90 = ssub.s32 %s22, %s29
    %s91 = ssub.s32 %s21, %s33
    %s92 = sor.u32 %s90, %s91
    %p93 = scmp.eq.s32.totalorder %s92, 0
    %s95 = sadd.s32 %s94, 1
    %s96 = scalar_select %p93, %s94, %s95
    %p99 = pneg %p93
    %p100 = scmp.eq.s32.totalorder %s14, 1
    %p101 = por %p99, %p100
    %p102 = scmp.ne.s32.totalorder %s94, %s97
    %p103 = scmp.eq.s32.totalorder %s14, 0
    %p104 = por %p102, %p103
    %p105 = scmp.ne.s32.totalorder %s94, %s97
    %p106 = scmp.eq.s32.totalorder %s19, 1
    %p107 = por %p105, %p106
    %p108 = scmp.ne.s32.totalorder %s97, %s98
    %p109 = scmp.eq.s32.totalorder %s19, 0
    %p110 = por %p108, %p109
    %p111 = scmp.ne.s32.totalorder %s97, %s98
    %p112 = scmp.eq.s32.totalorder %s20, 1
    %p113 = por %p111, %p112
    %p115 = scmp.ne.s32.totalorder %s98, %s114
    %p116 = scmp.eq.s32.totalorder %s20, 0
    %p117 = por %p115, %p116
    %s118 = ssub.s32 %s21, %s33
    %p119 = scmp.eq.s32.totalorder %s118, 0
    %s121 = sadd.s32 %s120, 1
    %s122 = scalar_select %p119, %s120, %s121
    %p125 = pneg %p119
    %p126 = scmp.eq.s32.totalorder %s14, 1
    %p127 = por %p125, %p126
    %p128 = scmp.ne.s32.totalorder %s120, %s123
    %p129 = scmp.eq.s32.totalorder %s14, 0
    %p130 = por %p128, %p129
    %p131 = scmp.ne.s32.totalorder %s120, %s123
    %p132 = scmp.eq.s32.totalorder %s19, 1
    %p133 = por %p131, %p132
    %p134 = scmp.ne.s32.totalorder %s123, %s124
    %p135 = scmp.eq.s32.totalorder %s19, 0
    %p136 = por %p134, %p135
    %p137 = scmp.ne.s32.totalorder %s123, %s124
    %p138 = scmp.eq.s32.totalorder %s20, 1
    %p139 = por %p137, %p138
    %p141 = scmp.ne.s32.totalorder %s124, %s140
    %p142 = scmp.eq.s32.totalorder %s20, 0
    %p143 = por %p141, %p142
    %s144 = ssub.s32 %s22, %s29
    %s145 = ssub.s32 %s21, %s33
    %s146 = sor.u32 %s144, %s145
    %p147 = scmp.eq.s32.totalorder %s146, 0
    %s149 = sadd.s32 %s148, 1
    %s150 = scalar_select %p147, %s148, %s149
    %p153 = pneg %p147
    %p154 = scmp.eq.s32.totalorder %s14, 1
    %p155 = por %p153, %p154
    %p156 = scmp.ne.s32.totalorder %s148, %s151
    %p157 = scmp.eq.s32.totalorder %s14, 0
    %p158 = por %p156, %p157
    %p159 = scmp.ne.s32.totalorder %s148, %s151
    %p160 = scmp.eq.s32.totalorder %s19, 1
    %p161 = por %p159, %p160
    %p162 = scmp.ne.s32.totalorder %s151, %s152
    %p163 = scmp.eq.s32.totalorder %s19, 0
    %p164 = por %p162, %p163
    %p165 = scmp.ne.s32.totalorder %s151, %s152
    %p166 = scmp.eq.s32.totalorder %s20, 1
    %p167 = por %p165, %p166
    %p169 = scmp.ne.s32.totalorder %s152, %s168
    %p170 = scmp.eq.s32.totalorder %s20, 0
    %p171 = por %p169, %p170
    %p172 = scmp.le.s32.totalorder 1, %s14
    %p173 = scmp.lt.s32.totalorder %s14, 3
    %p174 = pnand %p172, %p173
    %p175 = pneg %p174
    // Predicated region
    $region9: #{ggru_forward.1} parent=5 // pred_check
      _
    $region10: #{ggru_forward.1} parent=5 // pred_check_branch
      %177 = sbr.rel (%p174) target = $region12
    $region11: #{ggru_forward.1} parent=5 // pred_region
      %s178 = ssub.s32 %s14, 1
      // Predicated region
      $region13: #{ggru_forward.1} parent=11 // pred_check
        %p179 = pneg %p136
      $region14: #{ggru_forward.1} parent=11 // pred_check_branch
        %181 = sbr.rel (%p179) target = $region16
      $region15: #{ggru_forward.1} parent=11 // pred_region
        %p182 = scmp.lt.s32.totalorder %s23, 0
        %s183 = scalar_select %p182, %s23, 0
        %s184 = smul.addr %s183, 8
        %s185 = scalar_lea.vmem %s3, %s184
      $region16: #{ggru_forward.1} parent=11 // pred_fallthru
        _
    $region12: #{ggru_forward.1} parent=5 // pred_fallthru
      _
    %p186 = scmp.lt.s32.totalorder %s14, 2
    // Predicated region
    $region17: #{ggru_forward.1} parent=5 // pred_check
      %p187 = pneg %p186
    $region18: #{ggru_forward.1} parent=5 // pred_check_branch
      %189 = sbr.rel (%p187) target = $region20
    $region19: #{ggru_forward.1} parent=5 // pred_region
      // Predicated region
      $region21: #{ggru_forward.1} parent=19 // pred_check
        %p190 = pneg %p48
      $region22: #{ggru_forward.1} parent=19 // pred_check_branch
        %192 = sbr.rel (%p190) target = $region24
      $region23: #{ggru_forward.1} parent=19 // pred_region
        %s193 = smul.u32 8, %s22
        %p194 = scmp.lt.s32.totalorder %s193, 15
        %s195 = scalar_select %p194, %s193, 15
        %p196 = scmp.lt.s32.totalorder %s21, 0
        %s197 = scalar_select %p196, %s21, 0
        %s198 = smul.addr %s197, 2
        %s199 = smul.addr %s195, 2
        %s200 = sadd.s32 %s198, %s199
        %s201 = smul.addr %s200, 8
        %s202 = scalar_lea.vmem %s0, %s201
        %s203 = smul.u32 8, %s22
      $region24: #{ggru_forward.1} parent=19 // pred_fallthru
        _
      // Predicated region
      $region25: #{ggru_forward.1} parent=19 // pred_check
        %p204 = pneg %p76
      $region26: #{ggru_forward.1} parent=19 // pred_check_branch
        %206 = sbr.rel (%p204) target = $region28
      $region27: #{ggru_forward.1} parent=19 // pred_region
        %s207 = smul.u32 8, %s22
        %p208 = scmp.lt.s32.totalorder %s207, 15
        %s209 = scalar_select %p208, %s207, 15
        %p210 = scmp.lt.s32.totalorder %s21, 0
        %s211 = scalar_select %p210, %s21, 0
        %s212 = smul.addr %s211, 2
        %s213 = smul.addr %s209, 2
        %s214 = sadd.s32 %s212, %s213
        %s215 = smul.addr %s214, 8
        %s216 = scalar_lea.vmem %s1, %s215
        %s217 = smul.u32 8, %s22
      $region28: #{ggru_forward.1} parent=19 // pred_fallthru
        _
      // Predicated region
      $region29: #{ggru_forward.1} parent=19 // pred_check
        %p218 = pneg %p104
      $region30: #{ggru_forward.1} parent=19 // pred_check_branch
        %220 = sbr.rel (%p218) target = $region32
      $region31: #{ggru_forward.1} parent=19 // pred_region
        %s221 = smul.u32 8, %s22
        %p222 = scmp.lt.s32.totalorder %s221, 15
        %s223 = scalar_select %p222, %s221, 15
        %p224 = scmp.lt.s32.totalorder %s21, 0
        %s225 = scalar_select %p224, %s21, 0
        %s226 = sadd.s32 %s225, %s223
        %s227 = smul.addr %s226, 8
        %s228 = scalar_lea.vmem %s2, %s227
        %s229 = smul.u32 8, %s22
      $region32: #{ggru_forward.1} parent=19 // pred_fallthru
        _
    $region20: #{ggru_forward.1} parent=5 // pred_fallthru
      _
    %p230 = scmp.le.s32.totalorder 1, %s14
    %p231 = scmp.lt.s32.totalorder %s14, 3
    %p232 = pnand %p230, %p231
    %p233 = pneg %p232
    // Predicated region
    $region33: #{ggru_forward.1} parent=5 // pred_check
      _
    $region34: #{ggru_forward.1} parent=5 // pred_check_branch
      %235 = sbr.rel (%p232) target = $region36
    $region35: #{ggru_forward.1} parent=5 // pred_region
      %s236 = ssub.s32 %s14, 1
      %s237 = smul.u32 8, %s24
      %p238 = scmp.lt.s32.totalorder %s237, 15
      %s239 = scalar_select %p238, %s237, 15
      %p240 = scmp.lt.s32.totalorder %s23, 0
      %s241 = scalar_select %p240, %s23, 0
      %s242 = smul.addr %s241, 2
      %s243 = smul.addr %s239, 2
      %s244 = sadd.s32 %s242, %s243
      %s245 = smul.addr %s244, 8
      %s246 = scalar_lea.vmem %s0, %s245
      %p247 = pneg %p54
      %p248 = pneg %p51
      %s249 = smul.u32 8, %s24
      %p250 = scmp.lt.s32.totalorder %s249, 15
      %s251 = scalar_select %p250, %s249, 15
      %p252 = scmp.lt.s32.totalorder %s23, 0
      %s253 = scalar_select %p252, %s23, 0
      %s254 = smul.addr %s253, 2
      %s255 = smul.addr %s251, 2
      %s256 = sadd.s32 %s254, %s255
      %s257 = smul.addr %s256, 8
      %s258 = scalar_lea.vmem %s1, %s257
      %p259 = pneg %p82
      %p260 = pneg %p79
      %s261 = smul.u32 8, %s24
      %p262 = scmp.lt.s32.totalorder %s261, 15
      %s263 = scalar_select %p262, %s261, 15
      %p264 = scmp.lt.s32.totalorder %s23, 0
      %s265 = scalar_select %p264, %s23, 0
      %s266 = sadd.s32 %s265, %s263
      %s267 = smul.addr %s266, 8
      %s268 = scalar_lea.vmem %s2, %s267
      %p269 = pneg %p110
      %p270 = pneg %p107
      %p271 = scmp.lt.s32.totalorder %s23, 0
      %s272 = scalar_select %p271, %s23, 0
      %s273 = smul.addr %s272, 8
      %s274 = scalar_lea.vmem %s3, %s273
      %p275 = pneg %p136
      %p276 = pneg %p133
      %p277 = pneg %p164
      %p278 = pneg %p161
      %s279 = smul.u32 8, %s24
      %p280 = scmp.lt.s32.totalorder %s279, 15
      %s281 = scalar_select %p280, %s279, 15
      %p282 = scmp.lt.s32.totalorder %s23, 0
      %s283 = scalar_select %p282, %s23, 0
      %s284 = sadd.s32 %s283, %s281
      %s285 = smul.addr %s284, 8
      %s286 = scalar_lea.vmem %s8, %s285
      %s287 = smul.u32 8, %s24
      %p288 = scmp.lt.s32.totalorder %s287, 15
      %s289 = scalar_select %p288, %s287, 15
      %p290 = scmp.lt.s32.totalorder %s23, 0
      %s291 = scalar_select %p290, %s23, 0
      %s292 = smul.addr %s291, 2
      %s293 = smul.addr %s289, 2
      %s294 = sadd.s32 %s292, %s293
      %s295 = smul.addr %s294, 8
      %s296 = scalar_lea.vmem %s0, %s295
      %s297 = smul.u32 8, %s24
      %s298 = smul.u32 8, %s24
      %p299 = scmp.lt.s32.totalorder %s298, 15
      %s300 = scalar_select %p299, %s298, 15
      %p301 = scmp.lt.s32.totalorder %s23, 0
      %s302 = scalar_select %p301, %s23, 0
      %s303 = smul.addr %s302, 2
      %s304 = smul.addr %s300, 2
      %s305 = sadd.s32 %s303, %s304
      %s306 = smul.addr %s305, 8
      %s307 = scalar_lea.vmem %s1, %s306
      %s308 = smul.u32 8, %s24
      %s309 = smul.u32 8, %s24
      %p310 = scmp.lt.s32.totalorder %s309, 15
      %s311 = scalar_select %p310, %s309, 15
      %p312 = scmp.lt.s32.totalorder %s23, 0
      %s313 = scalar_select %p312, %s23, 0
      %s314 = sadd.s32 %s313, %s311
      %s315 = smul.addr %s314, 8
      %s316 = scalar_lea.vmem %s2, %s315
      %s317 = smul.u32 8, %s24
      %p318 = scmp.lt.s32.totalorder %s23, 0
      %s319 = scalar_select %p318, %s23, 0
      %s320 = smul.addr %s319, 8
      %s321 = scalar_lea.vmem %s3, %s320
      %s322 = smul.u32 8, %s24
      %p323 = scmp.lt.s32.totalorder %s322, 15
      %s324 = scalar_select %p323, %s322, 15
      %p325 = scmp.lt.s32.totalorder %s23, 0
      %s326 = scalar_select %p325, %s23, 0
      %s327 = sadd.s32 %s326, %s324
      %s328 = smul.addr %s327, 8
      %s329 = scalar_lea.vmem %s8, %s328
      %s330 = smul.u32 8, %s24
      %p331 = scmp.eq.s32.totalorder %s24, 0
      // Predicated region
      $region37: #{ggru_forward.1} parent=35 // pred_check
        %p332 = pneg %p331
      $region38: #{ggru_forward.1} parent=35 // pred_check_branch
        %334 = sbr.rel (%p332) target = $region40
      $region39: #{ggru_forward.1} parent=35 // pred_region
        %p336 = scmp.lt.u32.totalorder 512, 8
        %p337 = pneg %p336
        // Predicated region
        $region41: #{ggru_forward.1} parent=39 // pred_check
          _
        $region42: #{ggru_forward.1} parent=39 // pred_check_branch
          %339 = sbr.rel (%p336) target = $region44
        $region43: #{ggru_forward.1} parent=39 // pred_region
          %s354 = sand.u32 512, 7
          %p355 = scmp.eq.s32.totalorder %s354, 0
          // Predicated region
          $region56: #{ggru_forward.1} parent=43 // pred_check
            %p356 = pneg %p355
          $region57: #{ggru_forward.1} parent=43 // pred_check_branch
            %358 = sbr.rel (%p356) target = $region59
          $region58: #{ggru_forward.1} parent=43 // pred_region
            loop: start=0, step=1, limit=1
            $region60: #{ggru_forward.1} parent=58 // loop_pre_header
              _
            $region61: #{ggru_forward.1} parent=58 // loop_header
              %s360 = sphi 0, %s364
              %p361 = scmp.ge.s32.totalorder %s360, 1
              %s365 = sphi %s4, %s4
              %s366 = sphi [#allocation2], [#allocation2]
            $region62: #{ggru_forward.1} parent=58 // loop_header_branch
              %363 = sbr.rel (%p361) target = $region66
            $region63: #{ggru_forward.1} parent=58 // loop_body
              %v367 = vld [vmem:[%s365] sm:$0xff]
              %368 = vst [vmem:[%s366] sm:$0xff] %v367
              %v369 = vld [vmem:[%s365 + $0x8] sm:$0xff]
              %370 = vst [vmem:[%s366 + $0x8] sm:$0xff] %v369
              %v371 = vld [vmem:[%s365 + $0x10] sm:$0xff]
              %372 = vst [vmem:[%s366 + $0x10] sm:$0xff] %v371
              %v373 = vld [vmem:[%s365 + $0x18] sm:$0xff]
              %374 = vst [vmem:[%s366 + $0x18] sm:$0xff] %v373
              %v375 = vld [vmem:[%s365 + $0x20] sm:$0xff]
              %376 = vst [vmem:[%s366 + $0x20] sm:$0xff] %v375
              %v377 = vld [vmem:[%s365 + $0x28] sm:$0xff]
              %378 = vst [vmem:[%s366 + $0x28] sm:$0xff] %v377
              %v379 = vld [vmem:[%s365 + $0x30] sm:$0xff]
              %380 = vst [vmem:[%s366 + $0x30] sm:$0xff] %v379
              %v381 = vld [vmem:[%s365 + $0x38] sm:$0xff]
              %382 = vst [vmem:[%s366 + $0x38] sm:$0xff] %v381
              %v383 = vld [vmem:[%s365 + $0x40] sm:$0xff]
              %384 = vst [vmem:[%s366 + $0x40] sm:$0xff] %v383
              %v385 = vld [vmem:[%s365 + $0x48] sm:$0xff]
              %386 = vst [vmem:[%s366 + $0x48] sm:$0xff] %v385
              %v387 = vld [vmem:[%s365 + $0x50] sm:$0xff]
              %388 = vst [vmem:[%s366 + $0x50] sm:$0xff] %v387
              %v389 = vld [vmem:[%s365 + $0x58] sm:$0xff]
              %390 = vst [vmem:[%s366 + $0x58] sm:$0xff] %v389
              %v391 = vld [vmem:[%s365 + $0x60] sm:$0xff]
              %392 = vst [vmem:[%s366 + $0x60] sm:$0xff] %v391
              %v393 = vld [vmem:[%s365 + $0x68] sm:$0xff]
              %394 = vst [vmem:[%s366 + $0x68] sm:$0xff] %v393
              %v395 = vld [vmem:[%s365 + $0x70] sm:$0xff]
              %396 = vst [vmem:[%s366 + $0x70] sm:$0xff] %v395
              %v397 = vld [vmem:[%s365 + $0x78] sm:$0xff]
              %398 = vst [vmem:[%s366 + $0x78] sm:$0xff] %v397
              %v399 = vld [vmem:[%s365 + $0x80] sm:$0xff]
              %400 = vst [vmem:[%s366 + $0x80] sm:$0xff] %v399
              %v401 = vld [vmem:[%s365 + $0x88] sm:$0xff]
              %402 = vst [vmem:[%s366 + $0x88] sm:$0xff] %v401
              %v403 = vld [vmem:[%s365 + $0x90] sm:$0xff]
              %404 = vst [vmem:[%s366 + $0x90] sm:$0xff] %v403
              %v405 = vld [vmem:[%s365 + $0x98] sm:$0xff]
              %406 = vst [vmem:[%s366 + $0x98] sm:$0xff] %v405
              %v407 = vld [vmem:[%s365 + $0xa0] sm:$0xff]
              %408 = vst [vmem:[%s366 + $0xa0] sm:$0xff] %v407
              %v409 = vld [vmem:[%s365 + $0xa8] sm:$0xff]
              %410 = vst [vmem:[%s366 + $0xa8] sm:$0xff] %v409
              %v411 = vld [vmem:[%s365 + $0xb0] sm:$0xff]
              %412 = vst [vmem:[%s366 + $0xb0] sm:$0xff] %v411
              %v413 = vld [vmem:[%s365 + $0xb8] sm:$0xff]
              %414 = vst [vmem:[%s366 + $0xb8] sm:$0xff] %v413
              %v415 = vld [vmem:[%s365 + $0xc0] sm:$0xff]
              %416 = vst [vmem:[%s366 + $0xc0] sm:$0xff] %v415
              %v417 = vld [vmem:[%s365 + $0xc8] sm:$0xff]
              %418 = vst [vmem:[%s366 + $0xc8] sm:$0xff] %v417
              %v419 = vld [vmem:[%s365 + $0xd0] sm:$0xff]
              %420 = vst [vmem:[%s366 + $0xd0] sm:$0xff] %v419
              %v421 = vld [vmem:[%s365 + $0xd8] sm:$0xff]
              %422 = vst [vmem:[%s366 + $0xd8] sm:$0xff] %v421
              %v423 = vld [vmem:[%s365 + $0xe0] sm:$0xff]
              %424 = vst [vmem:[%s366 + $0xe0] sm:$0xff] %v423
              %v425 = vld [vmem:[%s365 + $0xe8] sm:$0xff]
              %426 = vst [vmem:[%s366 + $0xe8] sm:$0xff] %v425
              %v427 = vld [vmem:[%s365 + $0xf0] sm:$0xff]
              %428 = vst [vmem:[%s366 + $0xf0] sm:$0xff] %v427
              %v429 = vld [vmem:[%s365 + $0xf8] sm:$0xff]
              %430 = vst [vmem:[%s366 + $0xf8] sm:$0xff] %v429
              %v431 = vld [vmem:[%s365 + $0x100] sm:$0xff]
              %432 = vst [vmem:[%s366 + $0x100] sm:$0xff] %v431
              %v433 = vld [vmem:[%s365 + $0x108] sm:$0xff]
              %434 = vst [vmem:[%s366 + $0x108] sm:$0xff] %v433
              %v435 = vld [vmem:[%s365 + $0x110] sm:$0xff]
              %436 = vst [vmem:[%s366 + $0x110] sm:$0xff] %v435
              %v437 = vld [vmem:[%s365 + $0x118] sm:$0xff]
              %438 = vst [vmem:[%s366 + $0x118] sm:$0xff] %v437
              %v439 = vld [vmem:[%s365 + $0x120] sm:$0xff]
              %440 = vst [vmem:[%s366 + $0x120] sm:$0xff] %v439
              %v441 = vld [vmem:[%s365 + $0x128] sm:$0xff]
              %442 = vst [vmem:[%s366 + $0x128] sm:$0xff] %v441
              %v443 = vld [vmem:[%s365 + $0x130] sm:$0xff]
              %444 = vst [vmem:[%s366 + $0x130] sm:$0xff] %v443
              %v445 = vld [vmem:[%s365 + $0x138] sm:$0xff]
              %446 = vst [vmem:[%s366 + $0x138] sm:$0xff] %v445
              %v447 = vld [vmem:[%s365 + $0x140] sm:$0xff]
              %448 = vst [vmem:[%s366 + $0x140] sm:$0xff] %v447
              %v449 = vld [vmem:[%s365 + $0x148] sm:$0xff]
              %450 = vst [vmem:[%s366 + $0x148] sm:$0xff] %v449
              %v451 = vld [vmem:[%s365 + $0x150] sm:$0xff]
              %452 = vst [vmem:[%s366 + $0x150] sm:$0xff] %v451
              %v453 = vld [vmem:[%s365 + $0x158] sm:$0xff]
              %454 = vst [vmem:[%s366 + $0x158] sm:$0xff] %v453
              %v455 = vld [vmem:[%s365 + $0x160] sm:$0xff]
              %456 = vst [vmem:[%s366 + $0x160] sm:$0xff] %v455
              %v457 = vld [vmem:[%s365 + $0x168] sm:$0xff]
              %458 = vst [vmem:[%s366 + $0x168] sm:$0xff] %v457
              %v459 = vld [vmem:[%s365 + $0x170] sm:$0xff]
              %460 = vst [vmem:[%s366 + $0x170] sm:$0xff] %v459
              %v461 = vld [vmem:[%s365 + $0x178] sm:$0xff]
              %462 = vst [vmem:[%s366 + $0x178] sm:$0xff] %v461
              %v463 = vld [vmem:[%s365 + $0x180] sm:$0xff]
              %464 = vst [vmem:[%s366 + $0x180] sm:$0xff] %v463
              %v465 = vld [vmem:[%s365 + $0x188] sm:$0xff]
              %466 = vst [vmem:[%s366 + $0x188] sm:$0xff] %v465
              %v467 = vld [vmem:[%s365 + $0x190] sm:$0xff]
              %468 = vst [vmem:[%s366 + $0x190] sm:$0xff] %v467
              %v469 = vld [vmem:[%s365 + $0x198] sm:$0xff]
              %470 = vst [vmem:[%s366 + $0x198] sm:$0xff] %v469
              %v471 = vld [vmem:[%s365 + $0x1a0] sm:$0xff]
              %472 = vst [vmem:[%s366 + $0x1a0] sm:$0xff] %v471
              %v473 = vld [vmem:[%s365 + $0x1a8] sm:$0xff]
              %474 = vst [vmem:[%s366 + $0x1a8] sm:$0xff] %v473
              %v475 = vld [vmem:[%s365 + $0x1b0] sm:$0xff]
              %476 = vst [vmem:[%s366 + $0x1b0] sm:$0xff] %v475
              %v477 = vld [vmem:[%s365 + $0x1b8] sm:$0xff]
              %478 = vst [vmem:[%s366 + $0x1b8] sm:$0xff] %v477
              %v479 = vld [vmem:[%s365 + $0x1c0] sm:$0xff]
              %480 = vst [vmem:[%s366 + $0x1c0] sm:$0xff] %v479
              %v481 = vld [vmem:[%s365 + $0x1c8] sm:$0xff]
              %482 = vst [vmem:[%s366 + $0x1c8] sm:$0xff] %v481
              %v483 = vld [vmem:[%s365 + $0x1d0] sm:$0xff]
              %484 = vst [vmem:[%s366 + $0x1d0] sm:$0xff] %v483
              %v485 = vld [vmem:[%s365 + $0x1d8] sm:$0xff]
              %486 = vst [vmem:[%s366 + $0x1d8] sm:$0xff] %v485
              %v487 = vld [vmem:[%s365 + $0x1e0] sm:$0xff]
              %488 = vst [vmem:[%s366 + $0x1e0] sm:$0xff] %v487
              %v489 = vld [vmem:[%s365 + $0x1e8] sm:$0xff]
              %490 = vst [vmem:[%s366 + $0x1e8] sm:$0xff] %v489
              %v491 = vld [vmem:[%s365 + $0x1f0] sm:$0xff]
              %492 = vst [vmem:[%s366 + $0x1f0] sm:$0xff] %v491
              %v493 = vld [vmem:[%s365 + $0x1f8] sm:$0xff]
              %494 = vst [vmem:[%s366 + $0x1f8] sm:$0xff] %v493
            $region64: #{ggru_forward.1} parent=58 // loop_footer
              %s364 = sadd.s32 1, %s360
            $region65: #{ggru_forward.1} parent=58 // loop_footer_branch
              %359 = sbr.rel target = $region61
            $region66: #{ggru_forward.1} parent=58 // loop_exit
              _
          $region59: #{ggru_forward.1} parent=43 // pred_fallthru
            _
          %p495 = pneg %p355
          // Predicated region
          $region67: #{ggru_forward.1} parent=43 // pred_check
            _
          $region68: #{ggru_forward.1} parent=43 // pred_check_branch
            %497 = sbr.rel (%p355) target = $region70
          $region69: #{ggru_forward.1} parent=43 // pred_region
            %s498 = sand.u32 512, 7
          $region70: #{ggru_forward.1} parent=43 // pred_fallthru
            _
        $region44: #{ggru_forward.1} parent=39 // pred_fallthru
          _
        // Predicated region
        $region45: #{ggru_forward.1} parent=39 // pred_check
          %p340 = pneg %p336
        $region46: #{ggru_forward.1} parent=39 // pred_check_branch
          %342 = sbr.rel (%p340) target = $region48
        $region47: #{ggru_forward.1} parent=39 // pred_region
          %s343 = sshllo.u32 0, 512
          loop: start=0, step=1, limit=1
          $region49: #{ggru_forward.1} parent=47 // loop_pre_header
            _
          $region50: #{ggru_forward.1} parent=47 // loop_header
            %s345 = sphi 0, %s349
            %p346 = scmp.ge.s32.totalorder %s345, 1
            %s350 = sphi %s4, %s4
            %s351 = sphi [#allocation2], [#allocation2]
          $region51: #{ggru_forward.1} parent=47 // loop_header_branch
            %348 = sbr.rel (%p346) target = $region55
          $region52: #{ggru_forward.1} parent=47 // loop_body
            %v352 = vld [vmem:[%s350] sm:%s343]
            %353 = vst [vmem:[%s351] sm:%s343] %v352
          $region53: #{ggru_forward.1} parent=47 // loop_footer
            %s349 = sadd.s32 1, %s345
          $region54: #{ggru_forward.1} parent=47 // loop_footer_branch
            %344 = sbr.rel target = $region50
          $region55: #{ggru_forward.1} parent=47 // loop_exit
            _
        $region48: #{ggru_forward.1} parent=39 // pred_fallthru
          _
        // Predicated region
        $region71: #{ggru_forward.1} parent=39 // pred_check
          _
        $region72: #{ggru_forward.1} parent=39 // pred_check_branch
          %501 = sbr.rel (0) target = $region74
        $region73: #{ggru_forward.1} parent=39 // pred_region
          %502 = vsyncadd [#allocation7], 8192
        $region74: #{ggru_forward.1} parent=39 // pred_fallthru
          _
        %s503 = scalar_lea.sflag [#allocation7], 1
        %p505 = scmp.lt.u32.totalorder 512, 8
        %p506 = pneg %p505
        // Predicated region
        $region75: #{ggru_forward.1} parent=39 // pred_check
          _
        $region76: #{ggru_forward.1} parent=39 // pred_check_branch
          %508 = sbr.rel (%p505) target = $region78
        $region77: #{ggru_forward.1} parent=39 // pred_region
          %s523 = sand.u32 512, 7
          %p524 = scmp.eq.s32.totalorder %s523, 0
          // Predicated region
          $region90: #{ggru_forward.1} parent=77 // pred_check
            %p525 = pneg %p524
          $region91: #{ggru_forward.1} parent=77 // pred_check_branch
            %527 = sbr.rel (%p525) target = $region93
          $region92: #{ggru_forward.1} parent=77 // pred_region
            loop: start=0, step=1, limit=1
            $region94: #{ggru_forward.1} parent=92 // loop_pre_header
              _
            $region95: #{ggru_forward.1} parent=92 // loop_header
              %s529 = sphi 0, %s533
              %p530 = scmp.ge.s32.totalorder %s529, 1
              %s534 = sphi %s5, %s5
              %s535 = sphi [#allocation3], [#allocation3]
            $region96: #{ggru_forward.1} parent=92 // loop_header_branch
              %532 = sbr.rel (%p530) target = $region100
            $region97: #{ggru_forward.1} parent=92 // loop_body
              %v536 = vld [vmem:[%s534] sm:$0xff]
              %537 = vst [vmem:[%s535] sm:$0xff] %v536
              %v538 = vld [vmem:[%s534 + $0x8] sm:$0xff]
              %539 = vst [vmem:[%s535 + $0x8] sm:$0xff] %v538
              %v540 = vld [vmem:[%s534 + $0x10] sm:$0xff]
              %541 = vst [vmem:[%s535 + $0x10] sm:$0xff] %v540
              %v542 = vld [vmem:[%s534 + $0x18] sm:$0xff]
              %543 = vst [vmem:[%s535 + $0x18] sm:$0xff] %v542
              %v544 = vld [vmem:[%s534 + $0x20] sm:$0xff]
              %545 = vst [vmem:[%s535 + $0x20] sm:$0xff] %v544
              %v546 = vld [vmem:[%s534 + $0x28] sm:$0xff]
              %547 = vst [vmem:[%s535 + $0x28] sm:$0xff] %v546
              %v548 = vld [vmem:[%s534 + $0x30] sm:$0xff]
              %549 = vst [vmem:[%s535 + $0x30] sm:$0xff] %v548
              %v550 = vld [vmem:[%s534 + $0x38] sm:$0xff]
              %551 = vst [vmem:[%s535 + $0x38] sm:$0xff] %v550
              %v552 = vld [vmem:[%s534 + $0x40] sm:$0xff]
              %553 = vst [vmem:[%s535 + $0x40] sm:$0xff] %v552
              %v554 = vld [vmem:[%s534 + $0x48] sm:$0xff]
              %555 = vst [vmem:[%s535 + $0x48] sm:$0xff] %v554
              %v556 = vld [vmem:[%s534 + $0x50] sm:$0xff]
              %557 = vst [vmem:[%s535 + $0x50] sm:$0xff] %v556
              %v558 = vld [vmem:[%s534 + $0x58] sm:$0xff]
              %559 = vst [vmem:[%s535 + $0x58] sm:$0xff] %v558
              %v560 = vld [vmem:[%s534 + $0x60] sm:$0xff]
              %561 = vst [vmem:[%s535 + $0x60] sm:$0xff] %v560
              %v562 = vld [vmem:[%s534 + $0x68] sm:$0xff]
              %563 = vst [vmem:[%s535 + $0x68] sm:$0xff] %v562
              %v564 = vld [vmem:[%s534 + $0x70] sm:$0xff]
              %565 = vst [vmem:[%s535 + $0x70] sm:$0xff] %v564
              %v566 = vld [vmem:[%s534 + $0x78] sm:$0xff]
              %567 = vst [vmem:[%s535 + $0x78] sm:$0xff] %v566
              %v568 = vld [vmem:[%s534 + $0x80] sm:$0xff]
              %569 = vst [vmem:[%s535 + $0x80] sm:$0xff] %v568
              %v570 = vld [vmem:[%s534 + $0x88] sm:$0xff]
              %571 = vst [vmem:[%s535 + $0x88] sm:$0xff] %v570
              %v572 = vld [vmem:[%s534 + $0x90] sm:$0xff]
              %573 = vst [vmem:[%s535 + $0x90] sm:$0xff] %v572
              %v574 = vld [vmem:[%s534 + $0x98] sm:$0xff]
              %575 = vst [vmem:[%s535 + $0x98] sm:$0xff] %v574
              %v576 = vld [vmem:[%s534 + $0xa0] sm:$0xff]
              %577 = vst [vmem:[%s535 + $0xa0] sm:$0xff] %v576
              %v578 = vld [vmem:[%s534 + $0xa8] sm:$0xff]
              %579 = vst [vmem:[%s535 + $0xa8] sm:$0xff] %v578
              %v580 = vld [vmem:[%s534 + $0xb0] sm:$0xff]
              %581 = vst [vmem:[%s535 + $0xb0] sm:$0xff] %v580
              %v582 = vld [vmem:[%s534 + $0xb8] sm:$0xff]
              %583 = vst [vmem:[%s535 + $0xb8] sm:$0xff] %v582
              %v584 = vld [vmem:[%s534 + $0xc0] sm:$0xff]
              %585 = vst [vmem:[%s535 + $0xc0] sm:$0xff] %v584
              %v586 = vld [vmem:[%s534 + $0xc8] sm:$0xff]
              %587 = vst [vmem:[%s535 + $0xc8] sm:$0xff] %v586
              %v588 = vld [vmem:[%s534 + $0xd0] sm:$0xff]
              %589 = vst [vmem:[%s535 + $0xd0] sm:$0xff] %v588
              %v590 = vld [vmem:[%s534 + $0xd8] sm:$0xff]
              %591 = vst [vmem:[%s535 + $0xd8] sm:$0xff] %v590
              %v592 = vld [vmem:[%s534 + $0xe0] sm:$0xff]
              %593 = vst [vmem:[%s535 + $0xe0] sm:$0xff] %v592
              %v594 = vld [vmem:[%s534 + $0xe8] sm:$0xff]
              %595 = vst [vmem:[%s535 + $0xe8] sm:$0xff] %v594
              %v596 = vld [vmem:[%s534 + $0xf0] sm:$0xff]
              %597 = vst [vmem:[%s535 + $0xf0] sm:$0xff] %v596
              %v598 = vld [vmem:[%s534 + $0xf8] sm:$0xff]
              %599 = vst [vmem:[%s535 + $0xf8] sm:$0xff] %v598
              %v600 = vld [vmem:[%s534 + $0x100] sm:$0xff]
              %601 = vst [vmem:[%s535 + $0x100] sm:$0xff] %v600
              %v602 = vld [vmem:[%s534 + $0x108] sm:$0xff]
              %603 = vst [vmem:[%s535 + $0x108] sm:$0xff] %v602
              %v604 = vld [vmem:[%s534 + $0x110] sm:$0xff]
              %605 = vst [vmem:[%s535 + $0x110] sm:$0xff] %v604
              %v606 = vld [vmem:[%s534 + $0x118] sm:$0xff]
              %607 = vst [vmem:[%s535 + $0x118] sm:$0xff] %v606
              %v608 = vld [vmem:[%s534 + $0x120] sm:$0xff]
              %609 = vst [vmem:[%s535 + $0x120] sm:$0xff] %v608
              %v610 = vld [vmem:[%s534 + $0x128] sm:$0xff]
              %611 = vst [vmem:[%s535 + $0x128] sm:$0xff] %v610
              %v612 = vld [vmem:[%s534 + $0x130] sm:$0xff]
              %613 = vst [vmem:[%s535 + $0x130] sm:$0xff] %v612
              %v614 = vld [vmem:[%s534 + $0x138] sm:$0xff]
              %615 = vst [vmem:[%s535 + $0x138] sm:$0xff] %v614
              %v616 = vld [vmem:[%s534 + $0x140] sm:$0xff]
              %617 = vst [vmem:[%s535 + $0x140] sm:$0xff] %v616
              %v618 = vld [vmem:[%s534 + $0x148] sm:$0xff]
              %619 = vst [vmem:[%s535 + $0x148] sm:$0xff] %v618
              %v620 = vld [vmem:[%s534 + $0x150] sm:$0xff]
              %621 = vst [vmem:[%s535 + $0x150] sm:$0xff] %v620
              %v622 = vld [vmem:[%s534 + $0x158] sm:$0xff]
              %623 = vst [vmem:[%s535 + $0x158] sm:$0xff] %v622
              %v624 = vld [vmem:[%s534 + $0x160] sm:$0xff]
              %625 = vst [vmem:[%s535 + $0x160] sm:$0xff] %v624
              %v626 = vld [vmem:[%s534 + $0x168] sm:$0xff]
              %627 = vst [vmem:[%s535 + $0x168] sm:$0xff] %v626
              %v628 = vld [vmem:[%s534 + $0x170] sm:$0xff]
              %629 = vst [vmem:[%s535 + $0x170] sm:$0xff] %v628
              %v630 = vld [vmem:[%s534 + $0x178] sm:$0xff]
              %631 = vst [vmem:[%s535 + $0x178] sm:$0xff] %v630
              %v632 = vld [vmem:[%s534 + $0x180] sm:$0xff]
              %633 = vst [vmem:[%s535 + $0x180] sm:$0xff] %v632
              %v634 = vld [vmem:[%s534 + $0x188] sm:$0xff]
              %635 = vst [vmem:[%s535 + $0x188] sm:$0xff] %v634
              %v636 = vld [vmem:[%s534 + $0x190] sm:$0xff]
              %637 = vst [vmem:[%s535 + $0x190] sm:$0xff] %v636
              %v638 = vld [vmem:[%s534 + $0x198] sm:$0xff]
              %639 = vst [vmem:[%s535 + $0x198] sm:$0xff] %v638
              %v640 = vld [vmem:[%s534 + $0x1a0] sm:$0xff]
              %641 = vst [vmem:[%s535 + $0x1a0] sm:$0xff] %v640
              %v642 = vld [vmem:[%s534 + $0x1a8] sm:$0xff]
              %643 = vst [vmem:[%s535 + $0x1a8] sm:$0xff] %v642
              %v644 = vld [vmem:[%s534 + $0x1b0] sm:$0xff]
              %645 = vst [vmem:[%s535 + $0x1b0] sm:$0xff] %v644
              %v646 = vld [vmem:[%s534 + $0x1b8] sm:$0xff]
              %647 = vst [vmem:[%s535 + $0x1b8] sm:$0xff] %v646
              %v648 = vld [vmem:[%s534 + $0x1c0] sm:$0xff]
              %649 = vst [vmem:[%s535 + $0x1c0] sm:$0xff] %v648
              %v650 = vld [vmem:[%s534 + $0x1c8] sm:$0xff]
              %651 = vst [vmem:[%s535 + $0x1c8] sm:$0xff] %v650
              %v652 = vld [vmem:[%s534 + $0x1d0] sm:$0xff]
              %653 = vst [vmem:[%s535 + $0x1d0] sm:$0xff] %v652
              %v654 = vld [vmem:[%s534 + $0x1d8] sm:$0xff]
              %655 = vst [vmem:[%s535 + $0x1d8] sm:$0xff] %v654
              %v656 = vld [vmem:[%s534 + $0x1e0] sm:$0xff]
              %657 = vst [vmem:[%s535 + $0x1e0] sm:$0xff] %v656
              %v658 = vld [vmem:[%s534 + $0x1e8] sm:$0xff]
              %659 = vst [vmem:[%s535 + $0x1e8] sm:$0xff] %v658
              %v660 = vld [vmem:[%s534 + $0x1f0] sm:$0xff]
              %661 = vst [vmem:[%s535 + $0x1f0] sm:$0xff] %v660
              %v662 = vld [vmem:[%s534 + $0x1f8] sm:$0xff]
              %663 = vst [vmem:[%s535 + $0x1f8] sm:$0xff] %v662
            $region98: #{ggru_forward.1} parent=92 // loop_footer
              %s533 = sadd.s32 1, %s529
            $region99: #{ggru_forward.1} parent=92 // loop_footer_branch
              %528 = sbr.rel target = $region95
            $region100: #{ggru_forward.1} parent=92 // loop_exit
              _
          $region93: #{ggru_forward.1} parent=77 // pred_fallthru
            _
          %p664 = pneg %p524
          // Predicated region
          $region101: #{ggru_forward.1} parent=77 // pred_check
            _
          $region102: #{ggru_forward.1} parent=77 // pred_check_branch
            %666 = sbr.rel (%p524) target = $region104
          $region103: #{ggru_forward.1} parent=77 // pred_region
            %s667 = sand.u32 512, 7
          $region104: #{ggru_forward.1} parent=77 // pred_fallthru
            _
        $region78: #{ggru_forward.1} parent=39 // pred_fallthru
          _
        // Predicated region
        $region79: #{ggru_forward.1} parent=39 // pred_check
          %p509 = pneg %p505
        $region80: #{ggru_forward.1} parent=39 // pred_check_branch
          %511 = sbr.rel (%p509) target = $region82
        $region81: #{ggru_forward.1} parent=39 // pred_region
          %s512 = sshllo.u32 0, 512
          loop: start=0, step=1, limit=1
          $region83: #{ggru_forward.1} parent=81 // loop_pre_header
            _
          $region84: #{ggru_forward.1} parent=81 // loop_header
            %s514 = sphi 0, %s518
            %p515 = scmp.ge.s32.totalorder %s514, 1
            %s519 = sphi %s5, %s5
            %s520 = sphi [#allocation3], [#allocation3]
          $region85: #{ggru_forward.1} parent=81 // loop_header_branch
            %517 = sbr.rel (%p515) target = $region89
          $region86: #{ggru_forward.1} parent=81 // loop_body
            %v521 = vld [vmem:[%s519] sm:%s512]
            %522 = vst [vmem:[%s520] sm:%s512] %v521
          $region87: #{ggru_forward.1} parent=81 // loop_footer
            %s518 = sadd.s32 1, %s514
          $region88: #{ggru_forward.1} parent=81 // loop_footer_branch
            %513 = sbr.rel target = $region84
          $region89: #{ggru_forward.1} parent=81 // loop_exit
            _
        $region82: #{ggru_forward.1} parent=39 // pred_fallthru
          _
        // Predicated region
        $region105: #{ggru_forward.1} parent=39 // pred_check
          _
        $region106: #{ggru_forward.1} parent=39 // pred_check_branch
          %670 = sbr.rel (0) target = $region108
        $region107: #{ggru_forward.1} parent=39 // pred_region
          %671 = vsyncadd %s503, 8192
        $region108: #{ggru_forward.1} parent=39 // pred_fallthru
          _
        %s672 = scalar_lea.sflag [#allocation7], 2
        %p674 = scmp.lt.u32.totalorder 2, 8
        %p675 = pneg %p674
        // Predicated region
        $region109: #{ggru_forward.1} parent=39 // pred_check
          _
        $region110: #{ggru_forward.1} parent=39 // pred_check_branch
          %677 = sbr.rel (%p674) target = $region112
        $region111: #{ggru_forward.1} parent=39 // pred_region
          %s692 = sand.u32 2, 7
          %p693 = scmp.eq.s32.totalorder %s692, 0
          %p694 = pneg %p693
          // Predicated region
          $region124: #{ggru_forward.1} parent=111 // pred_check
            _
          $region125: #{ggru_forward.1} parent=111 // pred_check_branch
            %696 = sbr.rel (%p693) target = $region127
          $region126: #{ggru_forward.1} parent=111 // pred_region
            %s697 = sand.u32 2, 7
            %s698 = ssub.s32 2, %s697
            %s699 = scalar_lea.vmem %s6, %s698
            %s700 = ssub.s32 2, %s697
            %s701 = scalar_lea.vmem [#allocation4], %s700
            %s702 = sshllo.u32 0, %s697
            loop: start=0, step=1, limit=1
            $region128: #{ggru_forward.1} parent=126 // loop_pre_header
              _
            $region129: #{ggru_forward.1} parent=126 // loop_header
              %s704 = sphi 0, %s708
              %p705 = scmp.ge.s32.totalorder %s704, 1
              %s709 = sphi %s699, %s699
              %s710 = sphi %s701, %s701
            $region130: #{ggru_forward.1} parent=126 // loop_header_branch
              %707 = sbr.rel (%p705) target = $region134
            $region131: #{ggru_forward.1} parent=126 // loop_body
              %v711 = vld [vmem:[%s709] sm:%s702]
              %712 = vst [vmem:[%s710] sm:%s702] %v711
            $region132: #{ggru_forward.1} parent=126 // loop_footer
              %s708 = sadd.s32 1, %s704
            $region133: #{ggru_forward.1} parent=126 // loop_footer_branch
              %703 = sbr.rel target = $region129
            $region134: #{ggru_forward.1} parent=126 // loop_exit
              _
          $region127: #{ggru_forward.1} parent=111 // pred_fallthru
            _
        $region112: #{ggru_forward.1} parent=39 // pred_fallthru
          _
        // Predicated region
        $region113: #{ggru_forward.1} parent=39 // pred_check
          %p678 = pneg %p674
        $region114: #{ggru_forward.1} parent=39 // pred_check_branch
          %680 = sbr.rel (%p678) target = $region116
        $region115: #{ggru_forward.1} parent=39 // pred_region
          %s681 = sshllo.u32 0, 2
          loop: start=0, step=1, limit=1
          $region117: #{ggru_forward.1} parent=115 // loop_pre_header
            _
          $region118: #{ggru_forward.1} parent=115 // loop_header
            %s683 = sphi 0, %s687
            %p684 = scmp.ge.s32.totalorder %s683, 1
            %s688 = sphi %s6, %s6
            %s689 = sphi [#allocation4], [#allocation4]
          $region119: #{ggru_forward.1} parent=115 // loop_header_branch
            %686 = sbr.rel (%p684) target = $region123
          $region120: #{ggru_forward.1} parent=115 // loop_body
            %v690 = vld [vmem:[%s688] sm:%s681]
            %691 = vst [vmem:[%s689] sm:%s681] %v690
          $region121: #{ggru_forward.1} parent=115 // loop_footer
            %s687 = sadd.s32 1, %s683
          $region122: #{ggru_forward.1} parent=115 // loop_footer_branch
            %682 = sbr.rel target = $region118
          $region123: #{ggru_forward.1} parent=115 // loop_exit
            _
        $region116: #{ggru_forward.1} parent=39 // pred_fallthru
          _
        // Predicated region
        $region135: #{ggru_forward.1} parent=39 // pred_check
          _
        $region136: #{ggru_forward.1} parent=39 // pred_check_branch
          %715 = sbr.rel (0) target = $region138
        $region137: #{ggru_forward.1} parent=39 // pred_region
          %716 = vsyncadd %s672, 32
        $region138: #{ggru_forward.1} parent=39 // pred_fallthru
          _
        %s717 = scalar_lea.sflag [#allocation7], 3
        %p719 = scmp.lt.u32.totalorder 128, 8
        %p720 = pneg %p719
        // Predicated region
        $region139: #{ggru_forward.1} parent=39 // pred_check
          _
        $region140: #{ggru_forward.1} parent=39 // pred_check_branch
          %722 = sbr.rel (%p719) target = $region142
        $region141: #{ggru_forward.1} parent=39 // pred_region
          %s737 = sand.u32 128, 7
          %p738 = scmp.eq.s32.totalorder %s737, 0
          // Predicated region
          $region154: #{ggru_forward.1} parent=141 // pred_check
            %p739 = pneg %p738
          $region155: #{ggru_forward.1} parent=141 // pred_check_branch
            %741 = sbr.rel (%p739) target = $region157
          $region156: #{ggru_forward.1} parent=141 // pred_region
            loop: start=0, step=1, limit=1
            $region158: #{ggru_forward.1} parent=156 // loop_pre_header
              _
            $region159: #{ggru_forward.1} parent=156 // loop_header
              %s743 = sphi 0, %s747
              %p744 = scmp.ge.s32.totalorder %s743, 1
              %s748 = sphi %s7, %s7
              %s749 = sphi [#allocation5], [#allocation5]
            $region160: #{ggru_forward.1} parent=156 // loop_header_branch
              %746 = sbr.rel (%p744) target = $region164
            $region161: #{ggru_forward.1} parent=156 // loop_body
              %v750 = vld [vmem:[%s748] sm:$0xff]
              %751 = vst [vmem:[%s749] sm:$0xff] %v750
              %v752 = vld [vmem:[%s748 + $0x8] sm:$0xff]
              %753 = vst [vmem:[%s749 + $0x8] sm:$0xff] %v752
              %v754 = vld [vmem:[%s748 + $0x10] sm:$0xff]
              %755 = vst [vmem:[%s749 + $0x10] sm:$0xff] %v754
              %v756 = vld [vmem:[%s748 + $0x18] sm:$0xff]
              %757 = vst [vmem:[%s749 + $0x18] sm:$0xff] %v756
              %v758 = vld [vmem:[%s748 + $0x20] sm:$0xff]
              %759 = vst [vmem:[%s749 + $0x20] sm:$0xff] %v758
              %v760 = vld [vmem:[%s748 + $0x28] sm:$0xff]
              %761 = vst [vmem:[%s749 + $0x28] sm:$0xff] %v760
              %v762 = vld [vmem:[%s748 + $0x30] sm:$0xff]
              %763 = vst [vmem:[%s749 + $0x30] sm:$0xff] %v762
              %v764 = vld [vmem:[%s748 + $0x38] sm:$0xff]
              %765 = vst [vmem:[%s749 + $0x38] sm:$0xff] %v764
              %v766 = vld [vmem:[%s748 + $0x40] sm:$0xff]
              %767 = vst [vmem:[%s749 + $0x40] sm:$0xff] %v766
              %v768 = vld [vmem:[%s748 + $0x48] sm:$0xff]
              %769 = vst [vmem:[%s749 + $0x48] sm:$0xff] %v768
              %v770 = vld [vmem:[%s748 + $0x50] sm:$0xff]
              %771 = vst [vmem:[%s749 + $0x50] sm:$0xff] %v770
              %v772 = vld [vmem:[%s748 + $0x58] sm:$0xff]
              %773 = vst [vmem:[%s749 + $0x58] sm:$0xff] %v772
              %v774 = vld [vmem:[%s748 + $0x60] sm:$0xff]
              %775 = vst [vmem:[%s749 + $0x60] sm:$0xff] %v774
              %v776 = vld [vmem:[%s748 + $0x68] sm:$0xff]
              %777 = vst [vmem:[%s749 + $0x68] sm:$0xff] %v776
              %v778 = vld [vmem:[%s748 + $0x70] sm:$0xff]
              %779 = vst [vmem:[%s749 + $0x70] sm:$0xff] %v778
              %v780 = vld [vmem:[%s748 + $0x78] sm:$0xff]
              %781 = vst [vmem:[%s749 + $0x78] sm:$0xff] %v780
            $region162: #{ggru_forward.1} parent=156 // loop_footer
              %s747 = sadd.s32 1, %s743
            $region163: #{ggru_forward.1} parent=156 // loop_footer_branch
              %742 = sbr.rel target = $region159
            $region164: #{ggru_forward.1} parent=156 // loop_exit
              _
          $region157: #{ggru_forward.1} parent=141 // pred_fallthru
            _
          %p782 = pneg %p738
          // Predicated region
          $region165: #{ggru_forward.1} parent=141 // pred_check
            _
          $region166: #{ggru_forward.1} parent=141 // pred_check_branch
            %784 = sbr.rel (%p738) target = $region168
          $region167: #{ggru_forward.1} parent=141 // pred_region
            %s785 = sand.u32 128, 7
          $region168: #{ggru_forward.1} parent=141 // pred_fallthru
            _
        $region142: #{ggru_forward.1} parent=39 // pred_fallthru
          _
        // Predicated region
        $region143: #{ggru_forward.1} parent=39 // pred_check
          %p723 = pneg %p719
        $region144: #{ggru_forward.1} parent=39 // pred_check_branch
          %725 = sbr.rel (%p723) target = $region146
        $region145: #{ggru_forward.1} parent=39 // pred_region
          %s726 = sshllo.u32 0, 128
          loop: start=0, step=1, limit=1
          $region147: #{ggru_forward.1} parent=145 // loop_pre_header
            _
          $region148: #{ggru_forward.1} parent=145 // loop_header
            %s728 = sphi 0, %s732
            %p729 = scmp.ge.s32.totalorder %s728, 1
            %s733 = sphi %s7, %s7
            %s734 = sphi [#allocation5], [#allocation5]
          $region149: #{ggru_forward.1} parent=145 // loop_header_branch
            %731 = sbr.rel (%p729) target = $region153
          $region150: #{ggru_forward.1} parent=145 // loop_body
            %v735 = vld [vmem:[%s733] sm:%s726]
            %736 = vst [vmem:[%s734] sm:%s726] %v735
          $region151: #{ggru_forward.1} parent=145 // loop_footer
            %s732 = sadd.s32 1, %s728
          $region152: #{ggru_forward.1} parent=145 // loop_footer_branch
            %727 = sbr.rel target = $region148
          $region153: #{ggru_forward.1} parent=145 // loop_exit
            _
        $region146: #{ggru_forward.1} parent=39 // pred_fallthru
          _
        // Predicated region
        $region169: #{ggru_forward.1} parent=39 // pred_check
          _
        $region170: #{ggru_forward.1} parent=39 // pred_check_branch
          %788 = sbr.rel (0) target = $region172
        $region171: #{ggru_forward.1} parent=39 // pred_region
          %789 = vsyncadd %s717, 2048
        $region172: #{ggru_forward.1} parent=39 // pred_fallthru
          _
        %v790 = vld [vmem:[%s321] sm:$0xff]
        %791 = vst [vmem:[#allocation6] sm:$0xff] %v790
        %s792 = smul.u32 8, 16
        %s793 = smul.u32 %s792, 4
        %s794 = sshll.u32 %s793, 4
        %795 = dma.done [#allocation7], %s794
        %s796 = smul.u32 8, 32
        %s797 = smul.u32 %s796, 2
        %s798 = sshll.u32 %s797, 4
        %799 = dma.done %s503, %s798
        %s800 = smul.u32 1, 2
        %s801 = sshll.u32 %s800, 4
        %802 = dma.done %s672, %s801
        %s803 = smul.u32 128, 1
        %s804 = sshll.u32 %s803, 4
        %805 = dma.done %s717, %s804
      $region40: #{ggru_forward.1} parent=35 // pred_fallthru
        _
      %v806 = vld [vmem:[#allocation2] sm:$0xff]
      %v807 = vld [vmem:[#allocation2 + $0x8] sm:$0xff]
      %v808 = vld [vmem:[#allocation2 + $0x20] sm:$0xff]
      %v809 = vld [vmem:[#allocation2 + $0x28] sm:$0xff]
      %v810 = vld [vmem:[#allocation2 + $0x40] sm:$0xff]
      %v811 = vld [vmem:[#allocation2 + $0x48] sm:$0xff]
      %v812 = vld [vmem:[#allocation2 + $0x60] sm:$0xff]
      %v813 = vld [vmem:[#allocation2 + $0x68] sm:$0xff]
      %v814 = vld [vmem:[#allocation2 + $0x80] sm:$0xff]
      %v815 = vld [vmem:[#allocation2 + $0x88] sm:$0xff]
      %v816 = vld [vmem:[#allocation2 + $0xa0] sm:$0xff]
      %v817 = vld [vmem:[#allocation2 + $0xa8] sm:$0xff]
      %v818 = vld [vmem:[#allocation2 + $0xc0] sm:$0xff]
      %v819 = vld [vmem:[#allocation2 + $0xc8] sm:$0xff]
      %v820 = vld [vmem:[#allocation2 + $0xe0] sm:$0xff]
      %v821 = vld [vmem:[#allocation2 + $0xe8] sm:$0xff]
      %v822 = vld [vmem:[#allocation2 + $0x100] sm:$0xff]
      %v823 = vld [vmem:[#allocation2 + $0x108] sm:$0xff]
      %v824 = vld [vmem:[#allocation2 + $0x120] sm:$0xff]
      %v825 = vld [vmem:[#allocation2 + $0x128] sm:$0xff]
      %v826 = vld [vmem:[#allocation2 + $0x140] sm:$0xff]
      %v827 = vld [vmem:[#allocation2 + $0x148] sm:$0xff]
      %v828 = vld [vmem:[#allocation2 + $0x160] sm:$0xff]
      %v829 = vld [vmem:[#allocation2 + $0x168] sm:$0xff]
      %v830 = vld [vmem:[#allocation2 + $0x180] sm:$0xff]
      %v831 = vld [vmem:[#allocation2 + $0x188] sm:$0xff]
      %v832 = vld [vmem:[#allocation2 + $0x1a0] sm:$0xff]
      %v833 = vld [vmem:[#allocation2 + $0x1a8] sm:$0xff]
      %v834 = vld [vmem:[#allocation2 + $0x1c0] sm:$0xff]
      %v835 = vld [vmem:[#allocation2 + $0x1c8] sm:$0xff]
      %v836 = vld [vmem:[#allocation2 + $0x1e0] sm:$0xff]
      %v837 = vld [vmem:[#allocation2 + $0x1e8] sm:$0xff]
      %v838 = vld [vmem:[#allocation2 + $0x10] sm:$0xff]
      %v839 = vld [vmem:[#allocation2 + $0x18] sm:$0xff]
      %v840 = vld [vmem:[#allocation2 + $0x30] sm:$0xff]
      %v841 = vld [vmem:[#allocation2 + $0x38] sm:$0xff]
      %v842 = vld [vmem:[#allocation2 + $0x50] sm:$0xff]
      %v843 = vld [vmem:[#allocation2 + $0x58] sm:$0xff]
      %v844 = vld [vmem:[#allocation2 + $0x70] sm:$0xff]
      %v845 = vld [vmem:[#allocation2 + $0x78] sm:$0xff]
      %v846 = vld [vmem:[#allocation2 + $0x90] sm:$0xff]
      %v847 = vld [vmem:[#allocation2 + $0x98] sm:$0xff]
      %v848 = vld [vmem:[#allocation2 + $0xb0] sm:$0xff]
      %v849 = vld [vmem:[#allocation2 + $0xb8] sm:$0xff]
      %v850 = vld [vmem:[#allocation2 + $0xd0] sm:$0xff]
      %v851 = vld [vmem:[#allocation2 + $0xd8] sm:$0xff]
      %v852 = vld [vmem:[#allocation2 + $0xf0] sm:$0xff]
      %v853 = vld [vmem:[#allocation2 + $0xf8] sm:$0xff]
      %v854 = vld [vmem:[#allocation2 + $0x110] sm:$0xff]
      %v855 = vld [vmem:[#allocation2 + $0x118] sm:$0xff]
      %v856 = vld [vmem:[#allocation2 + $0x130] sm:$0xff]
      %v857 = vld [vmem:[#allocation2 + $0x138] sm:$0xff]
      %v858 = vld [vmem:[#allocation2 + $0x150] sm:$0xff]
      %v859 = vld [vmem:[#allocation2 + $0x158] sm:$0xff]
      %v860 = vld [vmem:[#allocation2 + $0x170] sm:$0xff]
      %v861 = vld [vmem:[#allocation2 + $0x178] sm:$0xff]
      %v862 = vld [vmem:[#allocation2 + $0x190] sm:$0xff]
      %v863 = vld [vmem:[#allocation2 + $0x198] sm:$0xff]
      %v864 = vld [vmem:[#allocation2 + $0x1b0] sm:$0xff]
      %v865 = vld [vmem:[#allocation2 + $0x1b8] sm:$0xff]
      %v866 = vld [vmem:[#allocation2 + $0x1d0] sm:$0xff]
      %v867 = vld [vmem:[#allocation2 + $0x1d8] sm:$0xff]
      %v868 = vld [vmem:[#allocation2 + $0x1f0] sm:$0xff]
      %v869 = vld [vmem:[#allocation2 + $0x1f8] sm:$0xff]
      %v870 = vld [vmem:[#allocation3] sm:$0xff]
      %v871 = vld [vmem:[#allocation3 + $0x10] sm:$0xff]
      %v872 = vld [vmem:[#allocation3 + $0x20] sm:$0xff]
      %v873 = vld [vmem:[#allocation3 + $0x30] sm:$0xff]
      %v874 = vld [vmem:[#allocation3 + $0x40] sm:$0xff]
      %v875 = vld [vmem:[#allocation3 + $0x50] sm:$0xff]
      %v876 = vld [vmem:[#allocation3 + $0x60] sm:$0xff]
      %v877 = vld [vmem:[#allocation3 + $0x70] sm:$0xff]
      %v878 = vld [vmem:[#allocation3 + $0x80] sm:$0xff]
      %v879 = vld [vmem:[#allocation3 + $0x90] sm:$0xff]
      %v880 = vld [vmem:[#allocation3 + $0xa0] sm:$0xff]
      %v881 = vld [vmem:[#allocation3 + $0xb0] sm:$0xff]
      %v882 = vld [vmem:[#allocation3 + $0xc0] sm:$0xff]
      %v883 = vld [vmem:[#allocation3 + $0xd0] sm:$0xff]
      %v884 = vld [vmem:[#allocation3 + $0xe0] sm:$0xff]
      %v885 = vld [vmem:[#allocation3 + $0xf0] sm:$0xff]
      %v886 = vld [vmem:[#allocation3 + $0x100] sm:$0xff]
      %v887 = vld [vmem:[#allocation3 + $0x110] sm:$0xff]
      %v888 = vld [vmem:[#allocation3 + $0x120] sm:$0xff]
      %v889 = vld [vmem:[#allocation3 + $0x130] sm:$0xff]
      %v890 = vld [vmem:[#allocation3 + $0x140] sm:$0xff]
      %v891 = vld [vmem:[#allocation3 + $0x150] sm:$0xff]
      %v892 = vld [vmem:[#allocation3 + $0x160] sm:$0xff]
      %v893 = vld [vmem:[#allocation3 + $0x170] sm:$0xff]
      %v894 = vld [vmem:[#allocation3 + $0x180] sm:$0xff]
      %v895 = vld [vmem:[#allocation3 + $0x190] sm:$0xff]
      %v896 = vld [vmem:[#allocation3 + $0x1a0] sm:$0xff]
      %v897 = vld [vmem:[#allocation3 + $0x1b0] sm:$0xff]
      %v898 = vld [vmem:[#allocation3 + $0x1c0] sm:$0xff]
      %v899 = vld [vmem:[#allocation3 + $0x1d0] sm:$0xff]
      %v900 = vld [vmem:[#allocation3 + $0x1e0] sm:$0xff]
      %v901 = vld [vmem:[#allocation3 + $0x1f0] sm:$0xff]
      %v902 = vld [vmem:[#allocation3 + $0x8] sm:$0xff]
      %v903 = vld [vmem:[#allocation3 + $0x18] sm:$0xff]
      %v904 = vld [vmem:[#allocation3 + $0x28] sm:$0xff]
      %v905 = vld [vmem:[#allocation3 + $0x38] sm:$0xff]
      %v906 = vld [vmem:[#allocation3 + $0x48] sm:$0xff]
      %v907 = vld [vmem:[#allocation3 + $0x58] sm:$0xff]
      %v908 = vld [vmem:[#allocation3 + $0x68] sm:$0xff]
      %v909 = vld [vmem:[#allocation3 + $0x78] sm:$0xff]
      %v910 = vld [vmem:[#allocation3 + $0x88] sm:$0xff]
      %v911 = vld [vmem:[#allocation3 + $0x98] sm:$0xff]
      %v912 = vld [vmem:[#allocation3 + $0xa8] sm:$0xff]
      %v913 = vld [vmem:[#allocation3 + $0xb8] sm:$0xff]
      %v914 = vld [vmem:[#allocation3 + $0xc8] sm:$0xff]
      %v915 = vld [vmem:[#allocation3 + $0xd8] sm:$0xff]
      %v916 = vld [vmem:[#allocation3 + $0xe8] sm:$0xff]
      %v917 = vld [vmem:[#allocation3 + $0xf8] sm:$0xff]
      %v918 = vld [vmem:[#allocation3 + $0x108] sm:$0xff]
      %v919 = vld [vmem:[#allocation3 + $0x118] sm:$0xff]
      %v920 = vld [vmem:[#allocation3 + $0x128] sm:$0xff]
      %v921 = vld [vmem:[#allocation3 + $0x138] sm:$0xff]
      %v922 = vld [vmem:[#allocation3 + $0x148] sm:$0xff]
      %v923 = vld [vmem:[#allocation3 + $0x158] sm:$0xff]
      %v924 = vld [vmem:[#allocation3 + $0x168] sm:$0xff]
      %v925 = vld [vmem:[#allocation3 + $0x178] sm:$0xff]
      %v926 = vld [vmem:[#allocation3 + $0x188] sm:$0xff]
      %v927 = vld [vmem:[#allocation3 + $0x198] sm:$0xff]
      %v928 = vld [vmem:[#allocation3 + $0x1a8] sm:$0xff]
      %v929 = vld [vmem:[#allocation3 + $0x1b8] sm:$0xff]
      %v930 = vld [vmem:[#allocation3 + $0x1c8] sm:$0xff]
      %v931 = vld [vmem:[#allocation3 + $0x1d8] sm:$0xff]
      %v932 = vld [vmem:[#allocation3 + $0x1e8] sm:$0xff]
      %v933 = vld [vmem:[#allocation3 + $0x1f8] sm:$0xff]
      %v934 = vld [vmem:[#allocation5] sm:$0xff]
      %v935 = vld [vmem:[#allocation5 + $0x8] sm:$0xff]
      %v936 = vld [vmem:[#allocation5 + $0x10] sm:$0xff]
      %v937 = vld [vmem:[#allocation5 + $0x18] sm:$0xff]
      %v938 = vld [vmem:[#allocation5 + $0x20] sm:$0xff]
      %v939 = vld [vmem:[#allocation5 + $0x28] sm:$0xff]
      %v940 = vld [vmem:[#allocation5 + $0x30] sm:$0xff]
      %v941 = vld [vmem:[#allocation5 + $0x38] sm:$0xff]
      %v942 = vld [vmem:[#allocation5 + $0x40] sm:$0xff]
      %v943 = vld [vmem:[#allocation5 + $0x48] sm:$0xff]
      %v944 = vld [vmem:[#allocation5 + $0x50] sm:$0xff]
      %v945 = vld [vmem:[#allocation5 + $0x58] sm:$0xff]
      %v946 = vld [vmem:[#allocation5 + $0x60] sm:$0xff]
      %v947 = vld [vmem:[#allocation5 + $0x68] sm:$0xff]
      %v948 = vld [vmem:[#allocation5 + $0x70] sm:$0xff]
      %v949 = vld [vmem:[#allocation5 + $0x78] sm:$0xff]
      %v950 = vld [vmem:[#allocation4] sm:$0x1]
      %v952 = vlaneseq
      %v953 = vshrl.u32 %v952, 7
      %v954 = vsub.s32 0, %v953
      %v955 = vrot.slane %v950, %v954
      %v957 = vld [vmem:[#allocation4 + $0x1] sm:$0x1]
      %v959 = vlaneseq
      %v960 = vshrl.u32 %v959, 7
      %v961 = vsub.s32 0, %v960
      %v962 = vrot.slane %v957, %v961
      %v964 = vld [vmem:[#allocation6] sm:$0xff]
      %v965 = vld [vmem:[%s296] sm:$0xff]
      %v966 = vld [vmem:[%s296 + $0x8] sm:$0xff]
      %967 = vmatprep.subr.mxu0 %v807
      %968 = vmatpush1.msra.mxu0 %v806
      %969 = vmatprep.subr.mxu0 %v809
      %970 = vmatpush1.msra.mxu0 %v808
      %971 = vmatprep.subr.mxu0 %v811
      %972 = vmatpush1.msra.mxu0 %v810
      %973 = vmatprep.subr.mxu0 %v813
      %974 = vmatpush1.msra.mxu0 %v812
      %975 = vmatprep.subr.mxu0 %v815
      %976 = vmatpush1.msra.mxu0 %v814
      %977 = vmatprep.subr.mxu0 %v817
      %978 = vmatpush1.msra.mxu0 %v816
      %979 = vmatprep.subr.mxu0 %v819
      %980 = vmatpush1.msra.mxu0 %v818
      %981 = vmatprep.subr.mxu0 %v821
      %982 = vmatpush1.msra.mxu0 %v820
      %983 = vmatprep.subr.mxu0 %v823
      %984 = vmatpush1.msra.mxu0 %v822
      %985 = vmatprep.subr.mxu0 %v825
      %986 = vmatpush1.msra.mxu0 %v824
      %987 = vmatprep.subr.mxu0 %v827
      %988 = vmatpush1.msra.mxu0 %v826
      %989 = vmatprep.subr.mxu0 %v829
      %990 = vmatpush1.msra.mxu0 %v828
      %991 = vmatprep.subr.mxu0 %v831
      %992 = vmatpush1.msra.mxu0 %v830
      %993 = vmatprep.subr.mxu0 %v833
      %994 = vmatpush1.msra.mxu0 %v832
      %995 = vmatprep.subr.mxu0 %v835
      %996 = vmatpush1.msra.mxu0 %v834
      %997 = vmatprep.subr.mxu0 %v837
      %998 = vmatpush1.msra.mxu0 %v836
      %999 = vmatprep.subr.mxu0 0.0
      %1000 = vmatpush1.msra.mxu0 0.0
      %1001 = vmatprep.subr.mxu0 0.0
      %1002 = vmatpush1.msra.mxu0 0.0
      %1003 = vmatprep.subr.mxu0 0.0
      %1004 = vmatpush1.msra.mxu0 0.0
      %1005 = vmatprep.subr.mxu0 0.0
      %1006 = vmatpush1.msra.mxu0 0.0
      %1007 = vmatprep.subr.mxu0 0.0
      %1008 = vmatpush1.msra.mxu0 0.0
      %1009 = vmatprep.subr.mxu0 0.0
      %1010 = vmatpush1.msra.mxu0 0.0
      %1011 = vmatprep.subr.mxu0 0.0
      %1012 = vmatpush1.msra.mxu0 0.0
      %1013 = vmatprep.subr.mxu0 0.0
      %1014 = vmatpush1.msra.mxu0 0.0
      %1015 = vmatprep.subr.mxu0 0.0
      %1016 = vmatpush1.msra.mxu0 0.0
      %1017 = vmatprep.subr.mxu0 0.0
      %1018 = vmatpush1.msra.mxu0 0.0
      %1019 = vmatprep.subr.mxu0 0.0
      %1020 = vmatpush1.msra.mxu0 0.0
      %1021 = vmatprep.subr.mxu0 0.0
      %1022 = vmatpush1.msra.mxu0 0.0
      %1023 = vmatprep.subr.mxu0 0.0
      %1024 = vmatpush1.msra.mxu0 0.0
      %1025 = vmatprep.subr.mxu0 0.0
      %1026 = vmatpush1.msra.mxu0 0.0
      %1027 = vmatprep.subr.mxu0 0.0
      %1028 = vmatpush1.msra.mxu0 0.0
      %1029 = vmatprep.subr.mxu0 0.0
      %1030 = vmatpush1.msra.mxu0 0.0
      %1031 = vmatprep.mubr.f32.mxu0 0.0
      %1032 = vmatmul.mubr.f32.gmra.mrb[0].mxu0 %v964
      %v1033 = vpop.f32.mrb[0].mxu0
      %v1034 = vadd.f32 0.0, %v1033
      %v1035 = vpop.f32.mrb[0].mxu0
      %v1036 = vadd.f32 0.0, %v1035
      %1037 = vdwg.mxu0
      %v1038 = vadd.f32 %v965, %v1034
      %v1039 = vadd.f32 %v966, %v1036
      %v1040 = vxor.u32 %v1038, 2147483648
      %v1041 = vxor.u32 %v1039, 2147483648
      %v1042 = vmul.f32 %v1040, 1.442695
      %v1043 = vpow.pop %v1042
      %v1044 = vmul.f32 %v1041, 1.442695
      %v1045 = vpow.pop %v1044
      %v1046 = vadd.f32 %v1043, 1.0
      %v1047 = vadd.f32 %v1045, 1.0
      %v1048 = vrcp.pop %v1046
      %v1049 = vmul.f32 1.0, %v1048
      %v1050 = vrcp.pop %v1047
      %v1051 = vmul.f32 1.0, %v1050
      %1052 = vmatprep.subr.mxu0 0.0
      %1053 = vmatpush1.msra.mxu0 %v870
      %1054 = vmatprep.subr.mxu0 0.0
      %1055 = vmatpush1.msra.mxu0 %v871
      %1056 = vmatprep.subr.mxu0 0.0
      %1057 = vmatpush1.msra.mxu0 %v872
      %1058 = vmatprep.subr.mxu0 0.0
      %1059 = vmatpush1.msra.mxu0 %v873
      %1060 = vmatprep.subr.mxu0 0.0
      %1061 = vmatpush1.msra.mxu0 %v874
      %1062 = vmatprep.subr.mxu0 0.0
      %1063 = vmatpush1.msra.mxu0 %v875
      %1064 = vmatprep.subr.mxu0 0.0
      %1065 = vmatpush1.msra.mxu0 %v876
      %1066 = vmatprep.subr.mxu0 0.0
      %1067 = vmatpush1.msra.mxu0 %v877
      %1068 = vmatprep.subr.mxu0 0.0
      %1069 = vmatpush1.msra.mxu0 %v878
      %1070 = vmatprep.subr.mxu0 0.0
      %1071 = vmatpush1.msra.mxu0 %v879
      %1072 = vmatprep.subr.mxu0 0.0
      %1073 = vmatpush1.msra.mxu0 %v880
      %1074 = vmatprep.subr.mxu0 0.0
      %1075 = vmatpush1.msra.mxu0 %v881
      %1076 = vmatprep.subr.mxu0 0.0
      %1077 = vmatpush1.msra.mxu0 %v882
      %1078 = vmatprep.subr.mxu0 0.0
      %1079 = vmatpush1.msra.mxu0 %v883
      %1080 = vmatprep.subr.mxu0 0.0
      %1081 = vmatpush1.msra.mxu0 %v884
      %1082 = vmatprep.subr.mxu0 0.0
      %1083 = vmatpush1.msra.mxu0 %v885
      %1084 = vmatprep.subr.mxu0 0.0
      %1085 = vmatpush1.msra.mxu0 %v886
      %1086 = vmatprep.subr.mxu0 0.0
      %1087 = vmatpush1.msra.mxu0 %v887
      %1088 = vmatprep.subr.mxu0 0.0
      %1089 = vmatpush1.msra.mxu0 %v888
      %1090 = vmatprep.subr.mxu0 0.0
      %1091 = vmatpush1.msra.mxu0 %v889
      %1092 = vmatprep.subr.mxu0 0.0
      %1093 = vmatpush1.msra.mxu0 %v890
      %1094 = vmatprep.subr.mxu0 0.0
      %1095 = vmatpush1.msra.mxu0 %v891
      %1096 = vmatprep.subr.mxu0 0.0
      %1097 = vmatpush1.msra.mxu0 %v892
      %1098 = vmatprep.subr.mxu0 0.0
      %1099 = vmatpush1.msra.mxu0 %v893
      %1100 = vmatprep.subr.mxu0 0.0
      %1101 = vmatpush1.msra.mxu0 %v894
      %1102 = vmatprep.subr.mxu0 0.0
      %1103 = vmatpush1.msra.mxu0 %v895
      %1104 = vmatprep.subr.mxu0 0.0
      %1105 = vmatpush1.msra.mxu0 %v896
      %1106 = vmatprep.subr.mxu0 0.0
      %1107 = vmatpush1.msra.mxu0 %v897
      %1108 = vmatprep.subr.mxu0 0.0
      %1109 = vmatpush1.msra.mxu0 %v898
      %1110 = vmatprep.subr.mxu0 0.0
      %1111 = vmatpush1.msra.mxu0 %v899
      %1112 = vmatprep.subr.mxu0 0.0
      %1113 = vmatpush1.msra.mxu0 %v900
      %1114 = vmatprep.subr.mxu0 0.0
      %1115 = vmatpush1.msra.mxu0 %v901
      %1116 = vmatprep.mubr.f32.mxu0 %v1051
      %1117 = vmatmul.mubr.f32.gmra.mrb[0].mxu0 %v1049
      %v1118 = vpop.f32.mrb[0].mxu0
      %v1119 = vadd.f32 %v955, %v1118
      %v1120 = vpop.f32.mrb[0].mxu0
      %1121 = vdwg.mxu0
      %v1122 = vxor.u32 %v1119, 2147483648
      %v1123 = vmul.f32 %v1122, 1.442695
      %v1124 = vpow.pop %v1123
      %v1125 = vadd.f32 %v1124, 1.0
      %v1126 = vrcp.pop %v1125
      %v1127 = vmul.f32 1.0, %v1126
      %v1128 = vsub.f32 %v1049, %v1051
      %v1129 = vmul.f32 %v1127, %v1128
      %v1130 = vadd.f32 %v1051, %v1129
      %v1131 = vld [vmem:[%s307] sm:$0xff]
      %v1132 = vld [vmem:[%s307 + $0x8] sm:$0xff]
      %1133 = vmatprep.subr.mxu0 %v839
      %1134 = vmatpush1.msra.mxu0 %v838
      %1135 = vmatprep.subr.mxu0 %v841
      %1136 = vmatpush1.msra.mxu0 %v840
      %1137 = vmatprep.subr.mxu0 %v843
      %1138 = vmatpush1.msra.mxu0 %v842
      %1139 = vmatprep.subr.mxu0 %v845
      %1140 = vmatpush1.msra.mxu0 %v844
      %1141 = vmatprep.subr.mxu0 %v847
      %1142 = vmatpush1.msra.mxu0 %v846
      %1143 = vmatprep.subr.mxu0 %v849
      %1144 = vmatpush1.msra.mxu0 %v848
      %1145 = vmatprep.subr.mxu0 %v851
      %1146 = vmatpush1.msra.mxu0 %v850
      %1147 = vmatprep.subr.mxu0 %v853
      %1148 = vmatpush1.msra.mxu0 %v852
      %1149 = vmatprep.subr.mxu0 %v855
      %1150 = vmatpush1.msra.mxu0 %v854
      %1151 = vmatprep.subr.mxu0 %v857
      %1152 = vmatpush1.msra.mxu0 %v856
      %1153 = vmatprep.subr.mxu0 %v859
      %1154 = vmatpush1.msra.mxu0 %v858
      %1155 = vmatprep.subr.mxu0 %v861
      %1156 = vmatpush1.msra.mxu0 %v860
      %1157 = vmatprep.subr.mxu0 %v863
      %1158 = vmatpush1.msra.mxu0 %v862
      %1159 = vmatprep.subr.mxu0 %v865
      %1160 = vmatpush1.msra.mxu0 %v864
      %1161 = vmatprep.subr.mxu0 %v867
      %1162 = vmatpush1.msra.mxu0 %v866
      %1163 = vmatprep.subr.mxu0 %v869
      %1164 = vmatpush1.msra.mxu0 %v868
      %1165 = vmatprep.subr.mxu0 0.0
      %1166 = vmatpush1.msra.mxu0 0.0
      %1167 = vmatprep.subr.mxu0 0.0
      %1168 = vmatpush1.msra.mxu0 0.0
      %1169 = vmatprep.subr.mxu0 0.0
      %1170 = vmatpush1.msra.mxu0 0.0
      %1171 = vmatprep.subr.mxu0 0.0
      %1172 = vmatpush1.msra.mxu0 0.0
      %1173 = vmatprep.subr.mxu0 0.0
      %1174 = vmatpush1.msra.mxu0 0.0
      %1175 = vmatprep.subr.mxu0 0.0
      %1176 = vmatpush1.msra.mxu0 0.0
      %1177 = vmatprep.subr.mxu0 0.0
      %1178 = vmatpush1.msra.mxu0 0.0
      %1179 = vmatprep.subr.mxu0 0.0
      %1180 = vmatpush1.msra.mxu0 0.0
      %1181 = vmatprep.subr.mxu0 0.0
      %1182 = vmatpush1.msra.mxu0 0.0
      %1183 = vmatprep.subr.mxu0 0.0
      %1184 = vmatpush1.msra.mxu0 0.0
      %1185 = vmatprep.subr.mxu0 0.0
      %1186 = vmatpush1.msra.mxu0 0.0
      %1187 = vmatprep.subr.mxu0 0.0
      %1188 = vmatpush1.msra.mxu0 0.0
      %1189 = vmatprep.subr.mxu0 0.0
      %1190 = vmatpush1.msra.mxu0 0.0
      %1191 = vmatprep.subr.mxu0 0.0
      %1192 = vmatpush1.msra.mxu0 0.0
      %1193 = vmatprep.subr.mxu0 0.0
      %1194 = vmatpush1.msra.mxu0 0.0
      %1195 = vmatprep.subr.mxu0 0.0
      %1196 = vmatpush1.msra.mxu0 0.0
      %1197 = vmatprep.mubr.f32.mxu0 0.0
      %1198 = vmatmul.mubr.f32.gmra.mrb[0].mxu0 %v964
      %v1199 = vpop.f32.mrb[0].mxu0
      %v1200 = vadd.f32 0.0, %v1199
      %v1201 = vpop.f32.mrb[0].mxu0
      %v1202 = vadd.f32 0.0, %v1201
      %1203 = vdwg.mxu0
      %v1204 = vadd.f32 %v1131, %v1200
      %v1205 = vadd.f32 %v1132, %v1202
      %v1206 = vxor.u32 %v1204, 2147483648
      %v1207 = vxor.u32 %v1205, 2147483648
      %v1208 = vmul.f32 %v1206, 1.442695
      %v1209 = vpow.pop %v1208
      %v1210 = vmul.f32 %v1207, 1.442695
      %v1211 = vpow.pop %v1210
      %v1212 = vadd.f32 %v1209, 1.0
      %v1213 = vadd.f32 %v1211, 1.0
      %v1214 = vrcp.pop %v1212
      %v1215 = vmul.f32 1.0, %v1214
      %v1216 = vrcp.pop %v1213
      %v1217 = vmul.f32 1.0, %v1216
      %1218 = vmatprep.subr.mxu0 0.0
      %1219 = vmatpush1.msra.mxu0 %v902
      %1220 = vmatprep.subr.mxu0 0.0
      %1221 = vmatpush1.msra.mxu0 %v903
      %1222 = vmatprep.subr.mxu0 0.0
      %1223 = vmatpush1.msra.mxu0 %v904
      %1224 = vmatprep.subr.mxu0 0.0
      %1225 = vmatpush1.msra.mxu0 %v905
      %1226 = vmatprep.subr.mxu0 0.0
      %1227 = vmatpush1.msra.mxu0 %v906
      %1228 = vmatprep.subr.mxu0 0.0
      %1229 = vmatpush1.msra.mxu0 %v907
      %1230 = vmatprep.subr.mxu0 0.0
      %1231 = vmatpush1.msra.mxu0 %v908
      %1232 = vmatprep.subr.mxu0 0.0
      %1233 = vmatpush1.msra.mxu0 %v909
      %1234 = vmatprep.subr.mxu0 0.0
      %1235 = vmatpush1.msra.mxu0 %v910
      %1236 = vmatprep.subr.mxu0 0.0
      %1237 = vmatpush1.msra.mxu0 %v911
      %1238 = vmatprep.subr.mxu0 0.0
      %1239 = vmatpush1.msra.mxu0 %v912
      %1240 = vmatprep.subr.mxu0 0.0
      %1241 = vmatpush1.msra.mxu0 %v913
      %1242 = vmatprep.subr.mxu0 0.0
      %1243 = vmatpush1.msra.mxu0 %v914
      %1244 = vmatprep.subr.mxu0 0.0
      %1245 = vmatpush1.msra.mxu0 %v915
      %1246 = vmatprep.subr.mxu0 0.0
      %1247 = vmatpush1.msra.mxu0 %v916
      %1248 = vmatprep.subr.mxu0 0.0
      %1249 = vmatpush1.msra.mxu0 %v917
      %1250 = vmatprep.subr.mxu0 0.0
      %1251 = vmatpush1.msra.mxu0 %v918
      %1252 = vmatprep.subr.mxu0 0.0
      %1253 = vmatpush1.msra.mxu0 %v919
      %1254 = vmatprep.subr.mxu0 0.0
      %1255 = vmatpush1.msra.mxu0 %v920
      %1256 = vmatprep.subr.mxu0 0.0
      %1257 = vmatpush1.msra.mxu0 %v921
      %1258 = vmatprep.subr.mxu0 0.0
      %1259 = vmatpush1.msra.mxu0 %v922
      %1260 = vmatprep.subr.mxu0 0.0
      %1261 = vmatpush1.msra.mxu0 %v923
      %1262 = vmatprep.subr.mxu0 0.0
      %1263 = vmatpush1.msra.mxu0 %v924
      %1264 = vmatprep.subr.mxu0 0.0
      %1265 = vmatpush1.msra.mxu0 %v925
      %1266 = vmatprep.subr.mxu0 0.0
      %1267 = vmatpush1.msra.mxu0 %v926
      %1268 = vmatprep.subr.mxu0 0.0
      %1269 = vmatpush1.msra.mxu0 %v927
      %1270 = vmatprep.subr.mxu0 0.0
      %1271 = vmatpush1.msra.mxu0 %v928
      %1272 = vmatprep.subr.mxu0 0.0
      %1273 = vmatpush1.msra.mxu0 %v929
      %1274 = vmatprep.subr.mxu0 0.0
      %1275 = vmatpush1.msra.mxu0 %v930
      %1276 = vmatprep.subr.mxu0 0.0
      %1277 = vmatpush1.msra.mxu0 %v931
      %1278 = vmatprep.subr.mxu0 0.0
      %1279 = vmatpush1.msra.mxu0 %v932
      %1280 = vmatprep.subr.mxu0 0.0
      %1281 = vmatpush1.msra.mxu0 %v933
      %1282 = vmatprep.mubr.f32.mxu0 %v1217
      %1283 = vmatmul.mubr.f32.gmra.mrb[0].mxu0 %v1215
      %v1284 = vpop.f32.mrb[0].mxu0
      %v1285 = vadd.f32 %v962, %v1284
      %v1286 = vpop.f32.mrb[0].mxu0
      %1287 = vdwg.mxu0
      %v1288 = vxor.u32 %v1285, 2147483648
      %v1289 = vmul.f32 %v1288, 1.442695
      %v1290 = vpow.pop %v1289
      %v1291 = vadd.f32 %v1290, 1.0
      %v1292 = vrcp.pop %v1291
      %v1293 = vmul.f32 1.0, %v1292
      %v1294 = vsub.f32 %v1215, %v1217
      %v1295 = vmul.f32 %v1293, %v1294
      %v1296 = vadd.f32 %v1217, %v1295
      %v1297 = vmul.f32 %v1296, %v964
      %v1298 = vld [vmem:[%s316] sm:$0xff]
      %1299 = vmatprep.subr.mxu0 0.0
      %1300 = vmatpush1.msra.mxu0 %v934
      %1301 = vmatprep.subr.mxu0 0.0
      %1302 = vmatpush1.msra.mxu0 %v935
      %1303 = vmatprep.subr.mxu0 0.0
      %1304 = vmatpush1.msra.mxu0 %v936
      %1305 = vmatprep.subr.mxu0 0.0
      %1306 = vmatpush1.msra.mxu0 %v937
      %1307 = vmatprep.subr.mxu0 0.0
      %1308 = vmatpush1.msra.mxu0 %v938
      %1309 = vmatprep.subr.mxu0 0.0
      %1310 = vmatpush1.msra.mxu0 %v939
      %1311 = vmatprep.subr.mxu0 0.0
      %1312 = vmatpush1.msra.mxu0 %v940
      %1313 = vmatprep.subr.mxu0 0.0
      %1314 = vmatpush1.msra.mxu0 %v941
      %1315 = vmatprep.subr.mxu0 0.0
      %1316 = vmatpush1.msra.mxu0 %v942
      %1317 = vmatprep.subr.mxu0 0.0
      %1318 = vmatpush1.msra.mxu0 %v943
      %1319 = vmatprep.subr.mxu0 0.0
      %1320 = vmatpush1.msra.mxu0 %v944
      %1321 = vmatprep.subr.mxu0 0.0
      %1322 = vmatpush1.msra.mxu0 %v945
      %1323 = vmatprep.subr.mxu0 0.0
      %1324 = vmatpush1.msra.mxu0 %v946
      %1325 = vmatprep.subr.mxu0 0.0
      %1326 = vmatpush1.msra.mxu0 %v947
      %1327 = vmatprep.subr.mxu0 0.0
      %1328 = vmatpush1.msra.mxu0 %v948
      %1329 = vmatprep.subr.mxu0 0.0
      %1330 = vmatpush1.msra.mxu0 %v949
      %1331 = vmatprep.subr.mxu0 0.0
      %1332 = vmatpush1.msra.mxu0 0.0
      %1333 = vmatprep.subr.mxu0 0.0
      %1334 = vmatpush1.msra.mxu0 0.0
      %1335 = vmatprep.subr.mxu0 0.0
      %1336 = vmatpush1.msra.mxu0 0.0
      %1337 = vmatprep.subr.mxu0 0.0
      %1338 = vmatpush1.msra.mxu0 0.0
      %1339 = vmatprep.subr.mxu0 0.0
      %1340 = vmatpush1.msra.mxu0 0.0
      %1341 = vmatprep.subr.mxu0 0.0
      %1342 = vmatpush1.msra.mxu0 0.0
      %1343 = vmatprep.subr.mxu0 0.0
      %1344 = vmatpush1.msra.mxu0 0.0
      %1345 = vmatprep.subr.mxu0 0.0
      %1346 = vmatpush1.msra.mxu0 0.0
      %1347 = vmatprep.subr.mxu0 0.0
      %1348 = vmatpush1.msra.mxu0 0.0
      %1349 = vmatprep.subr.mxu0 0.0
      %1350 = vmatpush1.msra.mxu0 0.0
      %1351 = vmatprep.subr.mxu0 0.0
      %1352 = vmatpush1.msra.mxu0 0.0
      %1353 = vmatprep.subr.mxu0 0.0
      %1354 = vmatpush1.msra.mxu0 0.0
      %1355 = vmatprep.subr.mxu0 0.0
      %1356 = vmatpush1.msra.mxu0 0.0
      %1357 = vmatprep.subr.mxu0 0.0
      %1358 = vmatpush1.msra.mxu0 0.0
      %1359 = vmatprep.subr.mxu0 0.0
      %1360 = vmatpush1.msra.mxu0 0.0
      %1361 = vmatprep.subr.mxu0 0.0
      %1362 = vmatpush1.msra.mxu0 0.0
      %1363 = vmatprep.mubr.f32.mxu0 0.0
      %1364 = vmatmul.mubr.f32.gmra.mrb[0].mxu0 %v1297
      %v1365 = vpop.f32.mrb[0].mxu0
      %v1366 = vadd.f32 0.0, %v1365
      %v1367 = vpop.f32.mrb[0].mxu0
      %1368 = vdwg.mxu0
      %v1369 = vadd.f32 %v1298, %v1366
      %v1370 = vtanh.pop %v1369
      %v1371 = vsub.f32 %v964, %v1370
      %v1372 = vmul.f32 %v1130, %v1371
      %v1373 = vadd.f32 %v1370, %v1372
      %1374 = vst [vmem:[%s329] sm:$0xff] %v1373
      %s1375 = scalar_lea.vmem %s296, 16
      %v1376 = vld [vmem:[%s1375] sm:$0xff]
      %v1377 = vld [vmem:[%s1375 + $0x8] sm:$0xff]
      %1378 = vmatprep.subr.mxu0 %v807
      %1379 = vmatpush1.msra.mxu0 %v806
      %1380 = vmatprep.subr.mxu0 %v809
      %1381 = vmatpush1.msra.mxu0 %v808
      %1382 = vmatprep.subr.mxu0 %v811
      %1383 = vmatpush1.msra.mxu0 %v810
      %1384 = vmatprep.subr.mxu0 %v813
      %1385 = vmatpush1.msra.mxu0 %v812
      %1386 = vmatprep.subr.mxu0 %v815
      %1387 = vmatpush1.msra.mxu0 %v814
      %1388 = vmatprep.subr.mxu0 %v817
      %1389 = vmatpush1.msra.mxu0 %v816
      %1390 = vmatprep.subr.mxu0 %v819
      %1391 = vmatpush1.msra.mxu0 %v818
      %1392 = vmatprep.subr.mxu0 %v821
      %1393 = vmatpush1.msra.mxu0 %v820
      %1394 = vmatprep.subr.mxu0 %v823
      %1395 = vmatpush1.msra.mxu0 %v822
      %1396 = vmatprep.subr.mxu0 %v825
      %1397 = vmatpush1.msra.mxu0 %v824
      %1398 = vmatprep.subr.mxu0 %v827
      %1399 = vmatpush1.msra.mxu0 %v826
      %1400 = vmatprep.subr.mxu0 %v829
      %1401 = vmatpush1.msra.mxu0 %v828
      %1402 = vmatprep.subr.mxu0 %v831
      %1403 = vmatpush1.msra.mxu0 %v830
      %1404 = vmatprep.subr.mxu0 %v833
      %1405 = vmatpush1.msra.mxu0 %v832
      %1406 = vmatprep.subr.mxu0 %v835
      %1407 = vmatpush1.msra.mxu0 %v834
      %1408 = vmatprep.subr.mxu0 %v837
      %1409 = vmatpush1.msra.mxu0 %v836
      %1410 = vmatprep.subr.mxu0 0.0
      %1411 = vmatpush1.msra.mxu0 0.0
      %1412 = vmatprep.subr.mxu0 0.0
      %1413 = vmatpush1.msra.mxu0 0.0
      %1414 = vmatprep.subr.mxu0 0.0
      %1415 = vmatpush1.msra.mxu0 0.0
      %1416 = vmatprep.subr.mxu0 0.0
      %1417 = vmatpush1.msra.mxu0 0.0
      %1418 = vmatprep.subr.mxu0 0.0
      %1419 = vmatpush1.msra.mxu0 0.0
      %1420 = vmatprep.subr.mxu0 0.0
      %1421 = vmatpush1.msra.mxu0 0.0
      %1422 = vmatprep.subr.mxu0 0.0
      %1423 = vmatpush1.msra.mxu0 0.0
      %1424 = vmatprep.subr.mxu0 0.0
      %1425 = vmatpush1.msra.mxu0 0.0
      %1426 = vmatprep.subr.mxu0 0.0
      %1427 = vmatpush1.msra.mxu0 0.0
      %1428 = vmatprep.subr.mxu0 0.0
      %1429 = vmatpush1.msra.mxu0 0.0
      %1430 = vmatprep.subr.mxu0 0.0
      %1431 = vmatpush1.msra.mxu0 0.0
      %1432 = vmatprep.subr.mxu0 0.0
      %1433 = vmatpush1.msra.mxu0 0.0
      %1434 = vmatprep.subr.mxu0 0.0
      %1435 = vmatpush1.msra.mxu0 0.0
      %1436 = vmatprep.subr.mxu0 0.0
      %1437 = vmatpush1.msra.mxu0 0.0
      %1438 = vmatprep.subr.mxu0 0.0
      %1439 = vmatpush1.msra.mxu0 0.0
      %1440 = vmatprep.subr.mxu0 0.0
      %1441 = vmatpush1.msra.mxu0 0.0
      %1442 = vmatprep.mubr.f32.mxu0 0.0
      %1443 = vmatmul.mubr.f32.gmra.mrb[0].mxu0 %v1373
      %v1444 = vpop.f32.mrb[0].mxu0
      %v1445 = vadd.f32 0.0, %v1444
      %v1446 = vpop.f32.mrb[0].mxu0
      %v1447 = vadd.f32 0.0, %v1446
      %1448 = vdwg.mxu0
      %v1449 = vadd.f32 %v1376, %v1445
      %v1450 = vadd.f32 %v1377, %v1447
      %v1451 = vxor.u32 %v1449, 2147483648
      %v1452 = vxor.u32 %v1450, 2147483648
      %v1453 = vmul.f32 %v1451, 1.442695
      %v1454 = vpow.pop %v1453
      %v1455 = vmul.f32 %v1452, 1.442695
      %v1456 = vpow.pop %v1455
      %v1457 = vadd.f32 %v1454, 1.0
      %v1458 = vadd.f32 %v1456, 1.0
      %v1459 = vrcp.pop %v1457
      %v1460 = vmul.f32 1.0, %v1459
      %v1461 = vrcp.pop %v1458
      %v1462 = vmul.f32 1.0, %v1461
      %1463 = vmatprep.subr.mxu0 0.0
      %1464 = vmatpush1.msra.mxu0 %v870
      %1465 = vmatprep.subr.mxu0 0.0
      %1466 = vmatpush1.msra.mxu0 %v871
      %1467 = vmatprep.subr.mxu0 0.0
      %1468 = vmatpush1.msra.mxu0 %v872
      %1469 = vmatprep.subr.mxu0 0.0
      %1470 = vmatpush1.msra.mxu0 %v873
      %1471 = vmatprep.subr.mxu0 0.0
      %1472 = vmatpush1.msra.mxu0 %v874
      %1473 = vmatprep.subr.mxu0 0.0
      %1474 = vmatpush1.msra.mxu0 %v875
      %1475 = vmatprep.subr.mxu0 0.0
      %1476 = vmatpush1.msra.mxu0 %v876
      %1477 = vmatprep.subr.mxu0 0.0
      %1478 = vmatpush1.msra.mxu0 %v877
      %1479 = vmatprep.subr.mxu0 0.0
      %1480 = vmatpush1.msra.mxu0 %v878
      %1481 = vmatprep.subr.mxu0 0.0
      %1482 = vmatpush1.msra.mxu0 %v879
      %1483 = vmatprep.subr.mxu0 0.0
      %1484 = vmatpush1.msra.mxu0 %v880
      %1485 = vmatprep.subr.mxu0 0.0
      %1486 = vmatpush1.msra.mxu0 %v881
      %1487 = vmatprep.subr.mxu0 0.0
      %1488 = vmatpush1.msra.mxu0 %v882
      %1489 = vmatprep.subr.mxu0 0.0
      %1490 = vmatpush1.msra.mxu0 %v883
      %1491 = vmatprep.subr.mxu0 0.0
      %1492 = vmatpush1.msra.mxu0 %v884
      %1493 = vmatprep.subr.mxu0 0.0
      %1494 = vmatpush1.msra.mxu0 %v885
      %1495 = vmatprep.subr.mxu0 0.0
      %1496 = vmatpush1.msra.mxu0 %v886
      %1497 = vmatprep.subr.mxu0 0.0
      %1498 = vmatpush1.msra.mxu0 %v887
      %1499 = vmatprep.subr.mxu0 0.0
      %1500 = vmatpush1.msra.mxu0 %v888
      %1501 = vmatprep.subr.mxu0 0.0
      %1502 = vmatpush1.msra.mxu0 %v889
      %1503 = vmatprep.subr.mxu0 0.0
      %1504 = vmatpush1.msra.mxu0 %v890
      %1505 = vmatprep.subr.mxu0 0.0
      %1506 = vmatpush1.msra.mxu0 %v891
      %1507 = vmatprep.subr.mxu0 0.0
      %1508 = vmatpush1.msra.mxu0 %v892
      %1509 = vmatprep.subr.mxu0 0.0
      %1510 = vmatpush1.msra.mxu0 %v893
      %1511 = vmatprep.subr.mxu0 0.0
      %1512 = vmatpush1.msra.mxu0 %v894
      %1513 = vmatprep.subr.mxu0 0.0
      %1514 = vmatpush1.msra.mxu0 %v895
      %1515 = vmatprep.subr.mxu0 0.0
      %1516 = vmatpush1.msra.mxu0 %v896
      %1517 = vmatprep.subr.mxu0 0.0
      %1518 = vmatpush1.msra.mxu0 %v897
      %1519 = vmatprep.subr.mxu0 0.0
      %1520 = vmatpush1.msra.mxu0 %v898
      %1521 = vmatprep.subr.mxu0 0.0
      %1522 = vmatpush1.msra.mxu0 %v899
      %1523 = vmatprep.subr.mxu0 0.0
      %1524 = vmatpush1.msra.mxu0 %v900
      %1525 = vmatprep.subr.mxu0 0.0
      %1526 = vmatpush1.msra.mxu0 %v901
      %1527 = vmatprep.mubr.f32.mxu0 %v1462
      %1528 = vmatmul.mubr.f32.gmra.mrb[0].mxu0 %v1460
      %v1529 = vpop.f32.mrb[0].mxu0
      %v1530 = vadd.f32 %v955, %v1529
      %v1531 = vpop.f32.mrb[0].mxu0
      %1532 = vdwg.mxu0
      %v1533 = vxor.u32 %v1530, 2147483648
      %v1534 = vmul.f32 %v1533, 1.442695
      %v1535 = vpow.pop %v1534
      %v1536 = vadd.f32 %v1535, 1.0
      %v1537 = vrcp.pop %v1536
      %v1538 = vmul.f32 1.0, %v1537
      %v1539 = vsub.f32 %v1460, %v1462
      %v1540 = vmul.f32 %v1538, %v1539
      %v1541 = vadd.f32 %v1462, %v1540
      %s1542 = scalar_lea.vmem %s307, 16
      %v1543 = vld [vmem:[%s1542] sm:$0xff]
      %v1544 = vld [vmem:[%s1542 + $0x8] sm:$0xff]
      %1545 = vmatprep.subr.mxu0 %v839
      %1546 = vmatpush1.msra.mxu0 %v838
      %1547 = vmatprep.subr.mxu0 %v841
      %1548 = vmatpush1.msra.mxu0 %v840
      %1549 = vmatprep.subr.mxu0 %v843
      %1550 = vmatpush1.msra.mxu0 %v842
      %1551 = vmatprep.subr.mxu0 %v845
      %1552 = vmatpush1.msra.mxu0 %v844
      %1553 = vmatprep.subr.mxu0 %v847
      %1554 = vmatpush1.msra.mxu0 %v846
      %1555 = vmatprep.subr.mxu0 %v849
      %1556 = vmatpush1.msra.mxu0 %v848
      %1557 = vmatprep.subr.mxu0 %v851
      %1558 = vmatpush1.msra.mxu0 %v850
      %1559 = vmatprep.subr.mxu0 %v853
      %1560 = vmatpush1.msra.mxu0 %v852
      %1561 = vmatprep.subr.mxu0 %v855
      %1562 = vmatpush1.msra.mxu0 %v854
      %1563 = vmatprep.subr.mxu0 %v857
      %1564 = vmatpush1.msra.mxu0 %v856
      %1565 = vmatprep.subr.mxu0 %v859
      %1566 = vmatpush1.msra.mxu0 %v858
      %1567 = vmatprep.subr.mxu0 %v861
      %1568 = vmatpush1.msra.mxu0 %v860
      %1569 = vmatprep.subr.mxu0 %v863
      %1570 = vmatpush1.msra.mxu0 %v862
      %1571 = vmatprep.subr.mxu0 %v865
      %1572 = vmatpush1.msra.mxu0 %v864
      %1573 = vmatprep.subr.mxu0 %v867
      %1574 = vmatpush1.msra.mxu0 %v866
      %1575 = vmatprep.subr.mxu0 %v869
      %1576 = vmatpush1.msra.mxu0 %v868
      %1577 = vmatprep.subr.mxu0 0.0
      %1578 = vmatpush1.msra.mxu0 0.0
      %1579 = vmatprep.subr.mxu0 0.0
      %1580 = vmatpush1.msra.mxu0 0.0
      %1581 = vmatprep.subr.mxu0 0.0
      %1582 = vmatpush1.msra.mxu0 0.0
      %1583 = vmatprep.subr.mxu0 0.0
      %1584 = vmatpush1.msra.mxu0 0.0
      %1585 = vmatprep.subr.mxu0 0.0
      %1586 = vmatpush1.msra.mxu0 0.0
      %1587 = vmatprep.subr.mxu0 0.0
      %1588 = vmatpush1.msra.mxu0 0.0
      %1589 = vmatprep.subr.mxu0 0.0
      %1590 = vmatpush1.msra.mxu0 0.0
      %1591 = vmatprep.subr.mxu0 0.0
      %1592 = vmatpush1.msra.mxu0 0.0
      %1593 = vmatprep.subr.mxu0 0.0
      %1594 = vmatpush1.msra.mxu0 0.0
      %1595 = vmatprep.subr.mxu0 0.0
      %1596 = vmatpush1.msra.mxu0 0.0
      %1597 = vmatprep.subr.mxu0 0.0
      %1598 = vmatpush1.msra.mxu0 0.0
      %1599 = vmatprep.subr.mxu0 0.0
      %1600 = vmatpush1.msra.mxu0 0.0
      %1601 = vmatprep.subr.mxu0 0.0
      %1602 = vmatpush1.msra.mxu0 0.0
      %1603 = vmatprep.subr.mxu0 0.0
      %1604 = vmatpush1.msra.mxu0 0.0
      %1605 = vmatprep.subr.mxu0 0.0
      %1606 = vmatpush1.msra.mxu0 0.0
      %1607 = vmatprep.subr.mxu0 0.0
      %1608 = vmatpush1.msra.mxu0 0.0
      %1609 = vmatprep.mubr.f32.mxu0 0.0
      %1610 = vmatmul.mubr.f32.gmra.mrb[0].mxu0 %v1373
      %v1611 = vpop.f32.mrb[0].mxu0
      %v1612 = vadd.f32 0.0, %v1611
      %v1613 = vpop.f32.mrb[0].mxu0
      %v1614 = vadd.f32 0.0, %v1613
      %1615 = vdwg.mxu0
      %v1616 = vadd.f32 %v1543, %v1612
      %v1617 = vadd.f32 %v1544, %v1614
      %v1618 = vxor.u32 %v1616, 2147483648
      %v1619 = vxor.u32 %v1617, 2147483648
      %v1620 = vmul.f32 %v1618, 1.442695
      %v1621 = vpow.pop %v1620
      %v1622 = vmul.f32 %v1619, 1.442695
      %v1623 = vpow.pop %v1622
      %v1624 = vadd.f32 %v1621, 1.0
      %v1625 = vadd.f32 %v1623, 1.0
      %v1626 = vrcp.pop %v1624
      %v1627 = vmul.f32 1.0, %v1626
      %v1628 = vrcp.pop %v1625
      %v1629 = vmul.f32 1.0, %v1628
      %1630 = vmatprep.subr.mxu0 0.0
      %1631 = vmatpush1.msra.mxu0 %v902
      %1632 = vmatprep.subr.mxu0 0.0
      %1633 = vmatpush1.msra.mxu0 %v903
      %1634 = vmatprep.subr.mxu0 0.0
      %1635 = vmatpush1.msra.mxu0 %v904
      %1636 = vmatprep.subr.mxu0 0.0
      %1637 = vmatpush1.msra.mxu0 %v905
      %1638 = vmatprep.subr.mxu0 0.0
      %1639 = vmatpush1.msra.mxu0 %v906
      %1640 = vmatprep.subr.mxu0 0.0
      %1641 = vmatpush1.msra.mxu0 %v907
      %1642 = vmatprep.subr.mxu0 0.0
      %1643 = vmatpush1.msra.mxu0 %v908
      %1644 = vmatprep.subr.mxu0 0.0
      %1645 = vmatpush1.msra.mxu0 %v909
      %1646 = vmatprep.subr.mxu0 0.0
      %1647 = vmatpush1.msra.mxu0 %v910
      %1648 = vmatprep.subr.mxu0 0.0
      %1649 = vmatpush1.msra.mxu0 %v911
      %1650 = vmatprep.subr.mxu0 0.0
      %1651 = vmatpush1.msra.mxu0 %v912
      %1652 = vmatprep.subr.mxu0 0.0
      %1653 = vmatpush1.msra.mxu0 %v913
      %1654 = vmatprep.subr.mxu0 0.0
      %1655 = vmatpush1.msra.mxu0 %v914
      %1656 = vmatprep.subr.mxu0 0.0
      %1657 = vmatpush1.msra.mxu0 %v915
      %1658 = vmatprep.subr.mxu0 0.0
      %1659 = vmatpush1.msra.mxu0 %v916
      %1660 = vmatprep.subr.mxu0 0.0
      %1661 = vmatpush1.msra.mxu0 %v917
      %1662 = vmatprep.subr.mxu0 0.0
      %1663 = vmatpush1.msra.mxu0 %v918
      %1664 = vmatprep.subr.mxu0 0.0
      %1665 = vmatpush1.msra.mxu0 %v919
      %1666 = vmatprep.subr.mxu0 0.0
      %1667 = vmatpush1.msra.mxu0 %v920
      %1668 = vmatprep.subr.mxu0 0.0
      %1669 = vmatpush1.msra.mxu0 %v921
      %1670 = vmatprep.subr.mxu0 0.0
      %1671 = vmatpush1.msra.mxu0 %v922
      %1672 = vmatprep.subr.mxu0 0.0
      %1673 = vmatpush1.msra.mxu0 %v923
      %1674 = vmatprep.subr.mxu0 0.0
      %1675 = vmatpush1.msra.mxu0 %v924
      %1676 = vmatprep.subr.mxu0 0.0
      %1677 = vmatpush1.msra.mxu0 %v925
      %1678 = vmatprep.subr.mxu0 0.0
      %1679 = vmatpush1.msra.mxu0 %v926
      %1680 = vmatprep.subr.mxu0 0.0
      %1681 = vmatpush1.msra.mxu0 %v927
      %1682 = vmatprep.subr.mxu0 0.0
      %1683 = vmatpush1.msra.mxu0 %v928
      %1684 = vmatprep.subr.mxu0 0.0
      %1685 = vmatpush1.msra.mxu0 %v929
      %1686 = vmatprep.subr.mxu0 0.0
      %1687 = vmatpush1.msra.mxu0 %v930
      %1688 = vmatprep.subr.mxu0 0.0
      %1689 = vmatpush1.msra.mxu0 %v931
      %1690 = vmatprep.subr.mxu0 0.0
      %1691 = vmatpush1.msra.mxu0 %v932
      %1692 = vmatprep.subr.mxu0 0.0
      %1693 = vmatpush1.msra.mxu0 %v933
      %1694 = vmatprep.mubr.f32.mxu0 %v1629
      %1695 = vmatmul.mubr.f32.gmra.mrb[0].mxu0 %v1627
      %v1696 = vpop.f32.mrb[0].mxu0
      %v1697 = vadd.f32 %v962, %v1696
      %v1698 = vpop.f32.mrb[0].mxu0
      %1699 = vdwg.mxu0
      %v1700 = vxor.u32 %v1697, 2147483648
      %v1701 = vmul.f32 %v1700, 1.442695
      %v1702 = vpow.pop %v1701
      %v1703 = vadd.f32 %v1702, 1.0
      %v1704 = vrcp.pop %v1703
      %v1705 = vmul.f32 1.0, %v1704
      %v1706 = vsub.f32 %v1627, %v1629
      %v1707 = vmul.f32 %v1705, %v1706
      %v1708 = vadd.f32 %v1629, %v1707
      %v1709 = vmul.f32 %v1708, %v1373
      %s1710 = scalar_lea.vmem %s316, 8
      %v1711 = vld [vmem:[%s1710] sm:$0xff]
      %1712 = vmatprep.subr.mxu0 0.0
      %1713 = vmatpush1.msra.mxu0 %v934
      %1714 = vmatprep.subr.mxu0 0.0
      %1715 = vmatpush1.msra.mxu0 %v935
      %1716 = vmatprep.subr.mxu0 0.0
      %1717 = vmatpush1.msra.mxu0 %v936
      %1718 = vmatprep.subr.mxu0 0.0
      %1719 = vmatpush1.msra.mxu0 %v937
      %1720 = vmatprep.subr.mxu0 0.0
      %1721 = vmatpush1.msra.mxu0 %v938
      %1722 = vmatprep.subr.mxu0 0.0
      %1723 = vmatpush1.msra.mxu0 %v939
      %1724 = vmatprep.subr.mxu0 0.0
      %1725 = vmatpush1.msra.mxu0 %v940
      %1726 = vmatprep.subr.mxu0 0.0
      %1727 = vmatpush1.msra.mxu0 %v941
      %1728 = vmatprep.subr.mxu0 0.0
      %1729 = vmatpush1.msra.mxu0 %v942
      %1730 = vmatprep.subr.mxu0 0.0
      %1731 = vmatpush1.msra.mxu0 %v943
      %1732 = vmatprep.subr.mxu0 0.0
      %1733 = vmatpush1.msra.mxu0 %v944
      %1734 = vmatprep.subr.mxu0 0.0
      %1735 = vmatpush1.msra.mxu0 %v945
      %1736 = vmatprep.subr.mxu0 0.0
      %1737 = vmatpush1.msra.mxu0 %v946
      %1738 = vmatprep.subr.mxu0 0.0
      %1739 = vmatpush1.msra.mxu0 %v947
      %1740 = vmatprep.subr.mxu0 0.0
      %1741 = vmatpush1.msra.mxu0 %v948
      %1742 = vmatprep.subr.mxu0 0.0
      %1743 = vmatpush1.msra.mxu0 %v949
      %1744 = vmatprep.subr.mxu0 0.0
      %1745 = vmatpush1.msra.mxu0 0.0
      %1746 = vmatprep.subr.mxu0 0.0
      %1747 = vmatpush1.msra.mxu0 0.0
      %1748 = vmatprep.subr.mxu0 0.0
      %1749 = vmatpush1.msra.mxu0 0.0
      %1750 = vmatprep.subr.mxu0 0.0
      %1751 = vmatpush1.msra.mxu0 0.0
      %1752 = vmatprep.subr.mxu0 0.0
      %1753 = vmatpush1.msra.mxu0 0.0
      %1754 = vmatprep.subr.mxu0 0.0
      %1755 = vmatpush1.msra.mxu0 0.0
      %1756 = vmatprep.subr.mxu0 0.0
      %1757 = vmatpush1.msra.mxu0 0.0
      %1758 = vmatprep.subr.mxu0 0.0
      %1759 = vmatpush1.msra.mxu0 0.0
      %1760 = vmatprep.subr.mxu0 0.0
      %1761 = vmatpush1.msra.mxu0 0.0
      %1762 = vmatprep.subr.mxu0 0.0
      %1763 = vmatpush1.msra.mxu0 0.0
      %1764 = vmatprep.subr.mxu0 0.0
      %1765 = vmatpush1.msra.mxu0 0.0
      %1766 = vmatprep.subr.mxu0 0.0
      %1767 = vmatpush1.msra.mxu0 0.0
      %1768 = vmatprep.subr.mxu0 0.0
      %1769 = vmatpush1.msra.mxu0 0.0
      %1770 = vmatprep.subr.mxu0 0.0
      %1771 = vmatpush1.msra.mxu0 0.0
      %1772 = vmatprep.subr.mxu0 0.0
      %1773 = vmatpush1.msra.mxu0 0.0
      %1774 = vmatprep.subr.mxu0 0.0
      %1775 = vmatpush1.msra.mxu0 0.0
      %1776 = vmatprep.mubr.f32.mxu0 0.0
      %1777 = vmatmul.mubr.f32.gmra.mrb[0].mxu0 %v1709
      %v1778 = vpop.f32.mrb[0].mxu0
      %v1779 = vadd.f32 0.0, %v1778
      %v1780 = vpop.f32.mrb[0].mxu0
      %1781 = vdwg.mxu0
      %v1782 = vadd.f32 %v1711, %v1779
      %v1783 = vtanh.pop %v1782
      %v1784 = vsub.f32 %v1373, %v1783
      %v1785 = vmul.f32 %v1541, %v1784
      %v1786 = vadd.f32 %v1783, %v1785
      %s1787 = scalar_lea.vmem %s329, 8
      %1788 = vst [vmem:[%s1787] sm:$0xff] %v1786
      %s1789 = scalar_lea.vmem %s296, 32
      %v1790 = vld [vmem:[%s1789] sm:$0xff]
      %v1791 = vld [vmem:[%s1789 + $0x8] sm:$0xff]
      %1792 = vmatprep.subr.mxu0 %v807
      %1793 = vmatpush1.msra.mxu0 %v806
      %1794 = vmatprep.subr.mxu0 %v809
      %1795 = vmatpush1.msra.mxu0 %v808
      %1796 = vmatprep.subr.mxu0 %v811
      %1797 = vmatpush1.msra.mxu0 %v810
      %1798 = vmatprep.subr.mxu0 %v813
      %1799 = vmatpush1.msra.mxu0 %v812
      %1800 = vmatprep.subr.mxu0 %v815
      %1801 = vmatpush1.msra.mxu0 %v814
      %1802 = vmatprep.subr.mxu0 %v817
      %1803 = vmatpush1.msra.mxu0 %v816
      %1804 = vmatprep.subr.mxu0 %v819
      %1805 = vmatpush1.msra.mxu0 %v818
      %1806 = vmatprep.subr.mxu0 %v821
      %1807 = vmatpush1.msra.mxu0 %v820
      %1808 = vmatprep.subr.mxu0 %v823
      %1809 = vmatpush1.msra.mxu0 %v822
      %1810 = vmatprep.subr.mxu0 %v825
      %1811 = vmatpush1.msra.mxu0 %v824
      %1812 = vmatprep.subr.mxu0 %v827
      %1813 = vmatpush1.msra.mxu0 %v826
      %1814 = vmatprep.subr.mxu0 %v829
      %1815 = vmatpush1.msra.mxu0 %v828
      %1816 = vmatprep.subr.mxu0 %v831
      %1817 = vmatpush1.msra.mxu0 %v830
      %1818 = vmatprep.subr.mxu0 %v833
      %1819 = vmatpush1.msra.mxu0 %v832
      %1820 = vmatprep.subr.mxu0 %v835
      %1821 = vmatpush1.msra.mxu0 %v834
      %1822 = vmatprep.subr.mxu0 %v837
      %1823 = vmatpush1.msra.mxu0 %v836
      %1824 = vmatprep.subr.mxu0 0.0
      %1825 = vmatpush1.msra.mxu0 0.0
      %1826 = vmatprep.subr.mxu0 0.0
      %1827 = vmatpush1.msra.mxu0 0.0
      %1828 = vmatprep.subr.mxu0 0.0
      %1829 = vmatpush1.msra.mxu0 0.0
      %1830 = vmatprep.subr.mxu0 0.0
      %1831 = vmatpush1.msra.mxu0 0.0
      %1832 = vmatprep.subr.mxu0 0.0
      %1833 = vmatpush1.msra.mxu0 0.0
      %1834 = vmatprep.subr.mxu0 0.0
      %1835 = vmatpush1.msra.mxu0 0.0
      %1836 = vmatprep.subr.mxu0 0.0
      %1837 = vmatpush1.msra.mxu0 0.0
      %1838 = vmatprep.subr.mxu0 0.0
      %1839 = vmatpush1.msra.mxu0 0.0
      %1840 = vmatprep.subr.mxu0 0.0
      %1841 = vmatpush1.msra.mxu0 0.0
      %1842 = vmatprep.subr.mxu0 0.0
      %1843 = vmatpush1.msra.mxu0 0.0
      %1844 = vmatprep.subr.mxu0 0.0
      %1845 = vmatpush1.msra.mxu0 0.0
      %1846 = vmatprep.subr.mxu0 0.0
      %1847 = vmatpush1.msra.mxu0 0.0
      %1848 = vmatprep.subr.mxu0 0.0
      %1849 = vmatpush1.msra.mxu0 0.0
      %1850 = vmatprep.subr.mxu0 0.0
      %1851 = vmatpush1.msra.mxu0 0.0
      %1852 = vmatprep.subr.mxu0 0.0
      %1853 = vmatpush1.msra.mxu0 0.0
      %1854 = vmatprep.subr.mxu0 0.0
      %1855 = vmatpush1.msra.mxu0 0.0
      %1856 = vmatprep.mubr.f32.mxu0 0.0
      %1857 = vmatmul.mubr.f32.gmra.mrb[0].mxu0 %v1786
      %v1858 = vpop.f32.mrb[0].mxu0
      %v1859 = vadd.f32 0.0, %v1858
      %v1860 = vpop.f32.mrb[0].mxu0
      %v1861 = vadd.f32 0.0, %v1860
      %1862 = vdwg.mxu0
      %v1863 = vadd.f32 %v1790, %v1859
      %v1864 = vadd.f32 %v1791, %v1861
      %v1865 = vxor.u32 %v1863, 2147483648
      %v1866 = vxor.u32 %v1864, 2147483648
      %v1867 = vmul.f32 %v1865, 1.442695
      %v1868 = vpow.pop %v1867
      %v1869 = vmul.f32 %v1866, 1.442695
      %v1870 = vpow.pop %v1869
      %v1871 = vadd.f32 %v1868, 1.0
      %v1872 = vadd.f32 %v1870, 1.0
      %v1873 = vrcp.pop %v1871
      %v1874 = vmul.f32 1.0, %v1873
      %v1875 = vrcp.pop %v1872
      %v1876 = vmul.f32 1.0, %v1875
      %1877 = vmatprep.subr.mxu0 0.0
      %1878 = vmatpush1.msra.mxu0 %v870
      %1879 = vmatprep.subr.mxu0 0.0
      %1880 = vmatpush1.msra.mxu0 %v871
      %1881 = vmatprep.subr.mxu0 0.0
      %1882 = vmatpush1.msra.mxu0 %v872
      %1883 = vmatprep.subr.mxu0 0.0
      %1884 = vmatpush1.msra.mxu0 %v873
      %1885 = vmatprep.subr.mxu0 0.0
      %1886 = vmatpush1.msra.mxu0 %v874
      %1887 = vmatprep.subr.mxu0 0.0
      %1888 = vmatpush1.msra.mxu0 %v875
      %1889 = vmatprep.subr.mxu0 0.0
      %1890 = vmatpush1.msra.mxu0 %v876
      %1891 = vmatprep.subr.mxu0 0.0
      %1892 = vmatpush1.msra.mxu0 %v877
      %1893 = vmatprep.subr.mxu0 0.0
      %1894 = vmatpush1.msra.mxu0 %v878
      %1895 = vmatprep.subr.mxu0 0.0
      %1896 = vmatpush1.msra.mxu0 %v879
      %1897 = vmatprep.subr.mxu0 0.0
      %1898 = vmatpush1.msra.mxu0 %v880
      %1899 = vmatprep.subr.mxu0 0.0
      %1900 = vmatpush1.msra.mxu0 %v881
      %1901 = vmatprep.subr.mxu0 0.0
      %1902 = vmatpush1.msra.mxu0 %v882
      %1903 = vmatprep.subr.mxu0 0.0
      %1904 = vmatpush1.msra.mxu0 %v883
      %1905 = vmatprep.subr.mxu0 0.0
      %1906 = vmatpush1.msra.mxu0 %v884
      %1907 = vmatprep.subr.mxu0 0.0
      %1908 = vmatpush1.msra.mxu0 %v885
      %1909 = vmatprep.subr.mxu0 0.0
      %1910 = vmatpush1.msra.mxu0 %v886
      %1911 = vmatprep.subr.mxu0 0.0
      %1912 = vmatpush1.msra.mxu0 %v887
      %1913 = vmatprep.subr.mxu0 0.0
      %1914 = vmatpush1.msra.mxu0 %v888
      %1915 = vmatprep.subr.mxu0 0.0
      %1916 = vmatpush1.msra.mxu0 %v889
      %1917 = vmatprep.subr.mxu0 0.0
      %1918 = vmatpush1.msra.mxu0 %v890
      %1919 = vmatprep.subr.mxu0 0.0
      %1920 = vmatpush1.msra.mxu0 %v891
      %1921 = vmatprep.subr.mxu0 0.0
      %1922 = vmatpush1.msra.mxu0 %v892
      %1923 = vmatprep.subr.mxu0 0.0
      %1924 = vmatpush1.msra.mxu0 %v893
      %1925 = vmatprep.subr.mxu0 0.0
      %1926 = vmatpush1.msra.mxu0 %v894
      %1927 = vmatprep.subr.mxu0 0.0
      %1928 = vmatpush1.msra.mxu0 %v895
      %1929 = vmatprep.subr.mxu0 0.0
      %1930 = vmatpush1.msra.mxu0 %v896
      %1931 = vmatprep.subr.mxu0 0.0
      %1932 = vmatpush1.msra.mxu0 %v897
      %1933 = vmatprep.subr.mxu0 0.0
      %1934 = vmatpush1.msra.mxu0 %v898
      %1935 = vmatprep.subr.mxu0 0.0
      %1936 = vmatpush1.msra.mxu0 %v899
      %1937 = vmatprep.subr.mxu0 0.0
      %1938 = vmatpush1.msra.mxu0 %v900
      %1939 = vmatprep.subr.mxu0 0.0
      %1940 = vmatpush1.msra.mxu0 %v901
      %1941 = vmatprep.mubr.f32.mxu0 %v1876
      %1942 = vmatmul.mubr.f32.gmra.mrb[0].mxu0 %v1874
      %v1943 = vpop.f32.mrb[0].mxu0
      %v1944 = vadd.f32 %v955, %v1943
      %v1945 = vpop.f32.mrb[0].mxu0
      %1946 = vdwg.mxu0
      %v1947 = vxor.u32 %v1944, 2147483648
      %v1948 = vmul.f32 %v1947, 1.442695
      %v1949 = vpow.pop %v1948
      %v1950 = vadd.f32 %v1949, 1.0
      %v1951 = vrcp.pop %v1950
      %v1952 = vmul.f32 1.0, %v1951
      %v1953 = vsub.f32 %v1874, %v1876
      %v1954 = vmul.f32 %v1952, %v1953
      %v1955 = vadd.f32 %v1876, %v1954
      %s1956 = scalar_lea.vmem %s307, 32
      %v1957 = vld [vmem:[%s1956] sm:$0xff]
      %v1958 = vld [vmem:[%s1956 + $0x8] sm:$0xff]
      %1959 = vmatprep.subr.mxu0 %v839
      %1960 = vmatpush1.msra.mxu0 %v838
      %1961 = vmatprep.subr.mxu0 %v841
      %1962 = vmatpush1.msra.mxu0 %v840
      %1963 = vmatprep.subr.mxu0 %v843
      %1964 = vmatpush1.msra.mxu0 %v842
      %1965 = vmatprep.subr.mxu0 %v845
      %1966 = vmatpush1.msra.mxu0 %v844
      %1967 = vmatprep.subr.mxu0 %v847
      %1968 = vmatpush1.msra.mxu0 %v846
      %1969 = vmatprep.subr.mxu0 %v849
      %1970 = vmatpush1.msra.mxu0 %v848
      %1971 = vmatprep.subr.mxu0 %v851
      %1972 = vmatpush1.msra.mxu0 %v850
      %1973 = vmatprep.subr.mxu0 %v853
      %1974 = vmatpush1.msra.mxu0 %v852
      %1975 = vmatprep.subr.mxu0 %v855
      %1976 = vmatpush1.msra.mxu0 %v854
      %1977 = vmatprep.subr.mxu0 %v857
      %1978 = vmatpush1.msra.mxu0 %v856
      %1979 = vmatprep.subr.mxu0 %v859
      %1980 = vmatpush1.msra.mxu0 %v858
      %1981 = vmatprep.subr.mxu0 %v861
      %1982 = vmatpush1.msra.mxu0 %v860
      %1983 = vmatprep.subr.mxu0 %v863
      %1984 = vmatpush1.msra.mxu0 %v862
      %1985 = vmatprep.subr.mxu0 %v865
      %1986 = vmatpush1.msra.mxu0 %v864
      %1987 = vmatprep.subr.mxu0 %v867
      %1988 = vmatpush1.msra.mxu0 %v866
      %1989 = vmatprep.subr.mxu0 %v869
      %1990 = vmatpush1.msra.mxu0 %v868
      %1991 = vmatprep.subr.mxu0 0.0
      %1992 = vmatpush1.msra.mxu0 0.0
      %1993 = vmatprep.subr.mxu0 0.0
      %1994 = vmatpush1.msra.mxu0 0.0
      %1995 = vmatprep.subr.mxu0 0.0
      %1996 = vmatpush1.msra.mxu0 0.0
      %1997 = vmatprep.subr.mxu0 0.0
      %1998 = vmatpush1.msra.mxu0 0.0
      %1999 = vmatprep.subr.mxu0 0.0
      %2000 = vmatpush1.msra.mxu0 0.0
      %2001 = vmatprep.subr.mxu0 0.0
      %2002 = vmatpush1.msra.mxu0 0.0
      %2003 = vmatprep.subr.mxu0 0.0
      %2004 = vmatpush1.msra.mxu0 0.0
      %2005 = vmatprep.subr.mxu0 0.0
      %2006 = vmatpush1.msra.mxu0 0.0
      %2007 = vmatprep.subr.mxu0 0.0
      %2008 = vmatpush1.msra.mxu0 0.0
      %2009 = vmatprep.subr.mxu0 0.0
      %2010 = vmatpush1.msra.mxu0 0.0
      %2011 = vmatprep.subr.mxu0 0.0
      %2012 = vmatpush1.msra.mxu0 0.0
      %2013 = vmatprep.subr.mxu0 0.0
      %2014 = vmatpush1.msra.mxu0 0.0
      %2015 = vmatprep.subr.mxu0 0.0
      %2016 = vmatpush1.msra.mxu0 0.0
      %2017 = vmatprep.subr.mxu0 0.0
      %2018 = vmatpush1.msra.mxu0 0.0
      %2019 = vmatprep.subr.mxu0 0.0
      %2020 = vmatpush1.msra.mxu0 0.0
      %2021 = vmatprep.subr.mxu0 0.0
      %2022 = vmatpush1.msra.mxu0 0.0
      %2023 = vmatprep.mubr.f32.mxu0 0.0
      %2024 = vmatmul.mubr.f32.gmra.mrb[0].mxu0 %v1786
      %v2025 = vpop.f32.mrb[0].mxu0
      %v2026 = vadd.f32 0.0, %v2025
      %v2027 = vpop.f32.mrb[0].mxu0
      %v2028 = vadd.f32 0.0, %v2027
      %2029 = vdwg.mxu0
      %v2030 = vadd.f32 %v1957, %v2026
      %v2031 = vadd.f32 %v1958, %v2028
      %v2032 = vxor.u32 %v2030, 2147483648
      %v2033 = vxor.u32 %v2031, 2147483648
      %v2034 = vmul.f32 %v2032, 1.442695
      %v2035 = vpow.pop %v2034
      %v2036 = vmul.f32 %v2033, 1.442695
      %v2037 = vpow.pop %v2036
      %v2038 = vadd.f32 %v2035, 1.0
      %v2039 = vadd.f32 %v2037, 1.0
      %v2040 = vrcp.pop %v2038
      %v2041 = vmul.f32 1.0, %v2040
      %v2042 = vrcp.pop %v2039
      %v2043 = vmul.f32 1.0, %v2042
      %2044 = vmatprep.subr.mxu0 0.0
      %2045 = vmatpush1.msra.mxu0 %v902
      %2046 = vmatprep.subr.mxu0 0.0
      %2047 = vmatpush1.msra.mxu0 %v903
      %2048 = vmatprep.subr.mxu0 0.0
      %2049 = vmatpush1.msra.mxu0 %v904
      %2050 = vmatprep.subr.mxu0 0.0
      %2051 = vmatpush1.msra.mxu0 %v905
      %2052 = vmatprep.subr.mxu0 0.0
      %2053 = vmatpush1.msra.mxu0 %v906
      %2054 = vmatprep.subr.mxu0 0.0
      %2055 = vmatpush1.msra.mxu0 %v907
      %2056 = vmatprep.subr.mxu0 0.0
      %2057 = vmatpush1.msra.mxu0 %v908
      %2058 = vmatprep.subr.mxu0 0.0
      %2059 = vmatpush1.msra.mxu0 %v909
      %2060 = vmatprep.subr.mxu0 0.0
      %2061 = vmatpush1.msra.mxu0 %v910
      %2062 = vmatprep.subr.mxu0 0.0
      %2063 = vmatpush1.msra.mxu0 %v911
      %2064 = vmatprep.subr.mxu0 0.0
      %2065 = vmatpush1.msra.mxu0 %v912
      %2066 = vmatprep.subr.mxu0 0.0
      %2067 = vmatpush1.msra.mxu0 %v913
      %2068 = vmatprep.subr.mxu0 0.0
      %2069 = vmatpush1.msra.mxu0 %v914
      %2070 = vmatprep.subr.mxu0 0.0
      %2071 = vmatpush1.msra.mxu0 %v915
      %2072 = vmatprep.subr.mxu0 0.0
      %2073 = vmatpush1.msra.mxu0 %v916
      %2074 = vmatprep.subr.mxu0 0.0
      %2075 = vmatpush1.msra.mxu0 %v917
      %2076 = vmatprep.subr.mxu0 0.0
      %2077 = vmatpush1.msra.mxu0 %v918
      %2078 = vmatprep.subr.mxu0 0.0
      %2079 = vmatpush1.msra.mxu0 %v919
      %2080 = vmatprep.subr.mxu0 0.0
      %2081 = vmatpush1.msra.mxu0 %v920
      %2082 = vmatprep.subr.mxu0 0.0
      %2083 = vmatpush1.msra.mxu0 %v921
      %2084 = vmatprep.subr.mxu0 0.0
      %2085 = vmatpush1.msra.mxu0 %v922
      %2086 = vmatprep.subr.mxu0 0.0
      %2087 = vmatpush1.msra.mxu0 %v923
      %2088 = vmatprep.subr.mxu0 0.0
      %2089 = vmatpush1.msra.mxu0 %v924
      %2090 = vmatprep.subr.mxu0 0.0
      %2091 = vmatpush1.msra.mxu0 %v925
      %2092 = vmatprep.subr.mxu0 0.0
      %2093 = vmatpush1.msra.mxu0 %v926
      %2094 = vmatprep.subr.mxu0 0.0
      %2095 = vmatpush1.msra.mxu0 %v927
      %2096 = vmatprep.subr.mxu0 0.0
      %2097 = vmatpush1.msra.mxu0 %v928
      %2098 = vmatprep.subr.mxu0 0.0
      %2099 = vmatpush1.msra.mxu0 %v929
      %2100 = vmatprep.subr.mxu0 0.0
      %2101 = vmatpush1.msra.mxu0 %v930
      %2102 = vmatprep.subr.mxu0 0.0
      %2103 = vmatpush1.msra.mxu0 %v931
      %2104 = vmatprep.subr.mxu0 0.0
      %2105 = vmatpush1.msra.mxu0 %v932
      %2106 = vmatprep.subr.mxu0 0.0
      %2107 = vmatpush1.msra.mxu0 %v933
      %2108 = vmatprep.mubr.f32.mxu0 %v2043
      %2109 = vmatmul.mubr.f32.gmra.mrb[0].mxu0 %v2041
      %v2110 = vpop.f32.mrb[0].mxu0
      %v2111 = vadd.f32 %v962, %v2110
      %v2112 = vpop.f32.mrb[0].mxu0
      %2113 = vdwg.mxu0
      %v2114 = vxor.u32 %v2111, 2147483648
      %v2115 = vmul.f32 %v2114, 1.442695
      %v2116 = vpow.pop %v2115
      %v2117 = vadd.f32 %v2116, 1.0
      %v2118 = vrcp.pop %v2117
      %v2119 = vmul.f32 1.0, %v2118
      %v2120 = vsub.f32 %v2041, %v2043
      %v2121 = vmul.f32 %v2119, %v2120
      %v2122 = vadd.f32 %v2043, %v2121
      %v2123 = vmul.f32 %v2122, %v1786
      %s2124 = scalar_lea.vmem %s316, 16
      %v2125 = vld [vmem:[%s2124] sm:$0xff]
      %2126 = vmatprep.subr.mxu0 0.0
      %2127 = vmatpush1.msra.mxu0 %v934
      %2128 = vmatprep.subr.mxu0 0.0
      %2129 = vmatpush1.msra.mxu0 %v935
      %2130 = vmatprep.subr.mxu0 0.0
      %2131 = vmatpush1.msra.mxu0 %v936
      %2132 = vmatprep.subr.mxu0 0.0
      %2133 = vmatpush1.msra.mxu0 %v937
      %2134 = vmatprep.subr.mxu0 0.0
      %2135 = vmatpush1.msra.mxu0 %v938
      %2136 = vmatprep.subr.mxu0 0.0
      %2137 = vmatpush1.msra.mxu0 %v939
      %2138 = vmatprep.subr.mxu0 0.0
      %2139 = vmatpush1.msra.mxu0 %v940
      %2140 = vmatprep.subr.mxu0 0.0
      %2141 = vmatpush1.msra.mxu0 %v941
      %2142 = vmatprep.subr.mxu0 0.0
      %2143 = vmatpush1.msra.mxu0 %v942
      %2144 = vmatprep.subr.mxu0 0.0
      %2145 = vmatpush1.msra.mxu0 %v943
      %2146 = vmatprep.subr.mxu0 0.0
      %2147 = vmatpush1.msra.mxu0 %v944
      %2148 = vmatprep.subr.mxu0 0.0
      %2149 = vmatpush1.msra.mxu0 %v945
      %2150 = vmatprep.subr.mxu0 0.0
      %2151 = vmatpush1.msra.mxu0 %v946
      %2152 = vmatprep.subr.mxu0 0.0
      %2153 = vmatpush1.msra.mxu0 %v947
      %2154 = vmatprep.subr.mxu0 0.0
      %2155 = vmatpush1.msra.mxu0 %v948
      %2156 = vmatprep.subr.mxu0 0.0
      %2157 = vmatpush1.msra.mxu0 %v949
      %2158 = vmatprep.subr.mxu0 0.0
      %2159 = vmatpush1.msra.mxu0 0.0
      %2160 = vmatprep.subr.mxu0 0.0
      %2161 = vmatpush1.msra.mxu0 0.0
      %2162 = vmatprep.subr.mxu0 0.0
      %2163 = vmatpush1.msra.mxu0 0.0
      %2164 = vmatprep.subr.mxu0 0.0
      %2165 = vmatpush1.msra.mxu0 0.0
      %2166 = vmatprep.subr.mxu0 0.0
      %2167 = vmatpush1.msra.mxu0 0.0
      %2168 = vmatprep.subr.mxu0 0.0
      %2169 = vmatpush1.msra.mxu0 0.0
      %2170 = vmatprep.subr.mxu0 0.0
      %2171 = vmatpush1.msra.mxu0 0.0
      %2172 = vmatprep.subr.mxu0 0.0
      %2173 = vmatpush1.msra.mxu0 0.0
      %2174 = vmatprep.subr.mxu0 0.0
      %2175 = vmatpush1.msra.mxu0 0.0
      %2176 = vmatprep.subr.mxu0 0.0
      %2177 = vmatpush1.msra.mxu0 0.0
      %2178 = vmatprep.subr.mxu0 0.0
      %2179 = vmatpush1.msra.mxu0 0.0
      %2180 = vmatprep.subr.mxu0 0.0
      %2181 = vmatpush1.msra.mxu0 0.0
      %2182 = vmatprep.subr.mxu0 0.0
      %2183 = vmatpush1.msra.mxu0 0.0
      %2184 = vmatprep.subr.mxu0 0.0
      %2185 = vmatpush1.msra.mxu0 0.0
      %2186 = vmatprep.subr.mxu0 0.0
      %2187 = vmatpush1.msra.mxu0 0.0
      %2188 = vmatprep.subr.mxu0 0.0
      %2189 = vmatpush1.msra.mxu0 0.0
      %2190 = vmatprep.mubr.f32.mxu0 0.0
      %2191 = vmatmul.mubr.f32.gmra.mrb[0].mxu0 %v2123
      %v2192 = vpop.f32.mrb[0].mxu0
      %v2193 = vadd.f32 0.0, %v2192
      %v2194 = vpop.f32.mrb[0].mxu0
      %2195 = vdwg.mxu0
      %v2196 = vadd.f32 %v2125, %v2193
      %v2197 = vtanh.pop %v2196
      %v2198 = vsub.f32 %v1786, %v2197
      %v2199 = vmul.f32 %v1955, %v2198
      %v2200 = vadd.f32 %v2197, %v2199
      %s2201 = scalar_lea.vmem %s329, 16
      %2202 = vst [vmem:[%s2201] sm:$0xff] %v2200
      %s2203 = scalar_lea.vmem %s296, 48
      %v2204 = vld [vmem:[%s2203] sm:$0xff]
      %v2205 = vld [vmem:[%s2203 + $0x8] sm:$0xff]
      %2206 = vmatprep.subr.mxu0 %v807
      %2207 = vmatpush1.msra.mxu0 %v806
      %2208 = vmatprep.subr.mxu0 %v809
      %2209 = vmatpush1.msra.mxu0 %v808
      %2210 = vmatprep.subr.mxu0 %v811
      %2211 = vmatpush1.msra.mxu0 %v810
      %2212 = vmatprep.subr.mxu0 %v813
      %2213 = vmatpush1.msra.mxu0 %v812
      %2214 = vmatprep.subr.mxu0 %v815
      %2215 = vmatpush1.msra.mxu0 %v814
      %2216 = vmatprep.subr.mxu0 %v817
      %2217 = vmatpush1.msra.mxu0 %v816
      %2218 = vmatprep.subr.mxu0 %v819
      %2219 = vmatpush1.msra.mxu0 %v818
      %2220 = vmatprep.subr.mxu0 %v821
      %2221 = vmatpush1.msra.mxu0 %v820
      %2222 = vmatprep.subr.mxu0 %v823
      %2223 = vmatpush1.msra.mxu0 %v822
      %2224 = vmatprep.subr.mxu0 %v825
      %2225 = vmatpush1.msra.mxu0 %v824
      %2226 = vmatprep.subr.mxu0 %v827
      %2227 = vmatpush1.msra.mxu0 %v826
      %2228 = vmatprep.subr.mxu0 %v829
      %2229 = vmatpush1.msra.mxu0 %v828
      %2230 = vmatprep.subr.mxu0 %v831
      %2231 = vmatpush1.msra.mxu0 %v830
      %2232 = vmatprep.subr.mxu0 %v833
      %2233 = vmatpush1.msra.mxu0 %v832
      %2234 = vmatprep.subr.mxu0 %v835
      %2235 = vmatpush1.msra.mxu0 %v834
      %2236 = vmatprep.subr.mxu0 %v837
      %2237 = vmatpush1.msra.mxu0 %v836
      %2238 = vmatprep.subr.mxu0 0.0
      %2239 = vmatpush1.msra.mxu0 0.0
      %2240 = vmatprep.subr.mxu0 0.0
      %2241 = vmatpush1.msra.mxu0 0.0
      %2242 = vmatprep.subr.mxu0 0.0
      %2243 = vmatpush1.msra.mxu0 0.0
      %2244 = vmatprep.subr.mxu0 0.0
      %2245 = vmatpush1.msra.mxu0 0.0
      %2246 = vmatprep.subr.mxu0 0.0
      %2247 = vmatpush1.msra.mxu0 0.0
      %2248 = vmatprep.subr.mxu0 0.0
      %2249 = vmatpush1.msra.mxu0 0.0
      %2250 = vmatprep.subr.mxu0 0.0
      %2251 = vmatpush1.msra.mxu0 0.0
      %2252 = vmatprep.subr.mxu0 0.0
      %2253 = vmatpush1.msra.mxu0 0.0
      %2254 = vmatprep.subr.mxu0 0.0
      %2255 = vmatpush1.msra.mxu0 0.0
      %2256 = vmatprep.subr.mxu0 0.0
      %2257 = vmatpush1.msra.mxu0 0.0
      %2258 = vmatprep.subr.mxu0 0.0
      %2259 = vmatpush1.msra.mxu0 0.0
      %2260 = vmatprep.subr.mxu0 0.0
      %2261 = vmatpush1.msra.mxu0 0.0
      %2262 = vmatprep.subr.mxu0 0.0
      %2263 = vmatpush1.msra.mxu0 0.0
      %2264 = vmatprep.subr.mxu0 0.0
      %2265 = vmatpush1.msra.mxu0 0.0
      %2266 = vmatprep.subr.mxu0 0.0
      %2267 = vmatpush1.msra.mxu0 0.0
      %2268 = vmatprep.subr.mxu0 0.0
      %2269 = vmatpush1.msra.mxu0 0.0
      %2270 = vmatprep.mubr.f32.mxu0 0.0
      %2271 = vmatmul.mubr.f32.gmra.mrb[0].mxu0 %v2200
      %v2272 = vpop.f32.mrb[0].mxu0
      %v2273 = vadd.f32 0.0, %v2272
      %v2274 = vpop.f32.mrb[0].mxu0
      %v2275 = vadd.f32 0.0, %v2274
      %2276 = vdwg.mxu0
      %v2277 = vadd.f32 %v2204, %v2273
      %v2278 = vadd.f32 %v2205, %v2275
      %v2279 = vxor.u32 %v2277, 2147483648
      %v2280 = vxor.u32 %v2278, 2147483648
      %v2281 = vmul.f32 %v2279, 1.442695
      %v2282 = vpow.pop %v2281
      %v2283 = vmul.f32 %v2280, 1.442695
      %v2284 = vpow.pop %v2283
      %v2285 = vadd.f32 %v2282, 1.0
      %v2286 = vadd.f32 %v2284, 1.0
      %v2287 = vrcp.pop %v2285
      %v2288 = vmul.f32 1.0, %v2287
      %v2289 = vrcp.pop %v2286
      %v2290 = vmul.f32 1.0, %v2289
      %2291 = vmatprep.subr.mxu0 0.0
      %2292 = vmatpush1.msra.mxu0 %v870
      %2293 = vmatprep.subr.mxu0 0.0
      %2294 = vmatpush1.msra.mxu0 %v871
      %2295 = vmatprep.subr.mxu0 0.0
      %2296 = vmatpush1.msra.mxu0 %v872
      %2297 = vmatprep.subr.mxu0 0.0
      %2298 = vmatpush1.msra.mxu0 %v873
      %2299 = vmatprep.subr.mxu0 0.0
      %2300 = vmatpush1.msra.mxu0 %v874
      %2301 = vmatprep.subr.mxu0 0.0
      %2302 = vmatpush1.msra.mxu0 %v875
      %2303 = vmatprep.subr.mxu0 0.0
      %2304 = vmatpush1.msra.mxu0 %v876
      %2305 = vmatprep.subr.mxu0 0.0
      %2306 = vmatpush1.msra.mxu0 %v877
      %2307 = vmatprep.subr.mxu0 0.0
      %2308 = vmatpush1.msra.mxu0 %v878
      %2309 = vmatprep.subr.mxu0 0.0
      %2310 = vmatpush1.msra.mxu0 %v879
      %2311 = vmatprep.subr.mxu0 0.0
      %2312 = vmatpush1.msra.mxu0 %v880
      %2313 = vmatprep.subr.mxu0 0.0
      %2314 = vmatpush1.msra.mxu0 %v881
      %2315 = vmatprep.subr.mxu0 0.0
      %2316 = vmatpush1.msra.mxu0 %v882
      %2317 = vmatprep.subr.mxu0 0.0
      %2318 = vmatpush1.msra.mxu0 %v883
      %2319 = vmatprep.subr.mxu0 0.0
      %2320 = vmatpush1.msra.mxu0 %v884
      %2321 = vmatprep.subr.mxu0 0.0
      %2322 = vmatpush1.msra.mxu0 %v885
      %2323 = vmatprep.subr.mxu0 0.0
      %2324 = vmatpush1.msra.mxu0 %v886
      %2325 = vmatprep.subr.mxu0 0.0
      %2326 = vmatpush1.msra.mxu0 %v887
      %2327 = vmatprep.subr.mxu0 0.0
      %2328 = vmatpush1.msra.mxu0 %v888
      %2329 = vmatprep.subr.mxu0 0.0
      %2330 = vmatpush1.msra.mxu0 %v889
      %2331 = vmatprep.subr.mxu0 0.0
      %2332 = vmatpush1.msra.mxu0 %v890
      %2333 = vmatprep.subr.mxu0 0.0
      %2334 = vmatpush1.msra.mxu0 %v891
      %2335 = vmatprep.subr.mxu0 0.0
      %2336 = vmatpush1.msra.mxu0 %v892
      %2337 = vmatprep.subr.mxu0 0.0
      %2338 = vmatpush1.msra.mxu0 %v893
      %2339 = vmatprep.subr.mxu0 0.0
      %2340 = vmatpush1.msra.mxu0 %v894
      %2341 = vmatprep.subr.mxu0 0.0
      %2342 = vmatpush1.msra.mxu0 %v895
      %2343 = vmatprep.subr.mxu0 0.0
      %2344 = vmatpush1.msra.mxu0 %v896
      %2345 = vmatprep.subr.mxu0 0.0
      %2346 = vmatpush1.msra.mxu0 %v897
      %2347 = vmatprep.subr.mxu0 0.0
      %2348 = vmatpush1.msra.mxu0 %v898
      %2349 = vmatprep.subr.mxu0 0.0
      %2350 = vmatpush1.msra.mxu0 %v899
      %2351 = vmatprep.subr.mxu0 0.0
      %2352 = vmatpush1.msra.mxu0 %v900
      %2353 = vmatprep.subr.mxu0 0.0
      %2354 = vmatpush1.msra.mxu0 %v901
      %2355 = vmatprep.mubr.f32.mxu0 %v2290
      %2356 = vmatmul.mubr.f32.gmra.mrb[0].mxu0 %v2288
      %v2357 = vpop.f32.mrb[0].mxu0
      %v2358 = vadd.f32 %v955, %v2357
      %v2359 = vpop.f32.mrb[0].mxu0
      %2360 = vdwg.mxu0
      %v2361 = vxor.u32 %v2358, 2147483648
      %v2362 = vmul.f32 %v2361, 1.442695
      %v2363 = vpow.pop %v2362
      %v2364 = vadd.f32 %v2363, 1.0
      %v2365 = vrcp.pop %v2364
      %v2366 = vmul.f32 1.0, %v2365
      %v2367 = vsub.f32 %v2288, %v2290
      %v2368 = vmul.f32 %v2366, %v2367
      %v2369 = vadd.f32 %v2290, %v2368
      %s2370 = scalar_lea.vmem %s307, 48
      %v2371 = vld [vmem:[%s2370] sm:$0xff]
      %v2372 = vld [vmem:[%s2370 + $0x8] sm:$0xff]
      %2373 = vmatprep.subr.mxu0 %v839
      %2374 = vmatpush1.msra.mxu0 %v838
      %2375 = vmatprep.subr.mxu0 %v841
      %2376 = vmatpush1.msra.mxu0 %v840
      %2377 = vmatprep.subr.mxu0 %v843
      %2378 = vmatpush1.msra.mxu0 %v842
      %2379 = vmatprep.subr.mxu0 %v845
      %2380 = vmatpush1.msra.mxu0 %v844
      %2381 = vmatprep.subr.mxu0 %v847
      %2382 = vmatpush1.msra.mxu0 %v846
      %2383 = vmatprep.subr.mxu0 %v849
      %2384 = vmatpush1.msra.mxu0 %v848
      %2385 = vmatprep.subr.mxu0 %v851
      %2386 = vmatpush1.msra.mxu0 %v850
      %2387 = vmatprep.subr.mxu0 %v853
      %2388 = vmatpush1.msra.mxu0 %v852
      %2389 = vmatprep.subr.mxu0 %v855
      %2390 = vmatpush1.msra.mxu0 %v854
      %2391 = vmatprep.subr.mxu0 %v857
      %2392 = vmatpush1.msra.mxu0 %v856
      %2393 = vmatprep.subr.mxu0 %v859
      %2394 = vmatpush1.msra.mxu0 %v858
      %2395 = vmatprep.subr.mxu0 %v861
      %2396 = vmatpush1.msra.mxu0 %v860
      %2397 = vmatprep.subr.mxu0 %v863
      %2398 = vmatpush1.msra.mxu0 %v862
      %2399 = vmatprep.subr.mxu0 %v865
      %2400 = vmatpush1.msra.mxu0 %v864
      %2401 = vmatprep.subr.mxu0 %v867
      %2402 = vmatpush1.msra.mxu0 %v866
      %2403 = vmatprep.subr.mxu0 %v869
      %2404 = vmatpush1.msra.mxu0 %v868
      %2405 = vmatprep.subr.mxu0 0.0
      %2406 = vmatpush1.msra.mxu0 0.0
      %2407 = vmatprep.subr.mxu0 0.0
      %2408 = vmatpush1.msra.mxu0 0.0
      %2409 = vmatprep.subr.mxu0 0.0
      %2410 = vmatpush1.msra.mxu0 0.0
      %2411 = vmatprep.subr.mxu0 0.0
      %2412 = vmatpush1.msra.mxu0 0.0
      %2413 = vmatprep.subr.mxu0 0.0
      %2414 = vmatpush1.msra.mxu0 0.0
      %2415 = vmatprep.subr.mxu0 0.0
      %2416 = vmatpush1.msra.mxu0 0.0
      %2417 = vmatprep.subr.mxu0 0.0
      %2418 = vmatpush1.msra.mxu0 0.0
      %2419 = vmatprep.subr.mxu0 0.0
      %2420 = vmatpush1.msra.mxu0 0.0
      %2421 = vmatprep.subr.mxu0 0.0
      %2422 = vmatpush1.msra.mxu0 0.0
      %2423 = vmatprep.subr.mxu0 0.0
      %2424 = vmatpush1.msra.mxu0 0.0
      %2425 = vmatprep.subr.mxu0 0.0
      %2426 = vmatpush1.msra.mxu0 0.0
      %2427 = vmatprep.subr.mxu0 0.0
      %2428 = vmatpush1.msra.mxu0 0.0
      %2429 = vmatprep.subr.mxu0 0.0
      %2430 = vmatpush1.msra.mxu0 0.0
      %2431 = vmatprep.subr.mxu0 0.0
      %2432 = vmatpush1.msra.mxu0 0.0
      %2433 = vmatprep.subr.mxu0 0.0
      %2434 = vmatpush1.msra.mxu0 0.0
      %2435 = vmatprep.subr.mxu0 0.0
      %2436 = vmatpush1.msra.mxu0 0.0
      %2437 = vmatprep.mubr.f32.mxu0 0.0
      %2438 = vmatmul.mubr.f32.gmra.mrb[0].mxu0 %v2200
      %v2439 = vpop.f32.mrb[0].mxu0
      %v2440 = vadd.f32 0.0, %v2439
      %v2441 = vpop.f32.mrb[0].mxu0
      %v2442 = vadd.f32 0.0, %v2441
      %2443 = vdwg.mxu0
      %v2444 = vadd.f32 %v2371, %v2440
      %v2445 = vadd.f32 %v2372, %v2442
      %v2446 = vxor.u32 %v2444, 2147483648
      %v2447 = vxor.u32 %v2445, 2147483648
      %v2448 = vmul.f32 %v2446, 1.442695
      %v2449 = vpow.pop %v2448
      %v2450 = vmul.f32 %v2447, 1.442695
      %v2451 = vpow.pop %v2450
      %v2452 = vadd.f32 %v2449, 1.0
      %v2453 = vadd.f32 %v2451, 1.0
      %v2454 = vrcp.pop %v2452
      %v2455 = vmul.f32 1.0, %v2454
      %v2456 = vrcp.pop %v2453
      %v2457 = vmul.f32 1.0, %v2456
      %2458 = vmatprep.subr.mxu0 0.0
      %2459 = vmatpush1.msra.mxu0 %v902
      %2460 = vmatprep.subr.mxu0 0.0
      %2461 = vmatpush1.msra.mxu0 %v903
      %2462 = vmatprep.subr.mxu0 0.0
      %2463 = vmatpush1.msra.mxu0 %v904
      %2464 = vmatprep.subr.mxu0 0.0
      %2465 = vmatpush1.msra.mxu0 %v905
      %2466 = vmatprep.subr.mxu0 0.0
      %2467 = vmatpush1.msra.mxu0 %v906
      %2468 = vmatprep.subr.mxu0 0.0
      %2469 = vmatpush1.msra.mxu0 %v907
      %2470 = vmatprep.subr.mxu0 0.0
      %2471 = vmatpush1.msra.mxu0 %v908
      %2472 = vmatprep.subr.mxu0 0.0
      %2473 = vmatpush1.msra.mxu0 %v909
      %2474 = vmatprep.subr.mxu0 0.0
      %2475 = vmatpush1.msra.mxu0 %v910
      %2476 = vmatprep.subr.mxu0 0.0
      %2477 = vmatpush1.msra.mxu0 %v911
      %2478 = vmatprep.subr.mxu0 0.0
      %2479 = vmatpush1.msra.mxu0 %v912
      %2480 = vmatprep.subr.mxu0 0.0
      %2481 = vmatpush1.msra.mxu0 %v913
      %2482 = vmatprep.subr.mxu0 0.0
      %2483 = vmatpush1.msra.mxu0 %v914
      %2484 = vmatprep.subr.mxu0 0.0
      %2485 = vmatpush1.msra.mxu0 %v915
      %2486 = vmatprep.subr.mxu0 0.0
      %2487 = vmatpush1.msra.mxu0 %v916
      %2488 = vmatprep.subr.mxu0 0.0
      %2489 = vmatpush1.msra.mxu0 %v917
      %2490 = vmatprep.subr.mxu0 0.0
      %2491 = vmatpush1.msra.mxu0 %v918
      %2492 = vmatprep.subr.mxu0 0.0
      %2493 = vmatpush1.msra.mxu0 %v919
      %2494 = vmatprep.subr.mxu0 0.0
      %2495 = vmatpush1.msra.mxu0 %v920
      %2496 = vmatprep.subr.mxu0 0.0
      %2497 = vmatpush1.msra.mxu0 %v921
      %2498 = vmatprep.subr.mxu0 0.0
      %2499 = vmatpush1.msra.mxu0 %v922
      %2500 = vmatprep.subr.mxu0 0.0
      %2501 = vmatpush1.msra.mxu0 %v923
      %2502 = vmatprep.subr.mxu0 0.0
      %2503 = vmatpush1.msra.mxu0 %v924
      %2504 = vmatprep.subr.mxu0 0.0
      %2505 = vmatpush1.msra.mxu0 %v925
      %2506 = vmatprep.subr.mxu0 0.0
      %2507 = vmatpush1.msra.mxu0 %v926
      %2508 = vmatprep.subr.mxu0 0.0
      %2509 = vmatpush1.msra.mxu0 %v927
      %2510 = vmatprep.subr.mxu0 0.0
      %2511 = vmatpush1.msra.mxu0 %v928
      %2512 = vmatprep.subr.mxu0 0.0
      %2513 = vmatpush1.msra.mxu0 %v929
      %2514 = vmatprep.subr.mxu0 0.0
      %2515 = vmatpush1.msra.mxu0 %v930
      %2516 = vmatprep.subr.mxu0 0.0
      %2517 = vmatpush1.msra.mxu0 %v931
      %2518 = vmatprep.subr.mxu0 0.0
      %2519 = vmatpush1.msra.mxu0 %v932
      %2520 = vmatprep.subr.mxu0 0.0
      %2521 = vmatpush1.msra.mxu0 %v933
      %2522 = vmatprep.mubr.f32.mxu0 %v2457
      %2523 = vmatmul.mubr.f32.gmra.mrb[0].mxu0 %v2455
      %v2524 = vpop.f32.mrb[0].mxu0
      %v2525 = vadd.f32 %v962, %v2524
      %v2526 = vpop.f32.mrb[0].mxu0
      %2527 = vdwg.mxu0
      %v2528 = vxor.u32 %v2525, 2147483648
      %v2529 = vmul.f32 %v2528, 1.442695
      %v2530 = vpow.pop %v2529
      %v2531 = vadd.f32 %v2530, 1.0
      %v2532 = vrcp.pop %v2531
      %v2533 = vmul.f32 1.0, %v2532
      %v2534 = vsub.f32 %v2455, %v2457
      %v2535 = vmul.f32 %v2533, %v2534
      %v2536 = vadd.f32 %v2457, %v2535
      %v2537 = vmul.f32 %v2536, %v2200
      %s2538 = scalar_lea.vmem %s316, 24
      %v2539 = vld [vmem:[%s2538] sm:$0xff]
      %2540 = vmatprep.subr.mxu0 0.0
      %2541 = vmatpush1.msra.mxu0 %v934
      %2542 = vmatprep.subr.mxu0 0.0
      %2543 = vmatpush1.msra.mxu0 %v935
      %2544 = vmatprep.subr.mxu0 0.0
      %2545 = vmatpush1.msra.mxu0 %v936
      %2546 = vmatprep.subr.mxu0 0.0
      %2547 = vmatpush1.msra.mxu0 %v937
      %2548 = vmatprep.subr.mxu0 0.0
      %2549 = vmatpush1.msra.mxu0 %v938
      %2550 = vmatprep.subr.mxu0 0.0
      %2551 = vmatpush1.msra.mxu0 %v939
      %2552 = vmatprep.subr.mxu0 0.0
      %2553 = vmatpush1.msra.mxu0 %v940
      %2554 = vmatprep.subr.mxu0 0.0
      %2555 = vmatpush1.msra.mxu0 %v941
      %2556 = vmatprep.subr.mxu0 0.0
      %2557 = vmatpush1.msra.mxu0 %v942
      %2558 = vmatprep.subr.mxu0 0.0
      %2559 = vmatpush1.msra.mxu0 %v943
      %2560 = vmatprep.subr.mxu0 0.0
      %2561 = vmatpush1.msra.mxu0 %v944
      %2562 = vmatprep.subr.mxu0 0.0
      %2563 = vmatpush1.msra.mxu0 %v945
      %2564 = vmatprep.subr.mxu0 0.0
      %2565 = vmatpush1.msra.mxu0 %v946
      %2566 = vmatprep.subr.mxu0 0.0
      %2567 = vmatpush1.msra.mxu0 %v947
      %2568 = vmatprep.subr.mxu0 0.0
      %2569 = vmatpush1.msra.mxu0 %v948
      %2570 = vmatprep.subr.mxu0 0.0
      %2571 = vmatpush1.msra.mxu0 %v949
      %2572 = vmatprep.subr.mxu0 0.0
      %2573 = vmatpush1.msra.mxu0 0.0
      %2574 = vmatprep.subr.mxu0 0.0
      %2575 = vmatpush1.msra.mxu0 0.0
      %2576 = vmatprep.subr.mxu0 0.0
      %2577 = vmatpush1.msra.mxu0 0.0
      %2578 = vmatprep.subr.mxu0 0.0
      %2579 = vmatpush1.msra.mxu0 0.0
      %2580 = vmatprep.subr.mxu0 0.0
      %2581 = vmatpush1.msra.mxu0 0.0
      %2582 = vmatprep.subr.mxu0 0.0
      %2583 = vmatpush1.msra.mxu0 0.0
      %2584 = vmatprep.subr.mxu0 0.0
      %2585 = vmatpush1.msra.mxu0 0.0
      %2586 = vmatprep.subr.mxu0 0.0
      %2587 = vmatpush1.msra.mxu0 0.0
      %2588 = vmatprep.subr.mxu0 0.0
      %2589 = vmatpush1.msra.mxu0 0.0
      %2590 = vmatprep.subr.mxu0 0.0
      %2591 = vmatpush1.msra.mxu0 0.0
      %2592 = vmatprep.subr.mxu0 0.0
      %2593 = vmatpush1.msra.mxu0 0.0
      %2594 = vmatprep.subr.mxu0 0.0
      %2595 = vmatpush1.msra.mxu0 0.0
      %2596 = vmatprep.subr.mxu0 0.0
      %2597 = vmatpush1.msra.mxu0 0.0
      %2598 = vmatprep.subr.mxu0 0.0
      %2599 = vmatpush1.msra.mxu0 0.0
      %2600 = vmatprep.subr.mxu0 0.0
      %2601 = vmatpush1.msra.mxu0 0.0
      %2602 = vmatprep.subr.mxu0 0.0
      %2603 = vmatpush1.msra.mxu0 0.0
      %2604 = vmatprep.mubr.f32.mxu0 0.0
      %2605 = vmatmul.mubr.f32.gmra.mrb[0].mxu0 %v2537
      %v2606 = vpop.f32.mrb[0].mxu0
      %v2607 = vadd.f32 0.0, %v2606
      %v2608 = vpop.f32.mrb[0].mxu0
      %2609 = vdwg.mxu0
      %v2610 = vadd.f32 %v2539, %v2607
      %v2611 = vtanh.pop %v2610
      %v2612 = vsub.f32 %v2200, %v2611
      %v2613 = vmul.f32 %v2369, %v2612
      %v2614 = vadd.f32 %v2611, %v2613
      %s2615 = scalar_lea.vmem %s329, 24
      %2616 = vst [vmem:[%s2615] sm:$0xff] %v2614
      %s2617 = scalar_lea.vmem %s296, 64
      %v2618 = vld [vmem:[%s2617] sm:$0xff]
      %v2619 = vld [vmem:[%s2617 + $0x8] sm:$0xff]
      %2620 = vmatprep.subr.mxu0 %v807
      %2621 = vmatpush1.msra.mxu0 %v806
      %2622 = vmatprep.subr.mxu0 %v809
      %2623 = vmatpush1.msra.mxu0 %v808
      %2624 = vmatprep.subr.mxu0 %v811
      %2625 = vmatpush1.msra.mxu0 %v810
      %2626 = vmatprep.subr.mxu0 %v813
      %2627 = vmatpush1.msra.mxu0 %v812
      %2628 = vmatprep.subr.mxu0 %v815
      %2629 = vmatpush1.msra.mxu0 %v814
      %2630 = vmatprep.subr.mxu0 %v817
      %2631 = vmatpush1.msra.mxu0 %v816
      %2632 = vmatprep.subr.mxu0 %v819
      %2633 = vmatpush1.msra.mxu0 %v818
      %2634 = vmatprep.subr.mxu0 %v821
      %2635 = vmatpush1.msra.mxu0 %v820
      %2636 = vmatprep.subr.mxu0 %v823
      %2637 = vmatpush1.msra.mxu0 %v822
      %2638 = vmatprep.subr.mxu0 %v825
      %2639 = vmatpush1.msra.mxu0 %v824
      %2640 = vmatprep.subr.mxu0 %v827
      %2641 = vmatpush1.msra.mxu0 %v826
      %2642 = vmatprep.subr.mxu0 %v829
      %2643 = vmatpush1.msra.mxu0 %v828
      %2644 = vmatprep.subr.mxu0 %v831
      %2645 = vmatpush1.msra.mxu0 %v830
      %2646 = vmatprep.subr.mxu0 %v833
      %2647 = vmatpush1.msra.mxu0 %v832
      %2648 = vmatprep.subr.mxu0 %v835
      %2649 = vmatpush1.msra.mxu0 %v834
      %2650 = vmatprep.subr.mxu0 %v837
      %2651 = vmatpush1.msra.mxu0 %v836
      %2652 = vmatprep.subr.mxu0 0.0
      %2653 = vmatpush1.msra.mxu0 0.0
      %2654 = vmatprep.subr.mxu0 0.0
      %2655 = vmatpush1.msra.mxu0 0.0
      %2656 = vmatprep.subr.mxu0 0.0
      %2657 = vmatpush1.msra.mxu0 0.0
      %2658 = vmatprep.subr.mxu0 0.0
      %2659 = vmatpush1.msra.mxu0 0.0
      %2660 = vmatprep.subr.mxu0 0.0
      %2661 = vmatpush1.msra.mxu0 0.0
      %2662 = vmatprep.subr.mxu0 0.0
      %2663 = vmatpush1.msra.mxu0 0.0
      %2664 = vmatprep.subr.mxu0 0.0
      %2665 = vmatpush1.msra.mxu0 0.0
      %2666 = vmatprep.subr.mxu0 0.0
      %2667 = vmatpush1.msra.mxu0 0.0
      %2668 = vmatprep.subr.mxu0 0.0
      %2669 = vmatpush1.msra.mxu0 0.0
      %2670 = vmatprep.subr.mxu0 0.0
      %2671 = vmatpush1.msra.mxu0 0.0
      %2672 = vmatprep.subr.mxu0 0.0
      %2673 = vmatpush1.msra.mxu0 0.0
      %2674 = vmatprep.subr.mxu0 0.0
      %2675 = vmatpush1.msra.mxu0 0.0
      %2676 = vmatprep.subr.mxu0 0.0
      %2677 = vmatpush1.msra.mxu0 0.0
      %2678 = vmatprep.subr.mxu0 0.0
      %2679 = vmatpush1.msra.mxu0 0.0
      %2680 = vmatprep.subr.mxu0 0.0
      %2681 = vmatpush1.msra.mxu0 0.0
      %2682 = vmatprep.subr.mxu0 0.0
      %2683 = vmatpush1.msra.mxu0 0.0
      %2684 = vmatprep.mubr.f32.mxu0 0.0
      %2685 = vmatmul.mubr.f32.gmra.mrb[0].mxu0 %v2614
      %v2686 = vpop.f32.mrb[0].mxu0
      %v2687 = vadd.f32 0.0, %v2686
      %v2688 = vpop.f32.mrb[0].mxu0
      %v2689 = vadd.f32 0.0, %v2688
      %2690 = vdwg.mxu0
      %v2691 = vadd.f32 %v2618, %v2687
      %v2692 = vadd.f32 %v2619, %v2689
      %v2693 = vxor.u32 %v2691, 2147483648
      %v2694 = vxor.u32 %v2692, 2147483648
      %v2695 = vmul.f32 %v2693, 1.442695
      %v2696 = vpow.pop %v2695
      %v2697 = vmul.f32 %v2694, 1.442695
      %v2698 = vpow.pop %v2697
      %v2699 = vadd.f32 %v2696, 1.0
      %v2700 = vadd.f32 %v2698, 1.0
      %v2701 = vrcp.pop %v2699
      %v2702 = vmul.f32 1.0, %v2701
      %v2703 = vrcp.pop %v2700
      %v2704 = vmul.f32 1.0, %v2703
      %2705 = vmatprep.subr.mxu0 0.0
      %2706 = vmatpush1.msra.mxu0 %v870
      %2707 = vmatprep.subr.mxu0 0.0
      %2708 = vmatpush1.msra.mxu0 %v871
      %2709 = vmatprep.subr.mxu0 0.0
      %2710 = vmatpush1.msra.mxu0 %v872
      %2711 = vmatprep.subr.mxu0 0.0
      %2712 = vmatpush1.msra.mxu0 %v873
      %2713 = vmatprep.subr.mxu0 0.0
      %2714 = vmatpush1.msra.mxu0 %v874
      %2715 = vmatprep.subr.mxu0 0.0
      %2716 = vmatpush1.msra.mxu0 %v875
      %2717 = vmatprep.subr.mxu0 0.0
      %2718 = vmatpush1.msra.mxu0 %v876
      %2719 = vmatprep.subr.mxu0 0.0
      %2720 = vmatpush1.msra.mxu0 %v877
      %2721 = vmatprep.subr.mxu0 0.0
      %2722 = vmatpush1.msra.mxu0 %v878
      %2723 = vmatprep.subr.mxu0 0.0
      %2724 = vmatpush1.msra.mxu0 %v879
      %2725 = vmatprep.subr.mxu0 0.0
      %2726 = vmatpush1.msra.mxu0 %v880
      %2727 = vmatprep.subr.mxu0 0.0
      %2728 = vmatpush1.msra.mxu0 %v881
      %2729 = vmatprep.subr.mxu0 0.0
      %2730 = vmatpush1.msra.mxu0 %v882
      %2731 = vmatprep.subr.mxu0 0.0
      %2732 = vmatpush1.msra.mxu0 %v883
      %2733 = vmatprep.subr.mxu0 0.0
      %2734 = vmatpush1.msra.mxu0 %v884
      %2735 = vmatprep.subr.mxu0 0.0
      %2736 = vmatpush1.msra.mxu0 %v885
      %2737 = vmatprep.subr.mxu0 0.0
      %2738 = vmatpush1.msra.mxu0 %v886
      %2739 = vmatprep.subr.mxu0 0.0
      %2740 = vmatpush1.msra.mxu0 %v887
      %2741 = vmatprep.subr.mxu0 0.0
      %2742 = vmatpush1.msra.mxu0 %v888
      %2743 = vmatprep.subr.mxu0 0.0
      %2744 = vmatpush1.msra.mxu0 %v889
      %2745 = vmatprep.subr.mxu0 0.0
      %2746 = vmatpush1.msra.mxu0 %v890
      %2747 = vmatprep.subr.mxu0 0.0
      %2748 = vmatpush1.msra.mxu0 %v891
      %2749 = vmatprep.subr.mxu0 0.0
      %2750 = vmatpush1.msra.mxu0 %v892
      %2751 = vmatprep.subr.mxu0 0.0
      %2752 = vmatpush1.msra.mxu0 %v893
      %2753 = vmatprep.subr.mxu0 0.0
      %2754 = vmatpush1.msra.mxu0 %v894
      %2755 = vmatprep.subr.mxu0 0.0
      %2756 = vmatpush1.msra.mxu0 %v895
      %2757 = vmatprep.subr.mxu0 0.0
      %2758 = vmatpush1.msra.mxu0 %v896
      %2759 = vmatprep.subr.mxu0 0.0
      %2760 = vmatpush1.msra.mxu0 %v897
      %2761 = vmatprep.subr.mxu0 0.0
      %2762 = vmatpush1.msra.mxu0 %v898
      %2763 = vmatprep.subr.mxu0 0.0
      %2764 = vmatpush1.msra.mxu0 %v899
      %2765 = vmatprep.subr.mxu0 0.0
      %2766 = vmatpush1.msra.mxu0 %v900
      %2767 = vmatprep.subr.mxu0 0.0
      %2768 = vmatpush1.msra.mxu0 %v901
      %2769 = vmatprep.mubr.f32.mxu0 %v2704
      %2770 = vmatmul.mubr.f32.gmra.mrb[0].mxu0 %v2702
      %v2771 = vpop.f32.mrb[0].mxu0
      %v2772 = vadd.f32 %v955, %v2771
      %v2773 = vpop.f32.mrb[0].mxu0
      %2774 = vdwg.mxu0
      %v2775 = vxor.u32 %v2772, 2147483648
      %v2776 = vmul.f32 %v2775, 1.442695
      %v2777 = vpow.pop %v2776
      %v2778 = vadd.f32 %v2777, 1.0
      %v2779 = vrcp.pop %v2778
      %v2780 = vmul.f32 1.0, %v2779
      %v2781 = vsub.f32 %v2702, %v2704
      %v2782 = vmul.f32 %v2780, %v2781
      %v2783 = vadd.f32 %v2704, %v2782
      %s2784 = scalar_lea.vmem %s307, 64
      %v2785 = vld [vmem:[%s2784] sm:$0xff]
      %v2786 = vld [vmem:[%s2784 + $0x8] sm:$0xff]
      %2787 = vmatprep.subr.mxu0 %v839
      %2788 = vmatpush1.msra.mxu0 %v838
      %2789 = vmatprep.subr.mxu0 %v841
      %2790 = vmatpush1.msra.mxu0 %v840
      %2791 = vmatprep.subr.mxu0 %v843
      %2792 = vmatpush1.msra.mxu0 %v842
      %2793 = vmatprep.subr.mxu0 %v845
      %2794 = vmatpush1.msra.mxu0 %v844
      %2795 = vmatprep.subr.mxu0 %v847
      %2796 = vmatpush1.msra.mxu0 %v846
      %2797 = vmatprep.subr.mxu0 %v849
      %2798 = vmatpush1.msra.mxu0 %v848
      %2799 = vmatprep.subr.mxu0 %v851
      %2800 = vmatpush1.msra.mxu0 %v850
      %2801 = vmatprep.subr.mxu0 %v853
      %2802 = vmatpush1.msra.mxu0 %v852
      %2803 = vmatprep.subr.mxu0 %v855
      %2804 = vmatpush1.msra.mxu0 %v854
      %2805 = vmatprep.subr.mxu0 %v857
      %2806 = vmatpush1.msra.mxu0 %v856
      %2807 = vmatprep.subr.mxu0 %v859
      %2808 = vmatpush1.msra.mxu0 %v858
      %2809 = vmatprep.subr.mxu0 %v861
      %2810 = vmatpush1.msra.mxu0 %v860
      %2811 = vmatprep.subr.mxu0 %v863
      %2812 = vmatpush1.msra.mxu0 %v862
      %2813 = vmatprep.subr.mxu0 %v865
      %2814 = vmatpush1.msra.mxu0 %v864
      %2815 = vmatprep.subr.mxu0 %v867
      %2816 = vmatpush1.msra.mxu0 %v866
      %2817 = vmatprep.subr.mxu0 %v869
      %2818 = vmatpush1.msra.mxu0 %v868
      %2819 = vmatprep.subr.mxu0 0.0
      %2820 = vmatpush1.msra.mxu0 0.0
      %2821 = vmatprep.subr.mxu0 0.0
      %2822 = vmatpush1.msra.mxu0 0.0
      %2823 = vmatprep.subr.mxu0 0.0
      %2824 = vmatpush1.msra.mxu0 0.0
      %2825 = vmatprep.subr.mxu0 0.0
      %2826 = vmatpush1.msra.mxu0 0.0
      %2827 = vmatprep.subr.mxu0 0.0
      %2828 = vmatpush1.msra.mxu0 0.0
      %2829 = vmatprep.subr.mxu0 0.0
      %2830 = vmatpush1.msra.mxu0 0.0
      %2831 = vmatprep.subr.mxu0 0.0
      %2832 = vmatpush1.msra.mxu0 0.0
      %2833 = vmatprep.subr.mxu0 0.0
      %2834 = vmatpush1.msra.mxu0 0.0
      %2835 = vmatprep.subr.mxu0 0.0
      %2836 = vmatpush1.msra.mxu0 0.0
      %2837 = vmatprep.subr.mxu0 0.0
      %2838 = vmatpush1.msra.mxu0 0.0
      %2839 = vmatprep.subr.mxu0 0.0
      %2840 = vmatpush1.msra.mxu0 0.0
      %2841 = vmatprep.subr.mxu0 0.0
      %2842 = vmatpush1.msra.mxu0 0.0
      %2843 = vmatprep.subr.mxu0 0.0
      %2844 = vmatpush1.msra.mxu0 0.0
      %2845 = vmatprep.subr.mxu0 0.0
      %2846 = vmatpush1.msra.mxu0 0.0
      %2847 = vmatprep.subr.mxu0 0.0
      %2848 = vmatpush1.msra.mxu0 0.0
      %2849 = vmatprep.subr.mxu0 0.0
      %2850 = vmatpush1.msra.mxu0 0.0
      %2851 = vmatprep.mubr.f32.mxu0 0.0
      %2852 = vmatmul.mubr.f32.gmra.mrb[0].mxu0 %v2614
      %v2853 = vpop.f32.mrb[0].mxu0
      %v2854 = vadd.f32 0.0, %v2853
      %v2855 = vpop.f32.mrb[0].mxu0
      %v2856 = vadd.f32 0.0, %v2855
      %2857 = vdwg.mxu0
      %v2858 = vadd.f32 %v2785, %v2854
      %v2859 = vadd.f32 %v2786, %v2856
      %v2860 = vxor.u32 %v2858, 2147483648
      %v2861 = vxor.u32 %v2859, 2147483648
      %v2862 = vmul.f32 %v2860, 1.442695
      %v2863 = vpow.pop %v2862
      %v2864 = vmul.f32 %v2861, 1.442695
      %v2865 = vpow.pop %v2864
      %v2866 = vadd.f32 %v2863, 1.0
      %v2867 = vadd.f32 %v2865, 1.0
      %v2868 = vrcp.pop %v2866
      %v2869 = vmul.f32 1.0, %v2868
      %v2870 = vrcp.pop %v2867
      %v2871 = vmul.f32 1.0, %v2870
      %2872 = vmatprep.subr.mxu0 0.0
      %2873 = vmatpush1.msra.mxu0 %v902
      %2874 = vmatprep.subr.mxu0 0.0
      %2875 = vmatpush1.msra.mxu0 %v903
      %2876 = vmatprep.subr.mxu0 0.0
      %2877 = vmatpush1.msra.mxu0 %v904
      %2878 = vmatprep.subr.mxu0 0.0
      %2879 = vmatpush1.msra.mxu0 %v905
      %2880 = vmatprep.subr.mxu0 0.0
      %2881 = vmatpush1.msra.mxu0 %v906
      %2882 = vmatprep.subr.mxu0 0.0
      %2883 = vmatpush1.msra.mxu0 %v907
      %2884 = vmatprep.subr.mxu0 0.0
      %2885 = vmatpush1.msra.mxu0 %v908
      %2886 = vmatprep.subr.mxu0 0.0
      %2887 = vmatpush1.msra.mxu0 %v909
      %2888 = vmatprep.subr.mxu0 0.0
      %2889 = vmatpush1.msra.mxu0 %v910
      %2890 = vmatprep.subr.mxu0 0.0
      %2891 = vmatpush1.msra.mxu0 %v911
      %2892 = vmatprep.subr.mxu0 0.0
      %2893 = vmatpush1.msra.mxu0 %v912
      %2894 = vmatprep.subr.mxu0 0.0
      %2895 = vmatpush1.msra.mxu0 %v913
      %2896 = vmatprep.subr.mxu0 0.0
      %2897 = vmatpush1.msra.mxu0 %v914
      %2898 = vmatprep.subr.mxu0 0.0
      %2899 = vmatpush1.msra.mxu0 %v915
      %2900 = vmatprep.subr.mxu0 0.0
      %2901 = vmatpush1.msra.mxu0 %v916
      %2902 = vmatprep.subr.mxu0 0.0
      %2903 = vmatpush1.msra.mxu0 %v917
      %2904 = vmatprep.subr.mxu0 0.0
      %2905 = vmatpush1.msra.mxu0 %v918
      %2906 = vmatprep.subr.mxu0 0.0
      %2907 = vmatpush1.msra.mxu0 %v919
      %2908 = vmatprep.subr.mxu0 0.0
      %2909 = vmatpush1.msra.mxu0 %v920
      %2910 = vmatprep.subr.mxu0 0.0
      %2911 = vmatpush1.msra.mxu0 %v921
      %2912 = vmatprep.subr.mxu0 0.0
      %2913 = vmatpush1.msra.mxu0 %v922
      %2914 = vmatprep.subr.mxu0 0.0
      %2915 = vmatpush1.msra.mxu0 %v923
      %2916 = vmatprep.subr.mxu0 0.0
      %2917 = vmatpush1.msra.mxu0 %v924
      %2918 = vmatprep.subr.mxu0 0.0
      %2919 = vmatpush1.msra.mxu0 %v925
      %2920 = vmatprep.subr.mxu0 0.0
      %2921 = vmatpush1.msra.mxu0 %v926
      %2922 = vmatprep.subr.mxu0 0.0
      %2923 = vmatpush1.msra.mxu0 %v927
      %2924 = vmatprep.subr.mxu0 0.0
      %2925 = vmatpush1.msra.mxu0 %v928
      %2926 = vmatprep.subr.mxu0 0.0
      %2927 = vmatpush1.msra.mxu0 %v929
      %2928 = vmatprep.subr.mxu0 0.0
      %2929 = vmatpush1.msra.mxu0 %v930
      %2930 = vmatprep.subr.mxu0 0.0
      %2931 = vmatpush1.msra.mxu0 %v931
      %2932 = vmatprep.subr.mxu0 0.0
      %2933 = vmatpush1.msra.mxu0 %v932
      %2934 = vmatprep.subr.mxu0 0.0
      %2935 = vmatpush1.msra.mxu0 %v933
      %2936 = vmatprep.mubr.f32.mxu0 %v2871
      %2937 = vmatmul.mubr.f32.gmra.mrb[0].mxu0 %v2869
      %v2938 = vpop.f32.mrb[0].mxu0
      %v2939 = vadd.f32 %v962, %v2938
      %v2940 = vpop.f32.mrb[0].mxu0
      %2941 = vdwg.mxu0
      %v2942 = vxor.u32 %v2939, 2147483648
      %v2943 = vmul.f32 %v2942, 1.442695
      %v2944 = vpow.pop %v2943
      %v2945 = vadd.f32 %v2944, 1.0
      %v2946 = vrcp.pop %v2945
      %v2947 = vmul.f32 1.0, %v2946
      %v2948 = vsub.f32 %v2869, %v2871
      %v2949 = vmul.f32 %v2947, %v2948
      %v2950 = vadd.f32 %v2871, %v2949
      %v2951 = vmul.f32 %v2950, %v2614
      %s2952 = scalar_lea.vmem %s316, 32
      %v2953 = vld [vmem:[%s2952] sm:$0xff]
      %2954 = vmatprep.subr.mxu0 0.0
      %2955 = vmatpush1.msra.mxu0 %v934
      %2956 = vmatprep.subr.mxu0 0.0
      %2957 = vmatpush1.msra.mxu0 %v935
      %2958 = vmatprep.subr.mxu0 0.0
      %2959 = vmatpush1.msra.mxu0 %v936
      %2960 = vmatprep.subr.mxu0 0.0
      %2961 = vmatpush1.msra.mxu0 %v937
      %2962 = vmatprep.subr.mxu0 0.0
      %2963 = vmatpush1.msra.mxu0 %v938
      %2964 = vmatprep.subr.mxu0 0.0
      %2965 = vmatpush1.msra.mxu0 %v939
      %2966 = vmatprep.subr.mxu0 0.0
      %2967 = vmatpush1.msra.mxu0 %v940
      %2968 = vmatprep.subr.mxu0 0.0
      %2969 = vmatpush1.msra.mxu0 %v941
      %2970 = vmatprep.subr.mxu0 0.0
      %2971 = vmatpush1.msra.mxu0 %v942
      %2972 = vmatprep.subr.mxu0 0.0
      %2973 = vmatpush1.msra.mxu0 %v943
      %2974 = vmatprep.subr.mxu0 0.0
      %2975 = vmatpush1.msra.mxu0 %v944
      %2976 = vmatprep.subr.mxu0 0.0
      %2977 = vmatpush1.msra.mxu0 %v945
      %2978 = vmatprep.subr.mxu0 0.0
      %2979 = vmatpush1.msra.mxu0 %v946
      %2980 = vmatprep.subr.mxu0 0.0
      %2981 = vmatpush1.msra.mxu0 %v947
      %2982 = vmatprep.subr.mxu0 0.0
      %2983 = vmatpush1.msra.mxu0 %v948
      %2984 = vmatprep.subr.mxu0 0.0
      %2985 = vmatpush1.msra.mxu0 %v949
      %2986 = vmatprep.subr.mxu0 0.0
      %2987 = vmatpush1.msra.mxu0 0.0
      %2988 = vmatprep.subr.mxu0 0.0
      %2989 = vmatpush1.msra.mxu0 0.0
      %2990 = vmatprep.subr.mxu0 0.0
      %2991 = vmatpush1.msra.mxu0 0.0
      %2992 = vmatprep.subr.mxu0 0.0
      %2993 = vmatpush1.msra.mxu0 0.0
      %2994 = vmatprep.subr.mxu0 0.0
      %2995 = vmatpush1.msra.mxu0 0.0
      %2996 = vmatprep.subr.mxu0 0.0
      %2997 = vmatpush1.msra.mxu0 0.0
      %2998 = vmatprep.subr.mxu0 0.0
      %2999 = vmatpush1.msra.mxu0 0.0
      %3000 = vmatprep.subr.mxu0 0.0
      %3001 = vmatpush1.msra.mxu0 0.0
      %3002 = vmatprep.subr.mxu0 0.0
      %3003 = vmatpush1.msra.mxu0 0.0
      %3004 = vmatprep.subr.mxu0 0.0
      %3005 = vmatpush1.msra.mxu0 0.0
      %3006 = vmatprep.subr.mxu0 0.0
      %3007 = vmatpush1.msra.mxu0 0.0
      %3008 = vmatprep.subr.mxu0 0.0
      %3009 = vmatpush1.msra.mxu0 0.0
      %3010 = vmatprep.subr.mxu0 0.0
      %3011 = vmatpush1.msra.mxu0 0.0
      %3012 = vmatprep.subr.mxu0 0.0
      %3013 = vmatpush1.msra.mxu0 0.0
      %3014 = vmatprep.subr.mxu0 0.0
      %3015 = vmatpush1.msra.mxu0 0.0
      %3016 = vmatprep.subr.mxu0 0.0
      %3017 = vmatpush1.msra.mxu0 0.0
      %3018 = vmatprep.mubr.f32.mxu0 0.0
      %3019 = vmatmul.mubr.f32.gmra.mrb[0].mxu0 %v2951
      %v3020 = vpop.f32.mrb[0].mxu0
      %v3021 = vadd.f32 0.0, %v3020
      %v3022 = vpop.f32.mrb[0].mxu0
      %3023 = vdwg.mxu0
      %v3024 = vadd.f32 %v2953, %v3021
      %v3025 = vtanh.pop %v3024
      %v3026 = vsub.f32 %v2614, %v3025
      %v3027 = vmul.f32 %v2783, %v3026
      %v3028 = vadd.f32 %v3025, %v3027
      %s3029 = scalar_lea.vmem %s329, 32
      %3030 = vst [vmem:[%s3029] sm:$0xff] %v3028
      %s3031 = scalar_lea.vmem %s296, 80
      %v3032 = vld [vmem:[%s3031] sm:$0xff]
      %v3033 = vld [vmem:[%s3031 + $0x8] sm:$0xff]
      %3034 = vmatprep.subr.mxu0 %v807
      %3035 = vmatpush1.msra.mxu0 %v806
      %3036 = vmatprep.subr.mxu0 %v809
      %3037 = vmatpush1.msra.mxu0 %v808
      %3038 = vmatprep.subr.mxu0 %v811
      %3039 = vmatpush1.msra.mxu0 %v810
      %3040 = vmatprep.subr.mxu0 %v813
      %3041 = vmatpush1.msra.mxu0 %v812
      %3042 = vmatprep.subr.mxu0 %v815
      %3043 = vmatpush1.msra.mxu0 %v814
      %3044 = vmatprep.subr.mxu0 %v817
      %3045 = vmatpush1.msra.mxu0 %v816
      %3046 = vmatprep.subr.mxu0 %v819
      %3047 = vmatpush1.msra.mxu0 %v818
      %3048 = vmatprep.subr.mxu0 %v821
      %3049 = vmatpush1.msra.mxu0 %v820
      %3050 = vmatprep.subr.mxu0 %v823
      %3051 = vmatpush1.msra.mxu0 %v822
      %3052 = vmatprep.subr.mxu0 %v825
      %3053 = vmatpush1.msra.mxu0 %v824
      %3054 = vmatprep.subr.mxu0 %v827
      %3055 = vmatpush1.msra.mxu0 %v826
      %3056 = vmatprep.subr.mxu0 %v829
      %3057 = vmatpush1.msra.mxu0 %v828
      %3058 = vmatprep.subr.mxu0 %v831
      %3059 = vmatpush1.msra.mxu0 %v830
      %3060 = vmatprep.subr.mxu0 %v833
      %3061 = vmatpush1.msra.mxu0 %v832
      %3062 = vmatprep.subr.mxu0 %v835
      %3063 = vmatpush1.msra.mxu0 %v834
      %3064 = vmatprep.subr.mxu0 %v837
      %3065 = vmatpush1.msra.mxu0 %v836
      %3066 = vmatprep.subr.mxu0 0.0
      %3067 = vmatpush1.msra.mxu0 0.0
      %3068 = vmatprep.subr.mxu0 0.0
      %3069 = vmatpush1.msra.mxu0 0.0
      %3070 = vmatprep.subr.mxu0 0.0
      %3071 = vmatpush1.msra.mxu0 0.0
      %3072 = vmatprep.subr.mxu0 0.0
      %3073 = vmatpush1.msra.mxu0 0.0
      %3074 = vmatprep.subr.mxu0 0.0
      %3075 = vmatpush1.msra.mxu0 0.0
      %3076 = vmatprep.subr.mxu0 0.0
      %3077 = vmatpush1.msra.mxu0 0.0
      %3078 = vmatprep.subr.mxu0 0.0
      %3079 = vmatpush1.msra.mxu0 0.0
      %3080 = vmatprep.subr.mxu0 0.0
      %3081 = vmatpush1.msra.mxu0 0.0
      %3082 = vmatprep.subr.mxu0 0.0
      %3083 = vmatpush1.msra.mxu0 0.0
      %3084 = vmatprep.subr.mxu0 0.0
      %3085 = vmatpush1.msra.mxu0 0.0
      %3086 = vmatprep.subr.mxu0 0.0
      %3087 = vmatpush1.msra.mxu0 0.0
      %3088 = vmatprep.subr.mxu0 0.0
      %3089 = vmatpush1.msra.mxu0 0.0
      %3090 = vmatprep.subr.mxu0 0.0
      %3091 = vmatpush1.msra.mxu0 0.0
      %3092 = vmatprep.subr.mxu0 0.0
      %3093 = vmatpush1.msra.mxu0 0.0
      %3094 = vmatprep.subr.mxu0 0.0
      %3095 = vmatpush1.msra.mxu0 0.0
      %3096 = vmatprep.subr.mxu0 0.0
      %3097 = vmatpush1.msra.mxu0 0.0
      %3098 = vmatprep.mubr.f32.mxu0 0.0
      %3099 = vmatmul.mubr.f32.gmra.mrb[0].mxu0 %v3028
      %v3100 = vpop.f32.mrb[0].mxu0
      %v3101 = vadd.f32 0.0, %v3100
      %v3102 = vpop.f32.mrb[0].mxu0
      %v3103 = vadd.f32 0.0, %v3102
      %3104 = vdwg.mxu0
      %v3105 = vadd.f32 %v3032, %v3101
      %v3106 = vadd.f32 %v3033, %v3103
      %v3107 = vxor.u32 %v3105, 2147483648
      %v3108 = vxor.u32 %v3106, 2147483648
      %v3109 = vmul.f32 %v3107, 1.442695
      %v3110 = vpow.pop %v3109
      %v3111 = vmul.f32 %v3108, 1.442695
      %v3112 = vpow.pop %v3111
      %v3113 = vadd.f32 %v3110, 1.0
      %v3114 = vadd.f32 %v3112, 1.0
      %v3115 = vrcp.pop %v3113
      %v3116 = vmul.f32 1.0, %v3115
      %v3117 = vrcp.pop %v3114
      %v3118 = vmul.f32 1.0, %v3117
      %3119 = vmatprep.subr.mxu0 0.0
      %3120 = vmatpush1.msra.mxu0 %v870
      %3121 = vmatprep.subr.mxu0 0.0
      %3122 = vmatpush1.msra.mxu0 %v871
      %3123 = vmatprep.subr.mxu0 0.0
      %3124 = vmatpush1.msra.mxu0 %v872
      %3125 = vmatprep.subr.mxu0 0.0
      %3126 = vmatpush1.msra.mxu0 %v873
      %3127 = vmatprep.subr.mxu0 0.0
      %3128 = vmatpush1.msra.mxu0 %v874
      %3129 = vmatprep.subr.mxu0 0.0
      %3130 = vmatpush1.msra.mxu0 %v875
      %3131 = vmatprep.subr.mxu0 0.0
      %3132 = vmatpush1.msra.mxu0 %v876
      %3133 = vmatprep.subr.mxu0 0.0
      %3134 = vmatpush1.msra.mxu0 %v877
      %3135 = vmatprep.subr.mxu0 0.0
      %3136 = vmatpush1.msra.mxu0 %v878
      %3137 = vmatprep.subr.mxu0 0.0
      %3138 = vmatpush1.msra.mxu0 %v879
      %3139 = vmatprep.subr.mxu0 0.0
      %3140 = vmatpush1.msra.mxu0 %v880
      %3141 = vmatprep.subr.mxu0 0.0
      %3142 = vmatpush1.msra.mxu0 %v881
      %3143 = vmatprep.subr.mxu0 0.0
      %3144 = vmatpush1.msra.mxu0 %v882
      %3145 = vmatprep.subr.mxu0 0.0
      %3146 = vmatpush1.msra.mxu0 %v883
      %3147 = vmatprep.subr.mxu0 0.0
      %3148 = vmatpush1.msra.mxu0 %v884
      %3149 = vmatprep.subr.mxu0 0.0
      %3150 = vmatpush1.msra.mxu0 %v885
      %3151 = vmatprep.subr.mxu0 0.0
      %3152 = vmatpush1.msra.mxu0 %v886
      %3153 = vmatprep.subr.mxu0 0.0
      %3154 = vmatpush1.msra.mxu0 %v887
      %3155 = vmatprep.subr.mxu0 0.0
      %3156 = vmatpush1.msra.mxu0 %v888
      %3157 = vmatprep.subr.mxu0 0.0
      %3158 = vmatpush1.msra.mxu0 %v889
      %3159 = vmatprep.subr.mxu0 0.0
      %3160 = vmatpush1.msra.mxu0 %v890
      %3161 = vmatprep.subr.mxu0 0.0
      %3162 = vmatpush1.msra.mxu0 %v891
      %3163 = vmatprep.subr.mxu0 0.0
      %3164 = vmatpush1.msra.mxu0 %v892
      %3165 = vmatprep.subr.mxu0 0.0
      %3166 = vmatpush1.msra.mxu0 %v893
      %3167 = vmatprep.subr.mxu0 0.0
      %3168 = vmatpush1.msra.mxu0 %v894
      %3169 = vmatprep.subr.mxu0 0.0
      %3170 = vmatpush1.msra.mxu0 %v895
      %3171 = vmatprep.subr.mxu0 0.0
      %3172 = vmatpush1.msra.mxu0 %v896
      %3173 = vmatprep.subr.mxu0 0.0
      %3174 = vmatpush1.msra.mxu0 %v897
      %3175 = vmatprep.subr.mxu0 0.0
      %3176 = vmatpush1.msra.mxu0 %v898
      %3177 = vmatprep.subr.mxu0 0.0
      %3178 = vmatpush1.msra.mxu0 %v899
      %3179 = vmatprep.subr.mxu0 0.0
      %3180 = vmatpush1.msra.mxu0 %v900
      %3181 = vmatprep.subr.mxu0 0.0
      %3182 = vmatpush1.msra.mxu0 %v901
      %3183 = vmatprep.mubr.f32.mxu0 %v3118
      %3184 = vmatmul.mubr.f32.gmra.mrb[0].mxu0 %v3116
      %v3185 = vpop.f32.mrb[0].mxu0
      %v3186 = vadd.f32 %v955, %v3185
      %v3187 = vpop.f32.mrb[0].mxu0
      %3188 = vdwg.mxu0
      %v3189 = vxor.u32 %v3186, 2147483648
      %v3190 = vmul.f32 %v3189, 1.442695
      %v3191 = vpow.pop %v3190
      %v3192 = vadd.f32 %v3191, 1.0
      %v3193 = vrcp.pop %v3192
      %v3194 = vmul.f32 1.0, %v3193
      %v3195 = vsub.f32 %v3116, %v3118
      %v3196 = vmul.f32 %v3194, %v3195
      %v3197 = vadd.f32 %v3118, %v3196
      %s3198 = scalar_lea.vmem %s307, 80
      %v3199 = vld [vmem:[%s3198] sm:$0xff]
      %v3200 = vld [vmem:[%s3198 + $0x8] sm:$0xff]
      %3201 = vmatprep.subr.mxu0 %v839
      %3202 = vmatpush1.msra.mxu0 %v838
      %3203 = vmatprep.subr.mxu0 %v841
      %3204 = vmatpush1.msra.mxu0 %v840
      %3205 = vmatprep.subr.mxu0 %v843
      %3206 = vmatpush1.msra.mxu0 %v842
      %3207 = vmatprep.subr.mxu0 %v845
      %3208 = vmatpush1.msra.mxu0 %v844
      %3209 = vmatprep.subr.mxu0 %v847
      %3210 = vmatpush1.msra.mxu0 %v846
      %3211 = vmatprep.subr.mxu0 %v849
      %3212 = vmatpush1.msra.mxu0 %v848
      %3213 = vmatprep.subr.mxu0 %v851
      %3214 = vmatpush1.msra.mxu0 %v850
      %3215 = vmatprep.subr.mxu0 %v853
      %3216 = vmatpush1.msra.mxu0 %v852
      %3217 = vmatprep.subr.mxu0 %v855
      %3218 = vmatpush1.msra.mxu0 %v854
      %3219 = vmatprep.subr.mxu0 %v857
      %3220 = vmatpush1.msra.mxu0 %v856
      %3221 = vmatprep.subr.mxu0 %v859
      %3222 = vmatpush1.msra.mxu0 %v858
      %3223 = vmatprep.subr.mxu0 %v861
      %3224 = vmatpush1.msra.mxu0 %v860
      %3225 = vmatprep.subr.mxu0 %v863
      %3226 = vmatpush1.msra.mxu0 %v862
      %3227 = vmatprep.subr.mxu0 %v865
      %3228 = vmatpush1.msra.mxu0 %v864
      %3229 = vmatprep.subr.mxu0 %v867
      %3230 = vmatpush1.msra.mxu0 %v866
      %3231 = vmatprep.subr.mxu0 %v869
      %3232 = vmatpush1.msra.mxu0 %v868
      %3233 = vmatprep.subr.mxu0 0.0
      %3234 = vmatpush1.msra.mxu0 0.0
      %3235 = vmatprep.subr.mxu0 0.0
      %3236 = vmatpush1.msra.mxu0 0.0
      %3237 = vmatprep.subr.mxu0 0.0
      %3238 = vmatpush1.msra.mxu0 0.0
      %3239 = vmatprep.subr.mxu0 0.0
      %3240 = vmatpush1.msra.mxu0 0.0
      %3241 = vmatprep.subr.mxu0 0.0
      %3242 = vmatpush1.msra.mxu0 0.0
      %3243 = vmatprep.subr.mxu0 0.0
      %3244 = vmatpush1.msra.mxu0 0.0
      %3245 = vmatprep.subr.mxu0 0.0
      %3246 = vmatpush1.msra.mxu0 0.0
      %3247 = vmatprep.subr.mxu0 0.0
      %3248 = vmatpush1.msra.mxu0 0.0
      %3249 = vmatprep.subr.mxu0 0.0
      %3250 = vmatpush1.msra.mxu0 0.0
      %3251 = vmatprep.subr.mxu0 0.0
      %3252 = vmatpush1.msra.mxu0 0.0
      %3253 = vmatprep.subr.mxu0 0.0
      %3254 = vmatpush1.msra.mxu0 0.0
      %3255 = vmatprep.subr.mxu0 0.0
      %3256 = vmatpush1.msra.mxu0 0.0
      %3257 = vmatprep.subr.mxu0 0.0
      %3258 = vmatpush1.msra.mxu0 0.0
      %3259 = vmatprep.subr.mxu0 0.0
      %3260 = vmatpush1.msra.mxu0 0.0
      %3261 = vmatprep.subr.mxu0 0.0
      %3262 = vmatpush1.msra.mxu0 0.0
      %3263 = vmatprep.subr.mxu0 0.0
      %3264 = vmatpush1.msra.mxu0 0.0
      %3265 = vmatprep.mubr.f32.mxu0 0.0
      %3266 = vmatmul.mubr.f32.gmra.mrb[0].mxu0 %v3028
      %v3267 = vpop.f32.mrb[0].mxu0
      %v3268 = vadd.f32 0.0, %v3267
      %v3269 = vpop.f32.mrb[0].mxu0
      %v3270 = vadd.f32 0.0, %v3269
      %3271 = vdwg.mxu0
      %v3272 = vadd.f32 %v3199, %v3268
      %v3273 = vadd.f32 %v3200, %v3270
      %v3274 = vxor.u32 %v3272, 2147483648
      %v3275 = vxor.u32 %v3273, 2147483648
      %v3276 = vmul.f32 %v3274, 1.442695
      %v3277 = vpow.pop %v3276
      %v3278 = vmul.f32 %v3275, 1.442695
      %v3279 = vpow.pop %v3278
      %v3280 = vadd.f32 %v3277, 1.0
      %v3281 = vadd.f32 %v3279, 1.0
      %v3282 = vrcp.pop %v3280
      %v3283 = vmul.f32 1.0, %v3282
      %v3284 = vrcp.pop %v3281
      %v3285 = vmul.f32 1.0, %v3284
      %3286 = vmatprep.subr.mxu0 0.0
      %3287 = vmatpush1.msra.mxu0 %v902
      %3288 = vmatprep.subr.mxu0 0.0
      %3289 = vmatpush1.msra.mxu0 %v903
      %3290 = vmatprep.subr.mxu0 0.0
      %3291 = vmatpush1.msra.mxu0 %v904
      %3292 = vmatprep.subr.mxu0 0.0
      %3293 = vmatpush1.msra.mxu0 %v905
      %3294 = vmatprep.subr.mxu0 0.0
      %3295 = vmatpush1.msra.mxu0 %v906
      %3296 = vmatprep.subr.mxu0 0.0
      %3297 = vmatpush1.msra.mxu0 %v907
      %3298 = vmatprep.subr.mxu0 0.0
      %3299 = vmatpush1.msra.mxu0 %v908
      %3300 = vmatprep.subr.mxu0 0.0
      %3301 = vmatpush1.msra.mxu0 %v909
      %3302 = vmatprep.subr.mxu0 0.0
      %3303 = vmatpush1.msra.mxu0 %v910
      %3304 = vmatprep.subr.mxu0 0.0
      %3305 = vmatpush1.msra.mxu0 %v911
      %3306 = vmatprep.subr.mxu0 0.0
      %3307 = vmatpush1.msra.mxu0 %v912
      %3308 = vmatprep.subr.mxu0 0.0
      %3309 = vmatpush1.msra.mxu0 %v913
      %3310 = vmatprep.subr.mxu0 0.0
      %3311 = vmatpush1.msra.mxu0 %v914
      %3312 = vmatprep.subr.mxu0 0.0
      %3313 = vmatpush1.msra.mxu0 %v915
      %3314 = vmatprep.subr.mxu0 0.0
      %3315 = vmatpush1.msra.mxu0 %v916
      %3316 = vmatprep.subr.mxu0 0.0
      %3317 = vmatpush1.msra.mxu0 %v917
      %3318 = vmatprep.subr.mxu0 0.0
      %3319 = vmatpush1.msra.mxu0 %v918
      %3320 = vmatprep.subr.mxu0 0.0
      %3321 = vmatpush1.msra.mxu0 %v919
      %3322 = vmatprep.subr.mxu0 0.0
      %3323 = vmatpush1.msra.mxu0 %v920
      %3324 = vmatprep.subr.mxu0 0.0
      %3325 = vmatpush1.msra.mxu0 %v921
      %3326 = vmatprep.subr.mxu0 0.0
      %3327 = vmatpush1.msra.mxu0 %v922
      %3328 = vmatprep.subr.mxu0 0.0
      %3329 = vmatpush1.msra.mxu0 %v923
      %3330 = vmatprep.subr.mxu0 0.0
      %3331 = vmatpush1.msra.mxu0 %v924
      %3332 = vmatprep.subr.mxu0 0.0
      %3333 = vmatpush1.msra.mxu0 %v925
      %3334 = vmatprep.subr.mxu0 0.0
      %3335 = vmatpush1.msra.mxu0 %v926
      %3336 = vmatprep.subr.mxu0 0.0
      %3337 = vmatpush1.msra.mxu0 %v927
      %3338 = vmatprep.subr.mxu0 0.0
      %3339 = vmatpush1.msra.mxu0 %v928
      %3340 = vmatprep.subr.mxu0 0.0
      %3341 = vmatpush1.msra.mxu0 %v929
      %3342 = vmatprep.subr.mxu0 0.0
      %3343 = vmatpush1.msra.mxu0 %v930
      %3344 = vmatprep.subr.mxu0 0.0
      %3345 = vmatpush1.msra.mxu0 %v931
      %3346 = vmatprep.subr.mxu0 0.0
      %3347 = vmatpush1.msra.mxu0 %v932
      %3348 = vmatprep.subr.mxu0 0.0
      %3349 = vmatpush1.msra.mxu0 %v933
      %3350 = vmatprep.mubr.f32.mxu0 %v3285
      %3351 = vmatmul.mubr.f32.gmra.mrb[0].mxu0 %v3283
      %v3352 = vpop.f32.mrb[0].mxu0
      %v3353 = vadd.f32 %v962, %v3352
      %v3354 = vpop.f32.mrb[0].mxu0
      %3355 = vdwg.mxu0
      %v3356 = vxor.u32 %v3353, 2147483648
      %v3357 = vmul.f32 %v3356, 1.442695
      %v3358 = vpow.pop %v3357
      %v3359 = vadd.f32 %v3358, 1.0
      %v3360 = vrcp.pop %v3359
      %v3361 = vmul.f32 1.0, %v3360
      %v3362 = vsub.f32 %v3283, %v3285
      %v3363 = vmul.f32 %v3361, %v3362
      %v3364 = vadd.f32 %v3285, %v3363
      %v3365 = vmul.f32 %v3364, %v3028
      %s3366 = scalar_lea.vmem %s316, 40
      %v3367 = vld [vmem:[%s3366] sm:$0xff]
      %3368 = vmatprep.subr.mxu0 0.0
      %3369 = vmatpush1.msra.mxu0 %v934
      %3370 = vmatprep.subr.mxu0 0.0
      %3371 = vmatpush1.msra.mxu0 %v935
      %3372 = vmatprep.subr.mxu0 0.0
      %3373 = vmatpush1.msra.mxu0 %v936
      %3374 = vmatprep.subr.mxu0 0.0
      %3375 = vmatpush1.msra.mxu0 %v937
      %3376 = vmatprep.subr.mxu0 0.0
      %3377 = vmatpush1.msra.mxu0 %v938
      %3378 = vmatprep.subr.mxu0 0.0
      %3379 = vmatpush1.msra.mxu0 %v939
      %3380 = vmatprep.subr.mxu0 0.0
      %3381 = vmatpush1.msra.mxu0 %v940
      %3382 = vmatprep.subr.mxu0 0.0
      %3383 = vmatpush1.msra.mxu0 %v941
      %3384 = vmatprep.subr.mxu0 0.0
      %3385 = vmatpush1.msra.mxu0 %v942
      %3386 = vmatprep.subr.mxu0 0.0
      %3387 = vmatpush1.msra.mxu0 %v943
      %3388 = vmatprep.subr.mxu0 0.0
      %3389 = vmatpush1.msra.mxu0 %v944
      %3390 = vmatprep.subr.mxu0 0.0
      %3391 = vmatpush1.msra.mxu0 %v945
      %3392 = vmatprep.subr.mxu0 0.0
      %3393 = vmatpush1.msra.mxu0 %v946
      %3394 = vmatprep.subr.mxu0 0.0
      %3395 = vmatpush1.msra.mxu0 %v947
      %3396 = vmatprep.subr.mxu0 0.0
      %3397 = vmatpush1.msra.mxu0 %v948
      %3398 = vmatprep.subr.mxu0 0.0
      %3399 = vmatpush1.msra.mxu0 %v949
      %3400 = vmatprep.subr.mxu0 0.0
      %3401 = vmatpush1.msra.mxu0 0.0
      %3402 = vmatprep.subr.mxu0 0.0
      %3403 = vmatpush1.msra.mxu0 0.0
      %3404 = vmatprep.subr.mxu0 0.0
      %3405 = vmatpush1.msra.mxu0 0.0
      %3406 = vmatprep.subr.mxu0 0.0
      %3407 = vmatpush1.msra.mxu0 0.0
      %3408 = vmatprep.subr.mxu0 0.0
      %3409 = vmatpush1.msra.mxu0 0.0
      %3410 = vmatprep.subr.mxu0 0.0
      %3411 = vmatpush1.msra.mxu0 0.0
      %3412 = vmatprep.subr.mxu0 0.0
      %3413 = vmatpush1.msra.mxu0 0.0
      %3414 = vmatprep.subr.mxu0 0.0
      %3415 = vmatpush1.msra.mxu0 0.0
      %3416 = vmatprep.subr.mxu0 0.0
      %3417 = vmatpush1.msra.mxu0 0.0
      %3418 = vmatprep.subr.mxu0 0.0
      %3419 = vmatpush1.msra.mxu0 0.0
      %3420 = vmatprep.subr.mxu0 0.0
      %3421 = vmatpush1.msra.mxu0 0.0
      %3422 = vmatprep.subr.mxu0 0.0
      %3423 = vmatpush1.msra.mxu0 0.0
      %3424 = vmatprep.subr.mxu0 0.0
      %3425 = vmatpush1.msra.mxu0 0.0
      %3426 = vmatprep.subr.mxu0 0.0
      %3427 = vmatpush1.msra.mxu0 0.0
      %3428 = vmatprep.subr.mxu0 0.0
      %3429 = vmatpush1.msra.mxu0 0.0
      %3430 = vmatprep.subr.mxu0 0.0
      %3431 = vmatpush1.msra.mxu0 0.0
      %3432 = vmatprep.mubr.f32.mxu0 0.0
      %3433 = vmatmul.mubr.f32.gmra.mrb[0].mxu0 %v3365
      %v3434 = vpop.f32.mrb[0].mxu0
      %v3435 = vadd.f32 0.0, %v3434
      %v3436 = vpop.f32.mrb[0].mxu0
      %3437 = vdwg.mxu0
      %v3438 = vadd.f32 %v3367, %v3435
      %v3439 = vtanh.pop %v3438
      %v3440 = vsub.f32 %v3028, %v3439
      %v3441 = vmul.f32 %v3197, %v3440
      %v3442 = vadd.f32 %v3439, %v3441
      %s3443 = scalar_lea.vmem %s329, 40
      %3444 = vst [vmem:[%s3443] sm:$0xff] %v3442
      %s3445 = scalar_lea.vmem %s296, 96
      %v3446 = vld [vmem:[%s3445] sm:$0xff]
      %v3447 = vld [vmem:[%s3445 + $0x8] sm:$0xff]
      %3448 = vmatprep.subr.mxu0 %v807
      %3449 = vmatpush1.msra.mxu0 %v806
      %3450 = vmatprep.subr.mxu0 %v809
      %3451 = vmatpush1.msra.mxu0 %v808
      %3452 = vmatprep.subr.mxu0 %v811
      %3453 = vmatpush1.msra.mxu0 %v810
      %3454 = vmatprep.subr.mxu0 %v813
      %3455 = vmatpush1.msra.mxu0 %v812
      %3456 = vmatprep.subr.mxu0 %v815
      %3457 = vmatpush1.msra.mxu0 %v814
      %3458 = vmatprep.subr.mxu0 %v817
      %3459 = vmatpush1.msra.mxu0 %v816
      %3460 = vmatprep.subr.mxu0 %v819
      %3461 = vmatpush1.msra.mxu0 %v818
      %3462 = vmatprep.subr.mxu0 %v821
      %3463 = vmatpush1.msra.mxu0 %v820
      %3464 = vmatprep.subr.mxu0 %v823
      %3465 = vmatpush1.msra.mxu0 %v822
      %3466 = vmatprep.subr.mxu0 %v825
      %3467 = vmatpush1.msra.mxu0 %v824
      %3468 = vmatprep.subr.mxu0 %v827
      %3469 = vmatpush1.msra.mxu0 %v826
      %3470 = vmatprep.subr.mxu0 %v829
      %3471 = vmatpush1.msra.mxu0 %v828
      %3472 = vmatprep.subr.mxu0 %v831
      %3473 = vmatpush1.msra.mxu0 %v830
      %3474 = vmatprep.subr.mxu0 %v833
      %3475 = vmatpush1.msra.mxu0 %v832
      %3476 = vmatprep.subr.mxu0 %v835
      %3477 = vmatpush1.msra.mxu0 %v834
      %3478 = vmatprep.subr.mxu0 %v837
      %3479 = vmatpush1.msra.mxu0 %v836
      %3480 = vmatprep.subr.mxu0 0.0
      %3481 = vmatpush1.msra.mxu0 0.0
      %3482 = vmatprep.subr.mxu0 0.0
      %3483 = vmatpush1.msra.mxu0 0.0
      %3484 = vmatprep.subr.mxu0 0.0
      %3485 = vmatpush1.msra.mxu0 0.0
      %3486 = vmatprep.subr.mxu0 0.0
      %3487 = vmatpush1.msra.mxu0 0.0
      %3488 = vmatprep.subr.mxu0 0.0
      %3489 = vmatpush1.msra.mxu0 0.0
      %3490 = vmatprep.subr.mxu0 0.0
      %3491 = vmatpush1.msra.mxu0 0.0
      %3492 = vmatprep.subr.mxu0 0.0
      %3493 = vmatpush1.msra.mxu0 0.0
      %3494 = vmatprep.subr.mxu0 0.0
      %3495 = vmatpush1.msra.mxu0 0.0
      %3496 = vmatprep.subr.mxu0 0.0
      %3497 = vmatpush1.msra.mxu0 0.0
      %3498 = vmatprep.subr.mxu0 0.0
      %3499 = vmatpush1.msra.mxu0 0.0
      %3500 = vmatprep.subr.mxu0 0.0
      %3501 = vmatpush1.msra.mxu0 0.0
      %3502 = vmatprep.subr.mxu0 0.0
      %3503 = vmatpush1.msra.mxu0 0.0
      %3504 = vmatprep.subr.mxu0 0.0
      %3505 = vmatpush1.msra.mxu0 0.0
      %3506 = vmatprep.subr.mxu0 0.0
      %3507 = vmatpush1.msra.mxu0 0.0
      %3508 = vmatprep.subr.mxu0 0.0
      %3509 = vmatpush1.msra.mxu0 0.0
      %3510 = vmatprep.subr.mxu0 0.0
      %3511 = vmatpush1.msra.mxu0 0.0
      %3512 = vmatprep.mubr.f32.mxu0 0.0
      %3513 = vmatmul.mubr.f32.gmra.mrb[0].mxu0 %v3442
      %v3514 = vpop.f32.mrb[0].mxu0
      %v3515 = vadd.f32 0.0, %v3514
      %v3516 = vpop.f32.mrb[0].mxu0
      %v3517 = vadd.f32 0.0, %v3516
      %3518 = vdwg.mxu0
      %v3519 = vadd.f32 %v3446, %v3515
      %v3520 = vadd.f32 %v3447, %v3517
      %v3521 = vxor.u32 %v3519, 2147483648
      %v3522 = vxor.u32 %v3520, 2147483648
      %v3523 = vmul.f32 %v3521, 1.442695
      %v3524 = vpow.pop %v3523
      %v3525 = vmul.f32 %v3522, 1.442695
      %v3526 = vpow.pop %v3525
      %v3527 = vadd.f32 %v3524, 1.0
      %v3528 = vadd.f32 %v3526, 1.0
      %v3529 = vrcp.pop %v3527
      %v3530 = vmul.f32 1.0, %v3529
      %v3531 = vrcp.pop %v3528
      %v3532 = vmul.f32 1.0, %v3531
      %3533 = vmatprep.subr.mxu0 0.0
      %3534 = vmatpush1.msra.mxu0 %v870
      %3535 = vmatprep.subr.mxu0 0.0
      %3536 = vmatpush1.msra.mxu0 %v871
      %3537 = vmatprep.subr.mxu0 0.0
      %3538 = vmatpush1.msra.mxu0 %v872
      %3539 = vmatprep.subr.mxu0 0.0
      %3540 = vmatpush1.msra.mxu0 %v873
      %3541 = vmatprep.subr.mxu0 0.0
      %3542 = vmatpush1.msra.mxu0 %v874
      %3543 = vmatprep.subr.mxu0 0.0
      %3544 = vmatpush1.msra.mxu0 %v875
      %3545 = vmatprep.subr.mxu0 0.0
      %3546 = vmatpush1.msra.mxu0 %v876
      %3547 = vmatprep.subr.mxu0 0.0
      %3548 = vmatpush1.msra.mxu0 %v877
      %3549 = vmatprep.subr.mxu0 0.0
      %3550 = vmatpush1.msra.mxu0 %v878
      %3551 = vmatprep.subr.mxu0 0.0
      %3552 = vmatpush1.msra.mxu0 %v879
      %3553 = vmatprep.subr.mxu0 0.0
      %3554 = vmatpush1.msra.mxu0 %v880
      %3555 = vmatprep.subr.mxu0 0.0
      %3556 = vmatpush1.msra.mxu0 %v881
      %3557 = vmatprep.subr.mxu0 0.0
      %3558 = vmatpush1.msra.mxu0 %v882
      %3559 = vmatprep.subr.mxu0 0.0
      %3560 = vmatpush1.msra.mxu0 %v883
      %3561 = vmatprep.subr.mxu0 0.0
      %3562 = vmatpush1.msra.mxu0 %v884
      %3563 = vmatprep.subr.mxu0 0.0
      %3564 = vmatpush1.msra.mxu0 %v885
      %3565 = vmatprep.subr.mxu0 0.0
      %3566 = vmatpush1.msra.mxu0 %v886
      %3567 = vmatprep.subr.mxu0 0.0
      %3568 = vmatpush1.msra.mxu0 %v887
      %3569 = vmatprep.subr.mxu0 0.0
      %3570 = vmatpush1.msra.mxu0 %v888
      %3571 = vmatprep.subr.mxu0 0.0
      %3572 = vmatpush1.msra.mxu0 %v889
      %3573 = vmatprep.subr.mxu0 0.0
      %3574 = vmatpush1.msra.mxu0 %v890
      %3575 = vmatprep.subr.mxu0 0.0
      %3576 = vmatpush1.msra.mxu0 %v891
      %3577 = vmatprep.subr.mxu0 0.0
      %3578 = vmatpush1.msra.mxu0 %v892
      %3579 = vmatprep.subr.mxu0 0.0
      %3580 = vmatpush1.msra.mxu0 %v893
      %3581 = vmatprep.subr.mxu0 0.0
      %3582 = vmatpush1.msra.mxu0 %v894
      %3583 = vmatprep.subr.mxu0 0.0
      %3584 = vmatpush1.msra.mxu0 %v895
      %3585 = vmatprep.subr.mxu0 0.0
      %3586 = vmatpush1.msra.mxu0 %v896
      %3587 = vmatprep.subr.mxu0 0.0
      %3588 = vmatpush1.msra.mxu0 %v897
      %3589 = vmatprep.subr.mxu0 0.0
      %3590 = vmatpush1.msra.mxu0 %v898
      %3591 = vmatprep.subr.mxu0 0.0
      %3592 = vmatpush1.msra.mxu0 %v899
      %3593 = vmatprep.subr.mxu0 0.0
      %3594 = vmatpush1.msra.mxu0 %v900
      %3595 = vmatprep.subr.mxu0 0.0
      %3596 = vmatpush1.msra.mxu0 %v901
      %3597 = vmatprep.mubr.f32.mxu0 %v3532
      %3598 = vmatmul.mubr.f32.gmra.mrb[0].mxu0 %v3530
      %v3599 = vpop.f32.mrb[0].mxu0
      %v3600 = vadd.f32 %v955, %v3599
      %v3601 = vpop.f32.mrb[0].mxu0
      %3602 = vdwg.mxu0
      %v3603 = vxor.u32 %v3600, 2147483648
      %v3604 = vmul.f32 %v3603, 1.442695
      %v3605 = vpow.pop %v3604
      %v3606 = vadd.f32 %v3605, 1.0
      %v3607 = vrcp.pop %v3606
      %v3608 = vmul.f32 1.0, %v3607
      %v3609 = vsub.f32 %v3530, %v3532
      %v3610 = vmul.f32 %v3608, %v3609
      %v3611 = vadd.f32 %v3532, %v3610
      %s3612 = scalar_lea.vmem %s307, 96
      %v3613 = vld [vmem:[%s3612] sm:$0xff]
      %v3614 = vld [vmem:[%s3612 + $0x8] sm:$0xff]
      %3615 = vmatprep.subr.mxu0 %v839
      %3616 = vmatpush1.msra.mxu0 %v838
      %3617 = vmatprep.subr.mxu0 %v841
      %3618 = vmatpush1.msra.mxu0 %v840
      %3619 = vmatprep.subr.mxu0 %v843
      %3620 = vmatpush1.msra.mxu0 %v842
      %3621 = vmatprep.subr.mxu0 %v845
      %3622 = vmatpush1.msra.mxu0 %v844
      %3623 = vmatprep.subr.mxu0 %v847
      %3624 = vmatpush1.msra.mxu0 %v846
      %3625 = vmatprep.subr.mxu0 %v849
      %3626 = vmatpush1.msra.mxu0 %v848
      %3627 = vmatprep.subr.mxu0 %v851
      %3628 = vmatpush1.msra.mxu0 %v850
      %3629 = vmatprep.subr.mxu0 %v853
      %3630 = vmatpush1.msra.mxu0 %v852
      %3631 = vmatprep.subr.mxu0 %v855
      %3632 = vmatpush1.msra.mxu0 %v854
      %3633 = vmatprep.subr.mxu0 %v857
      %3634 = vmatpush1.msra.mxu0 %v856
      %3635 = vmatprep.subr.mxu0 %v859
      %3636 = vmatpush1.msra.mxu0 %v858
      %3637 = vmatprep.subr.mxu0 %v861
      %3638 = vmatpush1.msra.mxu0 %v860
      %3639 = vmatprep.subr.mxu0 %v863
      %3640 = vmatpush1.msra.mxu0 %v862
      %3641 = vmatprep.subr.mxu0 %v865
      %3642 = vmatpush1.msra.mxu0 %v864
      %3643 = vmatprep.subr.mxu0 %v867
      %3644 = vmatpush1.msra.mxu0 %v866
      %3645 = vmatprep.subr.mxu0 %v869
      %3646 = vmatpush1.msra.mxu0 %v868
      %3647 = vmatprep.subr.mxu0 0.0
      %3648 = vmatpush1.msra.mxu0 0.0
      %3649 = vmatprep.subr.mxu0 0.0
      %3650 = vmatpush1.msra.mxu0 0.0
      %3651 = vmatprep.subr.mxu0 0.0
      %3652 = vmatpush1.msra.mxu0 0.0
      %3653 = vmatprep.subr.mxu0 0.0
      %3654 = vmatpush1.msra.mxu0 0.0
      %3655 = vmatprep.subr.mxu0 0.0
      %3656 = vmatpush1.msra.mxu0 0.0
      %3657 = vmatprep.subr.mxu0 0.0
      %3658 = vmatpush1.msra.mxu0 0.0
      %3659 = vmatprep.subr.mxu0 0.0
      %3660 = vmatpush1.msra.mxu0 0.0
      %3661 = vmatprep.subr.mxu0 0.0
      %3662 = vmatpush1.msra.mxu0 0.0
      %3663 = vmatprep.subr.mxu0 0.0
      %3664 = vmatpush1.msra.mxu0 0.0
      %3665 = vmatprep.subr.mxu0 0.0
      %3666 = vmatpush1.msra.mxu0 0.0
      %3667 = vmatprep.subr.mxu0 0.0
      %3668 = vmatpush1.msra.mxu0 0.0
      %3669 = vmatprep.subr.mxu0 0.0
      %3670 = vmatpush1.msra.mxu0 0.0
      %3671 = vmatprep.subr.mxu0 0.0
      %3672 = vmatpush1.msra.mxu0 0.0
      %3673 = vmatprep.subr.mxu0 0.0
      %3674 = vmatpush1.msra.mxu0 0.0
      %3675 = vmatprep.subr.mxu0 0.0
      %3676 = vmatpush1.msra.mxu0 0.0
      %3677 = vmatprep.subr.mxu0 0.0
      %3678 = vmatpush1.msra.mxu0 0.0
      %3679 = vmatprep.mubr.f32.mxu0 0.0
      %3680 = vmatmul.mubr.f32.gmra.mrb[0].mxu0 %v3442
      %v3681 = vpop.f32.mrb[0].mxu0
      %v3682 = vadd.f32 0.0, %v3681
      %v3683 = vpop.f32.mrb[0].mxu0
      %v3684 = vadd.f32 0.0, %v3683
      %3685 = vdwg.mxu0
      %v3686 = vadd.f32 %v3613, %v3682
      %v3687 = vadd.f32 %v3614, %v3684
      %v3688 = vxor.u32 %v3686, 2147483648
      %v3689 = vxor.u32 %v3687, 2147483648
      %v3690 = vmul.f32 %v3688, 1.442695
      %v3691 = vpow.pop %v3690
      %v3692 = vmul.f32 %v3689, 1.442695
      %v3693 = vpow.pop %v3692
      %v3694 = vadd.f32 %v3691, 1.0
      %v3695 = vadd.f32 %v3693, 1.0
      %v3696 = vrcp.pop %v3694
      %v3697 = vmul.f32 1.0, %v3696
      %v3698 = vrcp.pop %v3695
      %v3699 = vmul.f32 1.0, %v3698
      %3700 = vmatprep.subr.mxu0 0.0
      %3701 = vmatpush1.msra.mxu0 %v902
      %3702 = vmatprep.subr.mxu0 0.0
      %3703 = vmatpush1.msra.mxu0 %v903
      %3704 = vmatprep.subr.mxu0 0.0
      %3705 = vmatpush1.msra.mxu0 %v904
      %3706 = vmatprep.subr.mxu0 0.0
      %3707 = vmatpush1.msra.mxu0 %v905
      %3708 = vmatprep.subr.mxu0 0.0
      %3709 = vmatpush1.msra.mxu0 %v906
      %3710 = vmatprep.subr.mxu0 0.0
      %3711 = vmatpush1.msra.mxu0 %v907
      %3712 = vmatprep.subr.mxu0 0.0
      %3713 = vmatpush1.msra.mxu0 %v908
      %3714 = vmatprep.subr.mxu0 0.0
      %3715 = vmatpush1.msra.mxu0 %v909
      %3716 = vmatprep.subr.mxu0 0.0
      %3717 = vmatpush1.msra.mxu0 %v910
      %3718 = vmatprep.subr.mxu0 0.0
      %3719 = vmatpush1.msra.mxu0 %v911
      %3720 = vmatprep.subr.mxu0 0.0
      %3721 = vmatpush1.msra.mxu0 %v912
      %3722 = vmatprep.subr.mxu0 0.0
      %3723 = vmatpush1.msra.mxu0 %v913
      %3724 = vmatprep.subr.mxu0 0.0
      %3725 = vmatpush1.msra.mxu0 %v914
      %3726 = vmatprep.subr.mxu0 0.0
      %3727 = vmatpush1.msra.mxu0 %v915
      %3728 = vmatprep.subr.mxu0 0.0
      %3729 = vmatpush1.msra.mxu0 %v916
      %3730 = vmatprep.subr.mxu0 0.0
      %3731 = vmatpush1.msra.mxu0 %v917
      %3732 = vmatprep.subr.mxu0 0.0
      %3733 = vmatpush1.msra.mxu0 %v918
      %3734 = vmatprep.subr.mxu0 0.0
      %3735 = vmatpush1.msra.mxu0 %v919
      %3736 = vmatprep.subr.mxu0 0.0
      %3737 = vmatpush1.msra.mxu0 %v920
      %3738 = vmatprep.subr.mxu0 0.0
      %3739 = vmatpush1.msra.mxu0 %v921
      %3740 = vmatprep.subr.mxu0 0.0
      %3741 = vmatpush1.msra.mxu0 %v922
      %3742 = vmatprep.subr.mxu0 0.0
      %3743 = vmatpush1.msra.mxu0 %v923
      %3744 = vmatprep.subr.mxu0 0.0
      %3745 = vmatpush1.msra.mxu0 %v924
      %3746 = vmatprep.subr.mxu0 0.0
      %3747 = vmatpush1.msra.mxu0 %v925
      %3748 = vmatprep.subr.mxu0 0.0
      %3749 = vmatpush1.msra.mxu0 %v926
      %3750 = vmatprep.subr.mxu0 0.0
      %3751 = vmatpush1.msra.mxu0 %v927
      %3752 = vmatprep.subr.mxu0 0.0
      %3753 = vmatpush1.msra.mxu0 %v928
      %3754 = vmatprep.subr.mxu0 0.0
      %3755 = vmatpush1.msra.mxu0 %v929
      %3756 = vmatprep.subr.mxu0 0.0
      %3757 = vmatpush1.msra.mxu0 %v930
      %3758 = vmatprep.subr.mxu0 0.0
      %3759 = vmatpush1.msra.mxu0 %v931
      %3760 = vmatprep.subr.mxu0 0.0
      %3761 = vmatpush1.msra.mxu0 %v932
      %3762 = vmatprep.subr.mxu0 0.0
      %3763 = vmatpush1.msra.mxu0 %v933
      %3764 = vmatprep.mubr.f32.mxu0 %v3699
      %3765 = vmatmul.mubr.f32.gmra.mrb[0].mxu0 %v3697
      %v3766 = vpop.f32.mrb[0].mxu0
      %v3767 = vadd.f32 %v962, %v3766
      %v3768 = vpop.f32.mrb[0].mxu0
      %3769 = vdwg.mxu0
      %v3770 = vxor.u32 %v3767, 2147483648
      %v3771 = vmul.f32 %v3770, 1.442695
      %v3772 = vpow.pop %v3771
      %v3773 = vadd.f32 %v3772, 1.0
      %v3774 = vrcp.pop %v3773
      %v3775 = vmul.f32 1.0, %v3774
      %v3776 = vsub.f32 %v3697, %v3699
      %v3777 = vmul.f32 %v3775, %v3776
      %v3778 = vadd.f32 %v3699, %v3777
      %v3779 = vmul.f32 %v3778, %v3442
      %s3780 = scalar_lea.vmem %s316, 48
      %v3781 = vld [vmem:[%s3780] sm:$0xff]
      %3782 = vmatprep.subr.mxu0 0.0
      %3783 = vmatpush1.msra.mxu0 %v934
      %3784 = vmatprep.subr.mxu0 0.0
      %3785 = vmatpush1.msra.mxu0 %v935
      %3786 = vmatprep.subr.mxu0 0.0
      %3787 = vmatpush1.msra.mxu0 %v936
      %3788 = vmatprep.subr.mxu0 0.0
      %3789 = vmatpush1.msra.mxu0 %v937
      %3790 = vmatprep.subr.mxu0 0.0
      %3791 = vmatpush1.msra.mxu0 %v938
      %3792 = vmatprep.subr.mxu0 0.0
      %3793 = vmatpush1.msra.mxu0 %v939
      %3794 = vmatprep.subr.mxu0 0.0
      %3795 = vmatpush1.msra.mxu0 %v940
      %3796 = vmatprep.subr.mxu0 0.0
      %3797 = vmatpush1.msra.mxu0 %v941
      %3798 = vmatprep.subr.mxu0 0.0
      %3799 = vmatpush1.msra.mxu0 %v942
      %3800 = vmatprep.subr.mxu0 0.0
      %3801 = vmatpush1.msra.mxu0 %v943
      %3802 = vmatprep.subr.mxu0 0.0
      %3803 = vmatpush1.msra.mxu0 %v944
      %3804 = vmatprep.subr.mxu0 0.0
      %3805 = vmatpush1.msra.mxu0 %v945
      %3806 = vmatprep.subr.mxu0 0.0
      %3807 = vmatpush1.msra.mxu0 %v946
      %3808 = vmatprep.subr.mxu0 0.0
      %3809 = vmatpush1.msra.mxu0 %v947
      %3810 = vmatprep.subr.mxu0 0.0
      %3811 = vmatpush1.msra.mxu0 %v948
      %3812 = vmatprep.subr.mxu0 0.0
      %3813 = vmatpush1.msra.mxu0 %v949
      %3814 = vmatprep.subr.mxu0 0.0
      %3815 = vmatpush1.msra.mxu0 0.0
      %3816 = vmatprep.subr.mxu0 0.0
      %3817 = vmatpush1.msra.mxu0 0.0
      %3818 = vmatprep.subr.mxu0 0.0
      %3819 = vmatpush1.msra.mxu0 0.0
      %3820 = vmatprep.subr.mxu0 0.0
      %3821 = vmatpush1.msra.mxu0 0.0
      %3822 = vmatprep.subr.mxu0 0.0
      %3823 = vmatpush1.msra.mxu0 0.0
      %3824 = vmatprep.subr.mxu0 0.0
      %3825 = vmatpush1.msra.mxu0 0.0
      %3826 = vmatprep.subr.mxu0 0.0
      %3827 = vmatpush1.msra.mxu0 0.0
      %3828 = vmatprep.subr.mxu0 0.0
      %3829 = vmatpush1.msra.mxu0 0.0
      %3830 = vmatprep.subr.mxu0 0.0
      %3831 = vmatpush1.msra.mxu0 0.0
      %3832 = vmatprep.subr.mxu0 0.0
      %3833 = vmatpush1.msra.mxu0 0.0
      %3834 = vmatprep.subr.mxu0 0.0
      %3835 = vmatpush1.msra.mxu0 0.0
      %3836 = vmatprep.subr.mxu0 0.0
      %3837 = vmatpush1.msra.mxu0 0.0
      %3838 = vmatprep.subr.mxu0 0.0
      %3839 = vmatpush1.msra.mxu0 0.0
      %3840 = vmatprep.subr.mxu0 0.0
      %3841 = vmatpush1.msra.mxu0 0.0
      %3842 = vmatprep.subr.mxu0 0.0
      %3843 = vmatpush1.msra.mxu0 0.0
      %3844 = vmatprep.subr.mxu0 0.0
      %3845 = vmatpush1.msra.mxu0 0.0
      %3846 = vmatprep.mubr.f32.mxu0 0.0
      %3847 = vmatmul.mubr.f32.gmra.mrb[0].mxu0 %v3779
      %v3848 = vpop.f32.mrb[0].mxu0
      %v3849 = vadd.f32 0.0, %v3848
      %v3850 = vpop.f32.mrb[0].mxu0
      %3851 = vdwg.mxu0
      %v3852 = vadd.f32 %v3781, %v3849
      %v3853 = vtanh.pop %v3852
      %v3854 = vsub.f32 %v3442, %v3853
      %v3855 = vmul.f32 %v3611, %v3854
      %v3856 = vadd.f32 %v3853, %v3855
      %s3857 = scalar_lea.vmem %s329, 48
      %3858 = vst [vmem:[%s3857] sm:$0xff] %v3856
      %s3859 = scalar_lea.vmem %s296, 112
      %v3860 = vld [vmem:[%s3859] sm:$0xff]
      %v3861 = vld [vmem:[%s3859 + $0x8] sm:$0xff]
      %3862 = vmatprep.subr.mxu0 %v807
      %3863 = vmatpush1.msra.mxu0 %v806
      %3864 = vmatprep.subr.mxu0 %v809
      %3865 = vmatpush1.msra.mxu0 %v808
      %3866 = vmatprep.subr.mxu0 %v811
      %3867 = vmatpush1.msra.mxu0 %v810
      %3868 = vmatprep.subr.mxu0 %v813
      %3869 = vmatpush1.msra.mxu0 %v812
      %3870 = vmatprep.subr.mxu0 %v815
      %3871 = vmatpush1.msra.mxu0 %v814
      %3872 = vmatprep.subr.mxu0 %v817
      %3873 = vmatpush1.msra.mxu0 %v816
      %3874 = vmatprep.subr.mxu0 %v819
      %3875 = vmatpush1.msra.mxu0 %v818
      %3876 = vmatprep.subr.mxu0 %v821
      %3877 = vmatpush1.msra.mxu0 %v820
      %3878 = vmatprep.subr.mxu0 %v823
      %3879 = vmatpush1.msra.mxu0 %v822
      %3880 = vmatprep.subr.mxu0 %v825
      %3881 = vmatpush1.msra.mxu0 %v824
      %3882 = vmatprep.subr.mxu0 %v827
      %3883 = vmatpush1.msra.mxu0 %v826
      %3884 = vmatprep.subr.mxu0 %v829
      %3885 = vmatpush1.msra.mxu0 %v828
      %3886 = vmatprep.subr.mxu0 %v831
      %3887 = vmatpush1.msra.mxu0 %v830
      %3888 = vmatprep.subr.mxu0 %v833
      %3889 = vmatpush1.msra.mxu0 %v832
      %3890 = vmatprep.subr.mxu0 %v835
      %3891 = vmatpush1.msra.mxu0 %v834
      %3892 = vmatprep.subr.mxu0 %v837
      %3893 = vmatpush1.msra.mxu0 %v836
      %3894 = vmatprep.subr.mxu0 0.0
      %3895 = vmatpush1.msra.mxu0 0.0
      %3896 = vmatprep.subr.mxu0 0.0
      %3897 = vmatpush1.msra.mxu0 0.0
      %3898 = vmatprep.subr.mxu0 0.0
      %3899 = vmatpush1.msra.mxu0 0.0
      %3900 = vmatprep.subr.mxu0 0.0
      %3901 = vmatpush1.msra.mxu0 0.0
      %3902 = vmatprep.subr.mxu0 0.0
      %3903 = vmatpush1.msra.mxu0 0.0
      %3904 = vmatprep.subr.mxu0 0.0
      %3905 = vmatpush1.msra.mxu0 0.0
      %3906 = vmatprep.subr.mxu0 0.0
      %3907 = vmatpush1.msra.mxu0 0.0
      %3908 = vmatprep.subr.mxu0 0.0
      %3909 = vmatpush1.msra.mxu0 0.0
      %3910 = vmatprep.subr.mxu0 0.0
      %3911 = vmatpush1.msra.mxu0 0.0
      %3912 = vmatprep.subr.mxu0 0.0
      %3913 = vmatpush1.msra.mxu0 0.0
      %3914 = vmatprep.subr.mxu0 0.0
      %3915 = vmatpush1.msra.mxu0 0.0
      %3916 = vmatprep.subr.mxu0 0.0
      %3917 = vmatpush1.msra.mxu0 0.0
      %3918 = vmatprep.subr.mxu0 0.0
      %3919 = vmatpush1.msra.mxu0 0.0
      %3920 = vmatprep.subr.mxu0 0.0
      %3921 = vmatpush1.msra.mxu0 0.0
      %3922 = vmatprep.subr.mxu0 0.0
      %3923 = vmatpush1.msra.mxu0 0.0
      %3924 = vmatprep.subr.mxu0 0.0
      %3925 = vmatpush1.msra.mxu0 0.0
      %3926 = vmatprep.mubr.f32.mxu0 0.0
      %3927 = vmatmul.mubr.f32.gmra.mrb[0].mxu0 %v3856
      %v3928 = vpop.f32.mrb[0].mxu0
      %v3929 = vadd.f32 0.0, %v3928
      %v3930 = vpop.f32.mrb[0].mxu0
      %v3931 = vadd.f32 0.0, %v3930
      %3932 = vdwg.mxu0
      %v3933 = vadd.f32 %v3860, %v3929
      %v3934 = vadd.f32 %v3861, %v3931
      %v3935 = vxor.u32 %v3933, 2147483648
      %v3936 = vxor.u32 %v3934, 2147483648
      %v3937 = vmul.f32 %v3935, 1.442695
      %v3938 = vpow.pop %v3937
      %v3939 = vmul.f32 %v3936, 1.442695
      %v3940 = vpow.pop %v3939
      %v3941 = vadd.f32 %v3938, 1.0
      %v3942 = vadd.f32 %v3940, 1.0
      %v3943 = vrcp.pop %v3941
      %v3944 = vmul.f32 1.0, %v3943
      %v3945 = vrcp.pop %v3942
      %v3946 = vmul.f32 1.0, %v3945
      %3947 = vmatprep.subr.mxu0 0.0
      %3948 = vmatpush1.msra.mxu0 %v870
      %3949 = vmatprep.subr.mxu0 0.0
      %3950 = vmatpush1.msra.mxu0 %v871
      %3951 = vmatprep.subr.mxu0 0.0
      %3952 = vmatpush1.msra.mxu0 %v872
      %3953 = vmatprep.subr.mxu0 0.0
      %3954 = vmatpush1.msra.mxu0 %v873
      %3955 = vmatprep.subr.mxu0 0.0
      %3956 = vmatpush1.msra.mxu0 %v874
      %3957 = vmatprep.subr.mxu0 0.0
      %3958 = vmatpush1.msra.mxu0 %v875
      %3959 = vmatprep.subr.mxu0 0.0
      %3960 = vmatpush1.msra.mxu0 %v876
      %3961 = vmatprep.subr.mxu0 0.0
      %3962 = vmatpush1.msra.mxu0 %v877
      %3963 = vmatprep.subr.mxu0 0.0
      %3964 = vmatpush1.msra.mxu0 %v878
      %3965 = vmatprep.subr.mxu0 0.0
      %3966 = vmatpush1.msra.mxu0 %v879
      %3967 = vmatprep.subr.mxu0 0.0
      %3968 = vmatpush1.msra.mxu0 %v880
      %3969 = vmatprep.subr.mxu0 0.0
      %3970 = vmatpush1.msra.mxu0 %v881
      %3971 = vmatprep.subr.mxu0 0.0
      %3972 = vmatpush1.msra.mxu0 %v882
      %3973 = vmatprep.subr.mxu0 0.0
      %3974 = vmatpush1.msra.mxu0 %v883
      %3975 = vmatprep.subr.mxu0 0.0
      %3976 = vmatpush1.msra.mxu0 %v884
      %3977 = vmatprep.subr.mxu0 0.0
      %3978 = vmatpush1.msra.mxu0 %v885
      %3979 = vmatprep.subr.mxu0 0.0
      %3980 = vmatpush1.msra.mxu0 %v886
      %3981 = vmatprep.subr.mxu0 0.0
      %3982 = vmatpush1.msra.mxu0 %v887
      %3983 = vmatprep.subr.mxu0 0.0
      %3984 = vmatpush1.msra.mxu0 %v888
      %3985 = vmatprep.subr.mxu0 0.0
      %3986 = vmatpush1.msra.mxu0 %v889
      %3987 = vmatprep.subr.mxu0 0.0
      %3988 = vmatpush1.msra.mxu0 %v890
      %3989 = vmatprep.subr.mxu0 0.0
      %3990 = vmatpush1.msra.mxu0 %v891
      %3991 = vmatprep.subr.mxu0 0.0
      %3992 = vmatpush1.msra.mxu0 %v892
      %3993 = vmatprep.subr.mxu0 0.0
      %3994 = vmatpush1.msra.mxu0 %v893
      %3995 = vmatprep.subr.mxu0 0.0
      %3996 = vmatpush1.msra.mxu0 %v894
      %3997 = vmatprep.subr.mxu0 0.0
      %3998 = vmatpush1.msra.mxu0 %v895
      %3999 = vmatprep.subr.mxu0 0.0
      %4000 = vmatpush1.msra.mxu0 %v896
      %4001 = vmatprep.subr.mxu0 0.0
      %4002 = vmatpush1.msra.mxu0 %v897
      %4003 = vmatprep.subr.mxu0 0.0
      %4004 = vmatpush1.msra.mxu0 %v898
      %4005 = vmatprep.subr.mxu0 0.0
      %4006 = vmatpush1.msra.mxu0 %v899
      %4007 = vmatprep.subr.mxu0 0.0
      %4008 = vmatpush1.msra.mxu0 %v900
      %4009 = vmatprep.subr.mxu0 0.0
      %4010 = vmatpush1.msra.mxu0 %v901
      %4011 = vmatprep.mubr.f32.mxu0 %v3946
      %4012 = vmatmul.mubr.f32.gmra.mrb[0].mxu0 %v3944
      %v4013 = vpop.f32.mrb[0].mxu0
      %v4014 = vadd.f32 %v955, %v4013
      %v4015 = vpop.f32.mrb[0].mxu0
      %4016 = vdwg.mxu0
      %v4017 = vxor.u32 %v4014, 2147483648
      %v4018 = vmul.f32 %v4017, 1.442695
      %v4019 = vpow.pop %v4018
      %v4020 = vadd.f32 %v4019, 1.0
      %v4021 = vrcp.pop %v4020
      %v4022 = vmul.f32 1.0, %v4021
      %v4023 = vsub.f32 %v3944, %v3946
      %v4024 = vmul.f32 %v4022, %v4023
      %v4025 = vadd.f32 %v3946, %v4024
      %s4026 = scalar_lea.vmem %s307, 112
      %v4027 = vld [vmem:[%s4026] sm:$0xff]
      %v4028 = vld [vmem:[%s4026 + $0x8] sm:$0xff]
      %4029 = vmatprep.subr.mxu0 %v839
      %4030 = vmatpush1.msra.mxu0 %v838
      %4031 = vmatprep.subr.mxu0 %v841
      %4032 = vmatpush1.msra.mxu0 %v840
      %4033 = vmatprep.subr.mxu0 %v843
      %4034 = vmatpush1.msra.mxu0 %v842
      %4035 = vmatprep.subr.mxu0 %v845
      %4036 = vmatpush1.msra.mxu0 %v844
      %4037 = vmatprep.subr.mxu0 %v847
      %4038 = vmatpush1.msra.mxu0 %v846
      %4039 = vmatprep.subr.mxu0 %v849
      %4040 = vmatpush1.msra.mxu0 %v848
      %4041 = vmatprep.subr.mxu0 %v851
      %4042 = vmatpush1.msra.mxu0 %v850
      %4043 = vmatprep.subr.mxu0 %v853
      %4044 = vmatpush1.msra.mxu0 %v852
      %4045 = vmatprep.subr.mxu0 %v855
      %4046 = vmatpush1.msra.mxu0 %v854
      %4047 = vmatprep.subr.mxu0 %v857
      %4048 = vmatpush1.msra.mxu0 %v856
      %4049 = vmatprep.subr.mxu0 %v859
      %4050 = vmatpush1.msra.mxu0 %v858
      %4051 = vmatprep.subr.mxu0 %v861
      %4052 = vmatpush1.msra.mxu0 %v860
      %4053 = vmatprep.subr.mxu0 %v863
      %4054 = vmatpush1.msra.mxu0 %v862
      %4055 = vmatprep.subr.mxu0 %v865
      %4056 = vmatpush1.msra.mxu0 %v864
      %4057 = vmatprep.subr.mxu0 %v867
      %4058 = vmatpush1.msra.mxu0 %v866
      %4059 = vmatprep.subr.mxu0 %v869
      %4060 = vmatpush1.msra.mxu0 %v868
      %4061 = vmatprep.subr.mxu0 0.0
      %4062 = vmatpush1.msra.mxu0 0.0
      %4063 = vmatprep.subr.mxu0 0.0
      %4064 = vmatpush1.msra.mxu0 0.0
      %4065 = vmatprep.subr.mxu0 0.0
      %4066 = vmatpush1.msra.mxu0 0.0
      %4067 = vmatprep.subr.mxu0 0.0
      %4068 = vmatpush1.msra.mxu0 0.0
      %4069 = vmatprep.subr.mxu0 0.0
      %4070 = vmatpush1.msra.mxu0 0.0
      %4071 = vmatprep.subr.mxu0 0.0
      %4072 = vmatpush1.msra.mxu0 0.0
      %4073 = vmatprep.subr.mxu0 0.0
      %4074 = vmatpush1.msra.mxu0 0.0
      %4075 = vmatprep.subr.mxu0 0.0
      %4076 = vmatpush1.msra.mxu0 0.0
      %4077 = vmatprep.subr.mxu0 0.0
      %4078 = vmatpush1.msra.mxu0 0.0
      %4079 = vmatprep.subr.mxu0 0.0
      %4080 = vmatpush1.msra.mxu0 0.0
      %4081 = vmatprep.subr.mxu0 0.0
      %4082 = vmatpush1.msra.mxu0 0.0
      %4083 = vmatprep.subr.mxu0 0.0
      %4084 = vmatpush1.msra.mxu0 0.0
      %4085 = vmatprep.subr.mxu0 0.0
      %4086 = vmatpush1.msra.mxu0 0.0
      %4087 = vmatprep.subr.mxu0 0.0
      %4088 = vmatpush1.msra.mxu0 0.0
      %4089 = vmatprep.subr.mxu0 0.0
      %4090 = vmatpush1.msra.mxu0 0.0
      %4091 = vmatprep.subr.mxu0 0.0
      %4092 = vmatpush1.msra.mxu0 0.0
      %4093 = vmatprep.mubr.f32.mxu0 0.0
      %4094 = vmatmul.mubr.f32.gmra.mrb[0].mxu0 %v3856
      %v4095 = vpop.f32.mrb[0].mxu0
      %v4096 = vadd.f32 0.0, %v4095
      %v4097 = vpop.f32.mrb[0].mxu0
      %v4098 = vadd.f32 0.0, %v4097
      %4099 = vdwg.mxu0
      %v4100 = vadd.f32 %v4027, %v4096
      %v4101 = vadd.f32 %v4028, %v4098
      %v4102 = vxor.u32 %v4100, 2147483648
      %v4103 = vxor.u32 %v4101, 2147483648
      %v4104 = vmul.f32 %v4102, 1.442695
      %v4105 = vpow.pop %v4104
      %v4106 = vmul.f32 %v4103, 1.442695
      %v4107 = vpow.pop %v4106
      %v4108 = vadd.f32 %v4105, 1.0
      %v4109 = vadd.f32 %v4107, 1.0
      %v4110 = vrcp.pop %v4108
      %v4111 = vmul.f32 1.0, %v4110
      %v4112 = vrcp.pop %v4109
      %v4113 = vmul.f32 1.0, %v4112
      %4114 = vmatprep.subr.mxu0 0.0
      %4115 = vmatpush1.msra.mxu0 %v902
      %4116 = vmatprep.subr.mxu0 0.0
      %4117 = vmatpush1.msra.mxu0 %v903
      %4118 = vmatprep.subr.mxu0 0.0
      %4119 = vmatpush1.msra.mxu0 %v904
      %4120 = vmatprep.subr.mxu0 0.0
      %4121 = vmatpush1.msra.mxu0 %v905
      %4122 = vmatprep.subr.mxu0 0.0
      %4123 = vmatpush1.msra.mxu0 %v906
      %4124 = vmatprep.subr.mxu0 0.0
      %4125 = vmatpush1.msra.mxu0 %v907
      %4126 = vmatprep.subr.mxu0 0.0
      %4127 = vmatpush1.msra.mxu0 %v908
      %4128 = vmatprep.subr.mxu0 0.0
      %4129 = vmatpush1.msra.mxu0 %v909
      %4130 = vmatprep.subr.mxu0 0.0
      %4131 = vmatpush1.msra.mxu0 %v910
      %4132 = vmatprep.subr.mxu0 0.0
      %4133 = vmatpush1.msra.mxu0 %v911
      %4134 = vmatprep.subr.mxu0 0.0
      %4135 = vmatpush1.msra.mxu0 %v912
      %4136 = vmatprep.subr.mxu0 0.0
      %4137 = vmatpush1.msra.mxu0 %v913
      %4138 = vmatprep.subr.mxu0 0.0
      %4139 = vmatpush1.msra.mxu0 %v914
      %4140 = vmatprep.subr.mxu0 0.0
      %4141 = vmatpush1.msra.mxu0 %v915
      %4142 = vmatprep.subr.mxu0 0.0
      %4143 = vmatpush1.msra.mxu0 %v916
      %4144 = vmatprep.subr.mxu0 0.0
      %4145 = vmatpush1.msra.mxu0 %v917
      %4146 = vmatprep.subr.mxu0 0.0
      %4147 = vmatpush1.msra.mxu0 %v918
      %4148 = vmatprep.subr.mxu0 0.0
      %4149 = vmatpush1.msra.mxu0 %v919
      %4150 = vmatprep.subr.mxu0 0.0
      %4151 = vmatpush1.msra.mxu0 %v920
      %4152 = vmatprep.subr.mxu0 0.0
      %4153 = vmatpush1.msra.mxu0 %v921
      %4154 = vmatprep.subr.mxu0 0.0
      %4155 = vmatpush1.msra.mxu0 %v922
      %4156 = vmatprep.subr.mxu0 0.0
      %4157 = vmatpush1.msra.mxu0 %v923
      %4158 = vmatprep.subr.mxu0 0.0
      %4159 = vmatpush1.msra.mxu0 %v924
      %4160 = vmatprep.subr.mxu0 0.0
      %4161 = vmatpush1.msra.mxu0 %v925
      %4162 = vmatprep.subr.mxu0 0.0
      %4163 = vmatpush1.msra.mxu0 %v926
      %4164 = vmatprep.subr.mxu0 0.0
      %4165 = vmatpush1.msra.mxu0 %v927
      %4166 = vmatprep.subr.mxu0 0.0
      %4167 = vmatpush1.msra.mxu0 %v928
      %4168 = vmatprep.subr.mxu0 0.0
      %4169 = vmatpush1.msra.mxu0 %v929
      %4170 = vmatprep.subr.mxu0 0.0
      %4171 = vmatpush1.msra.mxu0 %v930
      %4172 = vmatprep.subr.mxu0 0.0
      %4173 = vmatpush1.msra.mxu0 %v931
      %4174 = vmatprep.subr.mxu0 0.0
      %4175 = vmatpush1.msra.mxu0 %v932
      %4176 = vmatprep.subr.mxu0 0.0
      %4177 = vmatpush1.msra.mxu0 %v933
      %4178 = vmatprep.mubr.f32.mxu0 %v4113
      %4179 = vmatmul.mubr.f32.gmra.mrb[0].mxu0 %v4111
      %v4180 = vpop.f32.mrb[0].mxu0
      %v4181 = vadd.f32 %v962, %v4180
      %v4182 = vpop.f32.mrb[0].mxu0
      %4183 = vdwg.mxu0
      %v4184 = vxor.u32 %v4181, 2147483648
      %v4185 = vmul.f32 %v4184, 1.442695
      %v4186 = vpow.pop %v4185
      %v4187 = vadd.f32 %v4186, 1.0
      %v4188 = vrcp.pop %v4187
      %v4189 = vmul.f32 1.0, %v4188
      %v4190 = vsub.f32 %v4111, %v4113
      %v4191 = vmul.f32 %v4189, %v4190
      %v4192 = vadd.f32 %v4113, %v4191
      %v4193 = vmul.f32 %v4192, %v3856
      %s4194 = scalar_lea.vmem %s316, 56
      %v4195 = vld [vmem:[%s4194] sm:$0xff]
      %4196 = vmatprep.subr.mxu0 0.0
      %4197 = vmatpush1.msra.mxu0 %v934
      %4198 = vmatprep.subr.mxu0 0.0
      %4199 = vmatpush1.msra.mxu0 %v935
      %4200 = vmatprep.subr.mxu0 0.0
      %4201 = vmatpush1.msra.mxu0 %v936
      %4202 = vmatprep.subr.mxu0 0.0
      %4203 = vmatpush1.msra.mxu0 %v937
      %4204 = vmatprep.subr.mxu0 0.0
      %4205 = vmatpush1.msra.mxu0 %v938
      %4206 = vmatprep.subr.mxu0 0.0
      %4207 = vmatpush1.msra.mxu0 %v939
      %4208 = vmatprep.subr.mxu0 0.0
      %4209 = vmatpush1.msra.mxu0 %v940
      %4210 = vmatprep.subr.mxu0 0.0
      %4211 = vmatpush1.msra.mxu0 %v941
      %4212 = vmatprep.subr.mxu0 0.0
      %4213 = vmatpush1.msra.mxu0 %v942
      %4214 = vmatprep.subr.mxu0 0.0
      %4215 = vmatpush1.msra.mxu0 %v943
      %4216 = vmatprep.subr.mxu0 0.0
      %4217 = vmatpush1.msra.mxu0 %v944
      %4218 = vmatprep.subr.mxu0 0.0
      %4219 = vmatpush1.msra.mxu0 %v945
      %4220 = vmatprep.subr.mxu0 0.0
      %4221 = vmatpush1.msra.mxu0 %v946
      %4222 = vmatprep.subr.mxu0 0.0
      %4223 = vmatpush1.msra.mxu0 %v947
      %4224 = vmatprep.subr.mxu0 0.0
      %4225 = vmatpush1.msra.mxu0 %v948
      %4226 = vmatprep.subr.mxu0 0.0
      %4227 = vmatpush1.msra.mxu0 %v949
      %4228 = vmatprep.subr.mxu0 0.0
      %4229 = vmatpush1.msra.mxu0 0.0
      %4230 = vmatprep.subr.mxu0 0.0
      %4231 = vmatpush1.msra.mxu0 0.0
      %4232 = vmatprep.subr.mxu0 0.0
      %4233 = vmatpush1.msra.mxu0 0.0
      %4234 = vmatprep.subr.mxu0 0.0
      %4235 = vmatpush1.msra.mxu0 0.0
      %4236 = vmatprep.subr.mxu0 0.0
      %4237 = vmatpush1.msra.mxu0 0.0
      %4238 = vmatprep.subr.mxu0 0.0
      %4239 = vmatpush1.msra.mxu0 0.0
      %4240 = vmatprep.subr.mxu0 0.0
      %4241 = vmatpush1.msra.mxu0 0.0
      %4242 = vmatprep.subr.mxu0 0.0
      %4243 = vmatpush1.msra.mxu0 0.0
      %4244 = vmatprep.subr.mxu0 0.0
      %4245 = vmatpush1.msra.mxu0 0.0
      %4246 = vmatprep.subr.mxu0 0.0
      %4247 = vmatpush1.msra.mxu0 0.0
      %4248 = vmatprep.subr.mxu0 0.0
      %4249 = vmatpush1.msra.mxu0 0.0
      %4250 = vmatprep.subr.mxu0 0.0
      %4251 = vmatpush1.msra.mxu0 0.0
      %4252 = vmatprep.subr.mxu0 0.0
      %4253 = vmatpush1.msra.mxu0 0.0
      %4254 = vmatprep.subr.mxu0 0.0
      %4255 = vmatpush1.msra.mxu0 0.0
      %4256 = vmatprep.subr.mxu0 0.0
      %4257 = vmatpush1.msra.mxu0 0.0
      %4258 = vmatprep.subr.mxu0 0.0
      %4259 = vmatpush1.msra.mxu0 0.0
      %4260 = vmatprep.mubr.f32.mxu0 0.0
      %4261 = vmatmul.mubr.f32.gmra.mrb[0].mxu0 %v4193
      %v4262 = vpop.f32.mrb[0].mxu0
      %v4263 = vadd.f32 0.0, %v4262
      %v4264 = vpop.f32.mrb[0].mxu0
      %4265 = vdwg.mxu0
      %v4266 = vadd.f32 %v4195, %v4263
      %v4267 = vtanh.pop %v4266
      %v4268 = vsub.f32 %v3856, %v4267
      %v4269 = vmul.f32 %v4025, %v4268
      %v4270 = vadd.f32 %v4267, %v4269
      %s4271 = scalar_lea.vmem %s329, 56
      %4272 = vst [vmem:[%s4271] sm:$0xff] %v4270
      %4273 = vst [vmem:[#allocation6] sm:$0xff] %v4270
      %s4274 = smul.u32 8, %s24
      %p4275 = scmp.lt.s32.totalorder %s4274, 15
      %s4276 = scalar_select %p4275, %s4274, 15
      %p4277 = scmp.lt.s32.totalorder %s23, 0
      %s4278 = scalar_select %p4277, %s23, 0
      %s4279 = sadd.s32 %s4278, %s4276
      %s4280 = smul.addr %s4279, 8
      %s4281 = scalar_lea.vmem %s8, %s4280
      // Predicated region
      $region173: #{ggru_forward.1} parent=35 // pred_check
        %p4282 = pneg %p161
      $region174: #{ggru_forward.1} parent=35 // pred_check_branch
        %4284 = sbr.rel (%p4282) target = $region176
      $region175: #{ggru_forward.1} parent=35 // pred_region
        %s4285 = smul.u32 8, %s24
      $region176: #{ggru_forward.1} parent=35 // pred_fallthru
        _
    $region36: #{ggru_forward.1} parent=5 // pred_fallthru
      _
    %p4286 = scmp.le.s32.totalorder 2, %s14
    // Predicated region
    $region177: #{ggru_forward.1} parent=5 // pred_check
      %p4287 = pneg %p4286
    $region178: #{ggru_forward.1} parent=5 // pred_check_branch
      %4289 = sbr.rel (%p4287) target = $region180
    $region179: #{ggru_forward.1} parent=5 // pred_region
      %s4290 = ssub.s32 %s14, 2
      // Predicated region
      $region181: #{ggru_forward.1} parent=179 // pred_check
        %p4291 = pneg %p167
      $region182: #{ggru_forward.1} parent=179 // pred_check_branch
        %4293 = sbr.rel (%p4291) target = $region184
      $region183: #{ggru_forward.1} parent=179 // pred_region
        %s4294 = smul.u32 8, %s26
        %p4295 = scmp.lt.s32.totalorder %s4294, 15
        %s4296 = scalar_select %p4295, %s4294, 15
        %p4297 = scmp.lt.s32.totalorder %s25, 0
        %s4298 = scalar_select %p4297, %s25, 0
        %s4299 = sadd.s32 %s4298, %s4296
        %s4300 = smul.addr %s4299, 8
        %s4301 = scalar_lea.vmem %s8, %s4300
      $region184: #{ggru_forward.1} parent=179 // pred_fallthru
        _
    $region180: #{ggru_forward.1} parent=5 // pred_fallthru
      _
  $region6: #{ggru_forward.1} parent=0 // loop_footer
    %s18 = sadd.s32 1, %s14
  $region7: #{ggru_forward.1} parent=0 // loop_footer_branch
    %13 = sbr.rel target = $region3
  $region8: #{ggru_forward.1} parent=0 // loop_exit
    _
  %4302 = vsyncmov [#allocation7]
  %s4303 = vpop.sfrf %4302
  %p4304 = scmp.eq.s32.totalorder %s4303, 0
  %p4305 = pneg %p4304
  %4307 = shalt.err (%p4305)
  %s4308 = scalar_lea.sflag [#allocation7], 1
  %4309 = vsyncmov %s4308
  %s4310 = vpop.sfrf %4309
  %p4311 = scmp.eq.s32.totalorder %s4310, 0
  %p4312 = pneg %p4311
  %4314 = shalt.err (%p4312)
  %s4315 = scalar_lea.sflag [#allocation7], 2
  %4316 = vsyncmov %s4315
  %s4317 = vpop.sfrf %4316
  %p4318 = scmp.eq.s32.totalorder %s4317, 0
  %p4319 = pneg %p4318
  %4321 = shalt.err (%p4319)
  %s4322 = scalar_lea.sflag [#allocation7], 3
  %4323 = vsyncmov %s4322
  %s4324 = vpop.sfrf %4323
  %p4325 = scmp.eq.s32.totalorder %s4324, 0
  %p4326 = pneg %p4325
  %4328 = shalt.err (%p4326)

</llo_original>
